<compile_context>
chip_gen: v7x
topology: tpu7x:2x2x1
jax: 0.10.0
libtpu: 0.0.40
codegen_flags: <defaults>
</compile_context>

<pallas_src>
import numpy as np
import jax
import jax.numpy as jnp
from jax import lax
from jax.experimental import pallas as pl
from jax.experimental.pallas import tpu as pltpu

L_MAX = 48          # padded per-element length (sublane axis), >= max intermediate length (46)
C_PAD = 128         # lane width
MAX_BATCH_PACK = 8  # max batch elements packed along the sublane axis per grid step


# ---------------------------------------------------------------------------
# Static layer structure (mirrors deconv_decoder exactly)
# ---------------------------------------------------------------------------
def build_layer_configs(layer_sizes, output_shape):
    (t_len, t_channels) = layer_sizes[0]
    (o_len, o_channels) = output_shape
    hidden = layer_sizes[1]
    cfgs = []
    in_len, in_ch = t_len, t_channels
    while 2 * in_len + 8 <= o_len:
        cfgs.append(dict(K=5, C_in=in_ch, C_out=hidden, relu=True, upsample=True, L_in=in_len))
        in_len = 2 * in_len + 8
        in_ch = hidden
    diff = o_len - in_len
    for _ in range(diff // 4):
        cfgs.append(dict(K=5, C_in=in_ch, C_out=hidden, relu=True, upsample=False, L_in=in_len))
        in_len += 4
        in_ch = hidden
    rem = diff % 4
    if rem > 0:
        cfgs.append(dict(K=rem + 1, C_in=in_ch, C_out=hidden, relu=True, upsample=False, L_in=in_len))
        in_len += rem
        in_ch = hidden
    # final 1x1 ConvTranspose1d, no activation
    cfgs.append(dict(K=1, C_in=in_ch, C_out=o_channels, relu=False, upsample=False, L_in=in_len))
    assert in_len == o_len, (in_len, o_len)
    for c in cfgs:
        c["L_conv"] = c["L_in"] + c["K"] - 1
        c["L_out"] = 2 * c["L_conv"] if c["upsample"] else c["L_conv"]
        assert c["L_out"] <= L_MAX and c["C_out"] <= C_PAD and c["C_in"] <= C_PAD
    return cfgs


def choose_c_blk(layer_sizes, output_shape):
    m = max(layer_sizes[0][1], layer_sizes[1], output_shape[1])
    c = 8
    while c < m:
        c *= 2
    assert C_PAD % c == 0
    return c


# ---------------------------------------------------------------------------
# Kernel
# ---------------------------------------------------------------------------
def make_kernel(cfgs, t_len, t_channels, bp, c_blk, compute_dtype=jnp.bfloat16):
    n_rows = bp * L_MAX

    def kernel(x_ref, w_ref, b_ref, u_ref, out_ref):
        # ---- hoisted constants (built once, reused by every layer) ----
        rows_mod = lax.broadcasted_iota(jnp.int32, (n_rows, C_PAD), 0) % L_MAX
        lane_mod = lax.broadcasted_iota(jnp.int32, (n_rows, C_PAD), 1) % c_blk
        in_mask = (rows_mod < t_len) & (lane_mod < t_channels)
        b_full = b_ref[...]                         # (n_layers, 128) f32, lane-replicated

        # sigmoid, then zero everything outside each element's (t_len, t_channels) window
        # (keeps the zero-outside-window invariant the tap rolls rely on).
        x = jax.nn.sigmoid(x_ref[...].astype(jnp.float32))
        x = jnp.where(in_mask, x, 0.0)

        w_row = 0
        u_row = 0
        for li, cfg in enumerate(cfgs):
            K, L_conv = cfg["K"], cfg["L_conv"]

            # ConvTranspose1d (stride=1, pad=0): y[t] = bias + sum_k x[t-k] @ W[:,:,k].
            # LHS = lane-concat of the K rolled copies of x (rolls on f32 x, cast to bf16),
            # RHS = (K*128, 128) block-diagonal tap slab -> ONE MXU contraction over taps.
            x_bf = x.astype(compute_dtype)
            if K > 1:
                parts = [x_bf]
                for k in range(1, K):
                    # circular roll == zero-fill shift: wrapped rows are provably zero
                    # (rows >= L_in of every packed window are zero and L_in + k <= L_MAX).
                    parts.append(pltpu.roll(x, shift=k, axis=0).astype(compute_dtype))
                lhs = jnp.concatenate(parts, axis=1)          # (n_rows, K*128) bf16
            else:
                lhs = x_bf
            w_l = w_ref[pl.ds(w_row, K * C_PAD), :]           # (K*128, 128) bf16
            y = jnp.dot(lhs, w_l, preferred_element_type=jnp.float32)

            bias = b_full[li:li + 1, :]                       # (1, 128)
            y = jnp.where(rows_mod < L_conv, y + bias, 0.0)   # bias + keep invariant
            if cfg["relu"]:
                y = jnp.maximum(y, 0.0)

            if cfg["upsample"]:
                # nn.Upsample(scale_factor=2, mode='linear') folded into one bf16 matmul with
                # a block-diagonal interleave+blend matrix (rows >= L_out are zero -> the
                # output automatically keeps the zero-outside-window invariant).
                u_l = u_ref[pl.ds(u_row, n_rows), :]          # (n_rows, n_rows) bf16
                y = jnp.dot(u_l, y.astype(compute_dtype), preferred_element_type=jnp.float32)
                u_row += n_rows

            x = y
            w_row += K * C_PAD

        out_ref[...] = x

    return kernel


# ---------------------------------------------------------------------------
# Parameters (deterministic, PyTorch-like uniform init) + packing for the kernel
# ---------------------------------------------------------------------------
def init_params(cfgs, key):
    params = []
    for cfg in cfgs:
        key, kw, kb = jax.random.split(key, 3)
        C_in, C_out, K = cfg["C_in"], cfg["C_out"], cfg["K"]
        bound = 1.0 / np.sqrt(C_in * K)
        w = jax.random.uniform(kw, (C_in, C_out, K), jnp.float32, -bound, bound)
        b = jax.random.uniform(kb, (C_out,), jnp.float32, -bound, bound)
        params.append(dict(w=w, b=b))
    return params


def pack_params(params, cfgs, c_blk, compute_dtype=jnp.bfloat16):
    """Row-stacked tap slabs (K*128, 128) per layer, block-diagonal per lane-packed element."""
    lane_pack = C_PAD // c_blk
    total_k = sum(cfg["K"] for cfg in cfgs)
    w_all = np.zeros((total_k * C_PAD, C_PAD), np.float32)
    b_all = np.zeros((len(cfgs), C_PAD), np.float32)
    row_off = 0
    for li, (cfg, p) in enumerate(zip(cfgs, params)):
        K, C_in, C_out = cfg["K"], cfg["C_in"], cfg["C_out"]
        assert C_in <= c_blk and C_out <= c_blk
        w = np.asarray(p["w"], np.float32)                    # (C_in, C_out, K)
        b = np.asarray(p["b"], np.float32)
        for k in range(K):
            for g in range(lane_pack):
                r = row_off + k * C_PAD + g * c_blk
                c = g * c_blk
                w_all[r:r + C_in, c:c + C_out] = w[:, :, k]
        for g in range(lane_pack):
            b_all[li, g * c_blk:g * c_blk + C_out] = b
        row_off += K * C_PAD
    return jnp.asarray(w_all, compute_dtype), jnp.asarray(b_all, jnp.float32)


def build_upsample_matrices(cfgs, bp):
    """One (n_rows, n_rows) interleave+blend matrix per upsample layer (exact in bf16)."""
    n_rows = bp * L_MAX
    blocks = []
    for cfg in cfgs:
        if not cfg["upsample"]:
            continue
        L = cfg["L_conv"]
        Ub = np.zeros((L_MAX, L_MAX), np.float32)
        for m in range(L):
            if m == 0:
                Ub[0, 0] = 1.0
            else:
                Ub[2 * m, m - 1] = 0.25
                Ub[2 * m, m] = 0.75
            if m == L - 1:
                Ub[2 * m + 1, m] = 1.0
            else:
                Ub[2 * m + 1, m] = 0.75
                Ub[2 * m + 1, m + 1] = 0.25
        U = np.zeros((n_rows, n_rows), np.float32)
        for s in range(bp):
            U[s * L_MAX:(s + 1) * L_MAX, s * L_MAX:(s + 1) * L_MAX] = Ub
        blocks.append(U)
    if not blocks:
        return jnp.zeros((16, C_PAD), jnp.bfloat16)   # dummy, never read
    return jnp.asarray(np.concatenate(blocks, axis=0), jnp.bfloat16)


# ---------------------------------------------------------------------------
# Wrapper: pad/pack into the working layout, run the Pallas kernel, slice back.
# ---------------------------------------------------------------------------
def vae_cnn_decoder(x, w_all, b_all, cfgs, layer_sizes, output_shape, c_blk,
                    max_batch_pack=MAX_BATCH_PACK):
    B = x.shape[0]
    (t_len, t_channels) = layer_sizes[0]
    (o_len, o_channels) = output_shape
    lane_pack = C_PAD // c_blk

    # Sublane batch-pack: as large as possible to amortize per-step overhead, but keep the
    # grid length >= 2 when we can so both v7x TensorCores get work.
    n_slots = -(-B // lane_pack)                       # sublane groups needed
    bp = min(max_batch_pack, max(1, n_slots // 2))
    G = -(-n_slots // bp)
    B_pad = G * bp * lane_pack
    n_rows = bp * L_MAX

    x_pad = jnp.zeros((B_pad, L_MAX, c_blk), jnp.float32)
    x_pad = x_pad.at[:B, :t_len, :t_channels].set(x.astype(jnp.float32))
    x_packed = (x_pad.reshape(G, bp, lane_pack, L_MAX, c_blk)
                      .transpose(0, 1, 3, 2, 4)
                      .reshape(G, n_rows, C_PAD))

    u_all = build_upsample_matrices(cfgs, bp)
    kernel = make_kernel(cfgs, t_len, t_channels, bp, c_blk)

    out_packed = pl.pallas_call(
        kernel,
        out_shape=jax.ShapeDtypeStruct((G, n_rows, C_PAD), jnp.float32),
        grid=(G,),
        in_specs=[
            pl.BlockSpec((None, n_rows, C_PAD), lambda g: (g, 0, 0)),   # packed activations
            pl.BlockSpec(w_all.shape, lambda g: (0, 0)),                # all tap weights (bf16)
            pl.BlockSpec(b_all.shape, lambda g: (0, 0)),                # all biases (f32)
            pl.BlockSpec(u_all.shape, lambda g: (0, 0)),                # all upsample mats (bf16)
        ],
        out_specs=pl.BlockSpec((None, n_rows, C_PAD), lambda g: (g, 0, 0)),
        compiler_params=pltpu.CompilerParams(
            dimension_semantics=("parallel",),
            vmem_limit_bytes=32 * 1024 * 1024),
    )(x_packed, w_all, b_all, u_all)

    out = (out_packed.reshape(G, bp, L_MAX, lane_pack, c_blk)
                     .transpose(0, 1, 3, 2, 4)
                     .reshape(B_pad, L_MAX, c_blk))
    return out[:B, :o_len, :o_channels]


# ---------------------------------------------------------------------------
# Pure NumPy reference (mirrors PyTorch semantics) for a correctness smoke test.
# ---------------------------------------------------------------------------
def reference_forward(x, params, cfgs):
    x = np.asarray(x, np.float64)
    x = 1.0 / (1.0 + np.exp(-x))  # sigmoid
    outs = []
    for b in range(x.shape[0]):
        h = x[b]  # (L, C)
        for cfg, p in zip(cfgs, params):
            K = cfg["K"]
            w = np.asarray(p["w"], np.float64)   # (C_in, C_out, K)
            bias = np.asarray(p["b"], np.float64)
            L_in = h.shape[0]
            L_conv = L_in + K - 1
            y = np.tile(bias[None, :], (L_conv, 1))
            for t in range(L_conv):
                for k in range(K):
                    s = t - k
                    if 0 <= s < L_in:
                        y[t] += h[s] @ w[:, :, k]
            if cfg["relu"]:
                y = np.maximum(y, 0.0)
            if cfg["upsample"]:
                L = y.shape[0]
                up = np.zeros((2 * L, y.shape[1]))
                for j in range(2 * L):
                    src = max((j + 0.5) * 0.5 - 0.5, 0.0)
                    i0 = int(np.floor(src))
                    i1 = min(i0 + 1, L - 1)
                    lam = src - i0
                    up[j] = (1.0 - lam) * y[i0] + lam * y[i1]
                y = up
            h = y
        outs.append(h)
    return np.stack(outs, axis=0)


if __name__ == "__main__":
    # Small config: latent (t_len=4, t_channels=4), hidden=8, output (o_len=46, o_channels=3)
    # -> 2 upsampling deconv blocks (k=5), 1 plain deconv (k=5), 1 plain deconv (k=3), final 1x1.
    layer_sizes = [(4, 4), 8]
    output_shape = (46, 3)
    B = 64   # 16 elements lane-packed x 2 sublane-packed per step -> grid of 2 steps

    cfgs = build_layer_configs(layer_sizes, output_shape)
    c_blk = choose_c_blk(layer_sizes, output_shape)

    key = jax.random.PRNGKey(0)
    key, kx = jax.random.split(key)
    x = jax.random.normal(kx, (B, layer_sizes[0][0], layer_sizes[0][1]), jnp.float32)
    params = init_params(cfgs, key)
    w_all, b_all = pack_params(params, cfgs, c_blk)

    out = vae_cnn_decoder(x, w_all, b_all, cfgs, layer_sizes, output_shape, c_blk)
    out = jax.block_until_ready(out)

    assert out.shape == (B, output_shape[0], output_shape[1]), out.shape

    ref = reference_forward(np.asarray(x), params, cfgs)
    np.testing.assert_allclose(np.asarray(out), ref, rtol=3e-2, atol=3e-2)

    print("KERNEL_OK")
</pallas_src>

<mosaic_0001>
module attributes {stable_mosaic.version = 11 : i64} {
  func.func @kernel(%arg0: i32, %arg1: memref<1x96x128xf32, #tpu.memory_space<vmem>>, %arg2: memref<2432x128xbf16, #tpu.memory_space<vmem>>, %arg3: memref<5x128xf32, #tpu.memory_space<vmem>>, %arg4: memref<192x96xbf16, #tpu.memory_space<vmem>>, %arg5: memref<1x96x128xf32, #tpu.memory_space<vmem>>) attributes {dimension_semantics = [#tpu.dimension_semantics<parallel>], iteration_bounds = array<i64: 2>, scalar_prefetch = 0 : i64, scratch_operands = 0 : i64, tpu.core_type = #tpu.core_type<tc>, window_params = [{transform_indices = @transform_0, window_bounds = array<i64: 1, 96, 128>}, {pipeline_mode = #tpu.pipeline_mode<synchronous>, transform_indices = @transform_1, window_bounds = array<i64: 2432, 128>}, {pipeline_mode = #tpu.pipeline_mode<synchronous>, transform_indices = @transform_2, window_bounds = array<i64: 5, 128>}, {pipeline_mode = #tpu.pipeline_mode<synchronous>, transform_indices = @transform_3, window_bounds = array<i64: 192, 96>}, {transform_indices = @transform_4, window_bounds = array<i64: 1, 96, 128>}]} {
    %0 = tpu.iota {dimensions = array<i32: 0>} : vector<96x128xi32>
    %c48_i32 = arith.constant 48 : i32
    %c0_i32 = arith.constant 0 : i32
    %1 = arith.cmpi eq, %c48_i32, %c0_i32 : i32
    %c1_i32 = arith.constant 1 : i32
    %2 = arith.select %1, %c1_i32, %c48_i32 : i32
    %3 = vector.broadcast %2 : i32 to vector<96x128xi32>
    %4 = arith.remsi %0, %3 : vector<96x128xi32>
    %c0_i32_0 = arith.constant 0 : i32
    %5 = vector.broadcast %c0_i32_0 : i32 to vector<96x128xi32>
    %6 = arith.cmpi ne, %4, %5 : vector<96x128xi32>
    %c0_i32_1 = arith.constant 0 : i32
    %7 = vector.broadcast %c0_i32_1 : i32 to vector<96x128xi32>
    %8 = arith.cmpi slt, %4, %7 : vector<96x128xi32>
    %c0_i32_2 = arith.constant 0 : i32
    %9 = arith.cmpi slt, %2, %c0_i32_2 : i32
    %10 = vector.broadcast %9 : i1 to vector<96x128xi1>
    %11 = vector.broadcast %10 : vector<96x128xi1> to vector<96x128xi1>
    %12 = arith.xori %8, %11 : vector<96x128xi1>
    %13 = arith.andi %12, %6 : vector<96x128xi1>
    %14 = vector.broadcast %2 : i32 to vector<96x128xi32>
    %15 = arith.addi %4, %14 : vector<96x128xi32>
    %16 = arith.select %13, %15, %4 : vector<96x128xi1>, vector<96x128xi32>
    %17 = tpu.iota {dimensions = array<i32: 1>} : vector<96x128xi32>
    %c8_i32 = arith.constant 8 : i32
    %c0_i32_3 = arith.constant 0 : i32
    %18 = arith.cmpi eq, %c8_i32, %c0_i32_3 : i32
    %c1_i32_4 = arith.constant 1 : i32
    %19 = arith.select %18, %c1_i32_4, %c8_i32 : i32
    %20 = vector.broadcast %19 : i32 to vector<96x128xi32>
    %21 = arith.remsi %17, %20 : vector<96x128xi32>
    %c0_i32_5 = arith.constant 0 : i32
    %22 = vector.broadcast %c0_i32_5 : i32 to vector<96x128xi32>
    %23 = arith.cmpi ne, %21, %22 : vector<96x128xi32>
    %c0_i32_6 = arith.constant 0 : i32
    %24 = vector.broadcast %c0_i32_6 : i32 to vector<96x128xi32>
    %25 = arith.cmpi slt, %21, %24 : vector<96x128xi32>
    %c0_i32_7 = arith.constant 0 : i32
    %26 = arith.cmpi slt, %19, %c0_i32_7 : i32
    %27 = vector.broadcast %26 : i1 to vector<96x128xi1>
    %28 = vector.broadcast %27 : vector<96x128xi1> to vector<96x128xi1>
    %29 = arith.xori %25, %28 : vector<96x128xi1>
    %30 = arith.andi %29, %23 : vector<96x128xi1>
    %31 = vector.broadcast %19 : i32 to vector<96x128xi32>
    %32 = arith.addi %21, %31 : vector<96x128xi32>
    %33 = arith.select %30, %32, %21 : vector<96x128xi1>, vector<96x128xi32>
    %c4_i32 = arith.constant 4 : i32
    %34 = vector.broadcast %c4_i32 : i32 to vector<96x128xi32>
    %35 = arith.cmpi slt, %16, %34 : vector<96x128xi32>
    %c4_i32_8 = arith.constant 4 : i32
    %36 = vector.broadcast %c4_i32_8 : i32 to vector<96x128xi32>
    %37 = arith.cmpi slt, %33, %36 : vector<96x128xi32>
    %38 = arith.andi %35, %37 : vector<96x128xi1>
    %c0 = arith.constant 0 : index
    %c0_9 = arith.constant 0 : index
    %39 = vector.load %arg3[%c0, %c0_9] : memref<5x128xf32, #tpu.memory_space<vmem>>, vector<5x128xf32>
    %c0_10 = arith.constant 0 : index
    %c0_11 = arith.constant 0 : index
    %c0_12 = arith.constant 0 : index
    %40 = vector.load %arg1[%c0_10, %c0_11, %c0_12] : memref<1x96x128xf32, #tpu.memory_space<vmem>>, vector<1x96x128xf32>
    %41 = vector.shape_cast %40 : vector<1x96x128xf32> to vector<96x128xf32>
    %42 = arith.negf %41 : vector<96x128xf32>
    %43 = math.exp %42 : vector<96x128xf32>
    %cst = arith.constant 1.000000e+00 : f32
    %44 = vector.broadcast %cst : f32 to vector<96x128xf32>
    %45 = arith.addf %44, %43 : vector<96x128xf32>
    %46 = arith.divf %44, %45 : vector<96x128xf32>
    %cst_13 = arith.constant 0.000000e+00 : f32
    %47 = vector.broadcast %cst_13 : f32 to vector<96x128xf32>
    %48 = arith.select %38, %46, %47 : vector<96x128xi1>, vector<96x128xf32>
    %49 = arith.truncf %48 : vector<96x128xf32> to vector<96x128xbf16>
    %c1_i32_14 = arith.constant 1 : i32
    %50 = tpu.dynamic_rotate %48 by %c1_i32_14 dim 0 : vector<96x128xf32>, i32 -> vector<96x128xf32>
    %51 = arith.truncf %50 : vector<96x128xf32> to vector<96x128xbf16>
    %c2_i32 = arith.constant 2 : i32
    %52 = tpu.dynamic_rotate %48 by %c2_i32 dim 0 : vector<96x128xf32>, i32 -> vector<96x128xf32>
    %53 = arith.truncf %52 : vector<96x128xf32> to vector<96x128xbf16>
    %c3_i32 = arith.constant 3 : i32
    %54 = tpu.dynamic_rotate %48 by %c3_i32 dim 0 : vector<96x128xf32>, i32 -> vector<96x128xf32>
    %55 = arith.truncf %54 : vector<96x128xf32> to vector<96x128xbf16>
    %c4_i32_15 = arith.constant 4 : i32
    %56 = tpu.dynamic_rotate %48 by %c4_i32_15 dim 0 : vector<96x128xf32>, i32 -> vector<96x128xf32>
    %57 = arith.truncf %56 : vector<96x128xf32> to vector<96x128xbf16>
    %58 = tpu.concatenate %49, %51, %53, %55, %57 in 1 : vector<96x128xbf16>, vector<96x128xbf16>, vector<96x128xbf16>, vector<96x128xbf16>, vector<96x128xbf16> -> vector<96x640xbf16>
    %c0_16 = arith.constant 0 : index
    %c0_17 = arith.constant 0 : index
    %59 = vector.load %arg2[%c0_16, %c0_17] : memref<2432x128xbf16, #tpu.memory_space<vmem>>, vector<640x128xbf16>
    %cst_18 = arith.constant dense<0.000000e+00> : vector<96x128xf32>
    %60 = tpu.matmul %58, %59, %cst_18 {dimension_numbers = #tpu.dot_dimension_numbers<[1], [0], [0], [1], [0, 0, 1, 1], [], []>} : vector<96x640xbf16>, vector<640x128xbf16>, vector<96x128xf32> -> vector<96x128xf32>
    %61 = vector.extract_strided_slice %39 {offsets = [0, 0], sizes = [1, 128], strides = [1, 1]} : vector<5x128xf32> to vector<1x128xf32>
    %c8_i32_19 = arith.constant 8 : i32
    %62 = vector.broadcast %c8_i32_19 : i32 to vector<96x128xi32>
    %63 = arith.cmpi slt, %16, %62 : vector<96x128xi32>
    %64 = vector.broadcast %61 : vector<1x128xf32> to vector<96x128xf32>
    %65 = arith.addf %60, %64 : vector<96x128xf32>
    %cst_20 = arith.constant 0.000000e+00 : f32
    %66 = vector.broadcast %cst_20 : f32 to vector<96x128xf32>
    %67 = arith.select %63, %65, %66 : vector<96x128xi1>, vector<96x128xf32>
    %cst_21 = arith.constant 0.000000e+00 : f32
    %68 = vector.broadcast %cst_21 : f32 to vector<96x128xf32>
    %69 = arith.maximumf %67, %68 : vector<96x128xf32>
    %c0_22 = arith.constant 0 : index
    %c0_23 = arith.constant 0 : index
    %70 = vector.load %arg4[%c0_22, %c0_23] : memref<192x96xbf16, #tpu.memory_space<vmem>>, vector<96x96xbf16>
    %71 = arith.truncf %69 : vector<96x128xf32> to vector<96x128xbf16>
    %cst_24 = arith.constant dense<0.000000e+00> : vector<96x128xf32>
    %72 = tpu.matmul %70, %71, %cst_24 {dimension_numbers = #tpu.dot_dimension_numbers<[1], [0], [0], [1], [0, 0, 1, 1], [], []>} : vector<96x96xbf16>, vector<96x128xbf16>, vector<96x128xf32> -> vector<96x128xf32>
    %73 = arith.truncf %72 : vector<96x128xf32> to vector<96x128xbf16>
    %c1_i32_25 = arith.constant 1 : i32
    %74 = tpu.dynamic_rotate %72 by %c1_i32_25 dim 0 : vector<96x128xf32>, i32 -> vector<96x128xf32>
    %75 = arith.truncf %74 : vector<96x128xf32> to vector<96x128xbf16>
    %c2_i32_26 = arith.constant 2 : i32
    %76 = tpu.dynamic_rotate %72 by %c2_i32_26 dim 0 : vector<96x128xf32>, i32 -> vector<96x128xf32>
    %77 = arith.truncf %76 : vector<96x128xf32> to vector<96x128xbf16>
    %c3_i32_27 = arith.constant 3 : i32
    %78 = tpu.dynamic_rotate %72 by %c3_i32_27 dim 0 : vector<96x128xf32>, i32 -> vector<96x128xf32>
    %79 = arith.truncf %78 : vector<96x128xf32> to vector<96x128xbf16>
    %c4_i32_28 = arith.constant 4 : i32
    %80 = tpu.dynamic_rotate %72 by %c4_i32_28 dim 0 : vector<96x128xf32>, i32 -> vector<96x128xf32>
    %81 = arith.truncf %80 : vector<96x128xf32> to vector<96x128xbf16>
    %82 = tpu.concatenate %73, %75, %77, %79, %81 in 1 : vector<96x128xbf16>, vector<96x128xbf16>, vector<96x128xbf16>, vector<96x128xbf16>, vector<96x128xbf16> -> vector<96x640xbf16>
    %c640 = arith.constant 640 : index
    %c0_29 = arith.constant 0 : index
    %83 = vector.load %arg2[%c640, %c0_29] : memref<2432x128xbf16, #tpu.memory_space<vmem>>, vector<640x128xbf16>
    %cst_30 = arith.constant dense<0.000000e+00> : vector<96x128xf32>
    %84 = tpu.matmul %82, %83, %cst_30 {dimension_numbers = #tpu.dot_dimension_numbers<[1], [0], [0], [1], [0, 0, 1, 1], [], []>} : vector<96x640xbf16>, vector<640x128xbf16>, vector<96x128xf32> -> vector<96x128xf32>
    %85 = vector.extract_strided_slice %39 {offsets = [1, 0], sizes = [1, 128], strides = [1, 1]} : vector<5x128xf32> to vector<1x128xf32>
    %c20_i32 = arith.constant 20 : i32
    %86 = vector.broadcast %c20_i32 : i32 to vector<96x128xi32>
    %87 = arith.cmpi slt, %16, %86 : vector<96x128xi32>
    %88 = vector.broadcast %85 : vector<1x128xf32> to vector<96x128xf32>
    %89 = arith.addf %84, %88 : vector<96x128xf32>
    %cst_31 = arith.constant 0.000000e+00 : f32
    %90 = vector.broadcast %cst_31 : f32 to vector<96x128xf32>
    %91 = arith.select %87, %89, %90 : vector<96x128xi1>, vector<96x128xf32>
    %cst_32 = arith.constant 0.000000e+00 : f32
    %92 = vector.broadcast %cst_32 : f32 to vector<96x128xf32>
    %93 = arith.maximumf %91, %92 : vector<96x128xf32>
    %c96 = arith.constant 96 : index
    %c0_33 = arith.constant 0 : index
    %94 = vector.load %arg4[%c96, %c0_33] : memref<192x96xbf16, #tpu.memory_space<vmem>>, vector<96x96xbf16>
    %95 = arith.truncf %93 : vector<96x128xf32> to vector<96x128xbf16>
    %cst_34 = arith.constant dense<0.000000e+00> : vector<96x128xf32>
    %96 = tpu.matmul %94, %95, %cst_34 {dimension_numbers = #tpu.dot_dimension_numbers<[1], [0], [0], [1], [0, 0, 1, 1], [], []>} : vector<96x96xbf16>, vector<96x128xbf16>, vector<96x128xf32> -> vector<96x128xf32>
    %97 = arith.truncf %96 : vector<96x128xf32> to vector<96x128xbf16>
    %c1_i32_35 = arith.constant 1 : i32
    %98 = tpu.dynamic_rotate %96 by %c1_i32_35 dim 0 : vector<96x128xf32>, i32 -> vector<96x128xf32>
    %99 = arith.truncf %98 : vector<96x128xf32> to vector<96x128xbf16>
    %c2_i32_36 = arith.constant 2 : i32
    %100 = tpu.dynamic_rotate %96 by %c2_i32_36 dim 0 : vector<96x128xf32>, i32 -> vector<96x128xf32>
    %101 = arith.truncf %100 : vector<96x128xf32> to vector<96x128xbf16>
    %c3_i32_37 = arith.constant 3 : i32
    %102 = tpu.dynamic_rotate %96 by %c3_i32_37 dim 0 : vector<96x128xf32>, i32 -> vector<96x128xf32>
    %103 = arith.truncf %102 : vector<96x128xf32> to vector<96x128xbf16>
    %c4_i32_38 = arith.constant 4 : i32
    %104 = tpu.dynamic_rotate %96 by %c4_i32_38 dim 0 : vector<96x128xf32>, i32 -> vector<96x128xf32>
    %105 = arith.truncf %104 : vector<96x128xf32> to vector<96x128xbf16>
    %106 = tpu.concatenate %97, %99, %101, %103, %105 in 1 : vector<96x128xbf16>, vector<96x128xbf16>, vector<96x128xbf16>, vector<96x128xbf16>, vector<96x128xbf16> -> vector<96x640xbf16>
    %c1280 = arith.constant 1280 : index
    %c0_39 = arith.constant 0 : index
    %107 = vector.load %arg2[%c1280, %c0_39] : memref<2432x128xbf16, #tpu.memory_space<vmem>>, vector<640x128xbf16>
    %cst_40 = arith.constant dense<0.000000e+00> : vector<96x128xf32>
    %108 = tpu.matmul %106, %107, %cst_40 {dimension_numbers = #tpu.dot_dimension_numbers<[1], [0], [0], [1], [0, 0, 1, 1], [], []>} : vector<96x640xbf16>, vector<640x128xbf16>, vector<96x128xf32> -> vector<96x128xf32>
    %109 = vector.extract_strided_slice %39 {offsets = [2, 0], sizes = [1, 128], strides = [1, 1]} : vector<5x128xf32> to vector<1x128xf32>
    %c44_i32 = arith.constant 44 : i32
    %110 = vector.broadcast %c44_i32 : i32 to vector<96x128xi32>
    %111 = arith.cmpi slt, %16, %110 : vector<96x128xi32>
    %112 = vector.broadcast %109 : vector<1x128xf32> to vector<96x128xf32>
    %113 = arith.addf %108, %112 : vector<96x128xf32>
    %cst_41 = arith.constant 0.000000e+00 : f32
    %114 = vector.broadcast %cst_41 : f32 to vector<96x128xf32>
    %115 = arith.select %111, %113, %114 : vector<96x128xi1>, vector<96x128xf32>
    %cst_42 = arith.constant 0.000000e+00 : f32
    %116 = vector.broadcast %cst_42 : f32 to vector<96x128xf32>
    %117 = arith.maximumf %115, %116 : vector<96x128xf32>
    %118 = arith.truncf %117 : vector<96x128xf32> to vector<96x128xbf16>
    %c1_i32_43 = arith.constant 1 : i32
    %119 = tpu.dynamic_rotate %117 by %c1_i32_43 dim 0 : vector<96x128xf32>, i32 -> vector<96x128xf32>
    %120 = arith.truncf %119 : vector<96x128xf32> to vector<96x128xbf16>
    %c2_i32_44 = arith.constant 2 : i32
    %121 = tpu.dynamic_rotate %117 by %c2_i32_44 dim 0 : vector<96x128xf32>, i32 -> vector<96x128xf32>
    %122 = arith.truncf %121 : vector<96x128xf32> to vector<96x128xbf16>
    %123 = tpu.concatenate %118, %120, %122 in 1 : vector<96x128xbf16>, vector<96x128xbf16>, vector<96x128xbf16> -> vector<96x384xbf16>
    %c1920 = arith.constant 1920 : index
    %c0_45 = arith.constant 0 : index
    %124 = vector.load %arg2[%c1920, %c0_45] : memref<2432x128xbf16, #tpu.memory_space<vmem>>, vector<384x128xbf16>
    %cst_46 = arith.constant dense<0.000000e+00> : vector<96x128xf32>
    %125 = tpu.matmul %123, %124, %cst_46 {dimension_numbers = #tpu.dot_dimension_numbers<[1], [0], [0], [1], [0, 0, 1, 1], [], []>} : vector<96x384xbf16>, vector<384x128xbf16>, vector<96x128xf32> -> vector<96x128xf32>
    %126 = vector.extract_strided_slice %39 {offsets = [3, 0], sizes = [1, 128], strides = [1, 1]} : vector<5x128xf32> to vector<1x128xf32>
    %c46_i32 = arith.constant 46 : i32
    %127 = vector.broadcast %c46_i32 : i32 to vector<96x128xi32>
    %128 = arith.cmpi slt, %16, %127 : vector<96x128xi32>
    %129 = vector.broadcast %126 : vector<1x128xf32> to vector<96x128xf32>
    %130 = arith.addf %125, %129 : vector<96x128xf32>
    %cst_47 = arith.constant 0.000000e+00 : f32
    %131 = vector.broadcast %cst_47 : f32 to vector<96x128xf32>
    %132 = arith.select %128, %130, %131 : vector<96x128xi1>, vector<96x128xf32>
    %cst_48 = arith.constant 0.000000e+00 : f32
    %133 = vector.broadcast %cst_48 : f32 to vector<96x128xf32>
    %134 = arith.maximumf %132, %133 : vector<96x128xf32>
    %135 = arith.truncf %134 : vector<96x128xf32> to vector<96x128xbf16>
    %c2304 = arith.constant 2304 : index
    %c0_49 = arith.constant 0 : index
    %136 = vector.load %arg2[%c2304, %c0_49] : memref<2432x128xbf16, #tpu.memory_space<vmem>>, vector<128x128xbf16>
    %cst_50 = arith.constant dense<0.000000e+00> : vector<96x128xf32>
    %137 = tpu.matmul %135, %136, %cst_50 {dimension_numbers = #tpu.dot_dimension_numbers<[1], [0], [0], [1], [0, 0, 1, 1], [], []>} : vector<96x128xbf16>, vector<128x128xbf16>, vector<96x128xf32> -> vector<96x128xf32>
    %138 = vector.extract_strided_slice %39 {offsets = [4, 0], sizes = [1, 128], strides = [1, 1]} : vector<5x128xf32> to vector<1x128xf32>
    %c46_i32_51 = arith.constant 46 : i32
    %139 = vector.broadcast %c46_i32_51 : i32 to vector<96x128xi32>
    %140 = arith.cmpi slt, %16, %139 : vector<96x128xi32>
    %141 = vector.broadcast %138 : vector<1x128xf32> to vector<96x128xf32>
    %142 = arith.addf %137, %141 : vector<96x128xf32>
    %cst_52 = arith.constant 0.000000e+00 : f32
    %143 = vector.broadcast %cst_52 : f32 to vector<96x128xf32>
    %144 = arith.select %140, %142, %143 : vector<96x128xi1>, vector<96x128xf32>
    %c0_53 = arith.constant 0 : index
    %c0_54 = arith.constant 0 : index
    %c0_55 = arith.constant 0 : index
    %145 = vector.load %arg5[%c0_53, %c0_54, %c0_55] : memref<1x96x128xf32, #tpu.memory_space<vmem>>, vector<1x96x128xf32>
    %146 = vector.shape_cast %145 : vector<1x96x128xf32> to vector<96x128xf32>
    %147 = vector.shape_cast %144 : vector<96x128xf32> to vector<1x96x128xf32>
    tpu.vector_store %arg5[%c0_53, %c0_54, %c0_55], %147 {strides = array<i32>} : memref<1x96x128xf32, #tpu.memory_space<vmem>>, vector<1x96x128xf32>,
    return
  }
  func.func @transform_0(%arg0: i32) -> (i32, i32, i32) {
    %c0_i32 = arith.constant 0 : i32
    %c0_i32_0 = arith.constant 0 : i32
    %c0_i32_1 = arith.constant 0 : i32
    return %arg0, %c0_i32, %c0_i32_0 : i32, i32, i32
  }
  func.func @transform_1(%arg0: i32) -> (i32, i32) {
    %c0_i32 = arith.constant 0 : i32
    %c0_i32_0 = arith.constant 0 : i32
    %c0_i32_1 = arith.constant 0 : i32
    return %c0_i32, %c0_i32_0 : i32, i32
  }
  func.func @transform_2(%arg0: i32) -> (i32, i32) {
    %c0_i32 = arith.constant 0 : i32
    %c0_i32_0 = arith.constant 0 : i32
    %c0_i32_1 = arith.constant 0 : i32
    return %c0_i32, %c0_i32_0 : i32, i32
  }
  func.func @transform_3(%arg0: i32) -> (i32, i32) {
    %c0_i32 = arith.constant 0 : i32
    %c0_i32_0 = arith.constant 0 : i32
    %c0_i32_1 = arith.constant 0 : i32
    return %c0_i32, %c0_i32_0 : i32, i32
  }
  func.func @transform_4(%arg0: i32) -> (i32, i32, i32) {
    %c0_i32 = arith.constant 0 : i32
    %c0_i32_0 = arith.constant 0 : i32
    %c0_i32_1 = arith.constant 0 : i32
    return %arg0, %c0_i32, %c0_i32_0 : i32, i32, i32
  }
}

</mosaic_0001>

<llo_original>
// kernel: tpu_custom_call.1
$region0: #{tpu_custom_call.1}
  #allocation0 [shape = 'u32[]', space=smem, size = 0x4, offset = 0x4, fixed_abs, tag = 'smem constant byte address 0x4 - core index']
  #allocation1 [shape = 'u32[144,128]{1,0:T(1,128)}', space=vmem, size = 0x12000, scoped, tag = 'internal scratch']
  %s0 = inlined_call_operand.hbm [shape: f32[2,96,128], index: 0, kind: input, shape index: {}]
  %s1 = inlined_call_operand.hbm [shape: bf16[2432,128], index: 1, kind: input, shape index: {}]
  %s2 = inlined_call_operand.hbm [shape: f32[5,128], index: 2, kind: input, shape index: {}]
  %s3 = inlined_call_operand.hbm [shape: bf16[192,96], index: 3, kind: input, shape index: {}]
  %s4 = inlined_call_operand.hbm [shape: f32[2,96,128], index: 4, kind: output, shape index: {}]
  %s5 = sld [smem:[#allocation0]]
  $region65: #{tpu_custom_call.1} parent=0
    _
  %s7 = ssub.s32 1, %s5
  %s8 = scalar_select 0, %s7, %s5
  $region1: #{tpu_custom_call.1} parent=0
    #allocation2 [shape = 'u8[98304]{0}', space=vmem, size = 0x18000, scoped, tag = 'input window, operand 0']
    #allocation3 [shape = 's32[2]{0}', space=sflag, size = 0x8, scoped, tag = 'scoped memory for tpu_custom_call.1']
    #allocation4 [shape = 's32[2]{0}', space=sflag, size = 0x8, scoped, tag = 'scoped memory for tpu_custom_call.1']
    #allocation5 [shape = 'u8[622592]{0}', space=vmem, size = 0x98000, scoped, tag = 'input window, operand 1, single buffered']
    #allocation6 [shape = 's32[1]{0}', space=sflag, size = 0x4, scoped, tag = 'scoped memory for tpu_custom_call.1']
    #allocation7 [shape = 'u8[4096]{0}', space=vmem, size = 0x1000, scoped, tag = 'input window, operand 2, single buffered']
    #allocation8 [shape = 'u8[49152]{0}', space=vmem, size = 0xc000, scoped, tag = 'input window, operand 3, single buffered']
    #allocation9 [shape = 's32[1]{0}', space=sflag, size = 0x4, scoped, tag = 'scoped memory for tpu_custom_call.1']
    #allocation10 [shape = 'u8[98304]{0}', space=vmem, size = 0x18000, scoped, tag = 'output window, operand 0']
    %9 = vsyncpa [#allocation3], 0
    %s10 = scalar_lea.sflag [#allocation3], 1
    %11 = vsyncpa %s10, 0
    %12 = vsyncpa [#allocation6], 0
    %13 = vsyncpa [#allocation9], 0
    %14 = vsyncpa [#allocation4], 0
    %s15 = scalar_lea.sflag [#allocation4], 1
    %16 = vsyncpa %s15, 0
    loop: start=0, step=1, limit=4
    $region2: #{tpu_custom_call.1} parent=1 // loop_pre_header
      _
    $region3: #{tpu_custom_call.1} parent=1 // loop_header
      %s18 = sphi 0, %s22
      %p19 = scmp.ge.s32.totalorder %s18, 4
      %s28 = sphi 0, %s30
      %s31 = sphi 0, %s28
      %s32 = sphi 0, %s31
      %s48 = sphi 0, %s32
      %s52 = sphi 0, %s52
      %s54 = sphi 0, %s52
      %s55 = sphi 0, %s54
      %s69 = sphi 0, %s55
      %s73 = sphi 0, %s73
      %s75 = sphi 0, %s73
      %s76 = sphi 0, %s75
      %s90 = sphi 0, %s76
      %s94 = sphi 0, %s94
      %s96 = sphi 0, %s94
      %s97 = sphi 0, %s96
      %s111 = sphi 0, %s97
      %s117 = sphi 0, %s119
      %s120 = sphi 0, %s117
      %s121 = sphi 0, %s120
      %s137 = sphi 0, %s121
    $region4: #{tpu_custom_call.1} parent=1 // loop_header_branch
      %21 = sbr.rel (%p19) target = $region8
    $region5: #{tpu_custom_call.1} parent=1 // loop_body
      %s23 = ssub.s32 %s18, 1
      %s24 = ssub.s32 %s18, 2
      %s25 = sadd.s32 %s18, 1
      %s26 = ssub.s32 %s18, %s25
      %p27 = scmp.eq.s32.totalorder %s26, 0
      %s29 = sadd.s32 %s28, 1
      %s30 = scalar_select %p27, %s28, %s29
      %p33 = pneg %p27
      %p34 = scmp.eq.s32.totalorder %s18, 1
      %p35 = por %p33, %p34
      %p36 = scmp.ne.s32.totalorder %s28, %s31
      %p37 = scmp.eq.s32.totalorder %s18, 0
      %p38 = por %p36, %p37
      %p39 = scmp.ne.s32.totalorder %s28, %s31
      %p40 = scmp.eq.s32.totalorder %s23, 1
      %p41 = por %p39, %p40
      %p42 = scmp.ne.s32.totalorder %s31, %s32
      %p43 = scmp.eq.s32.totalorder %s23, 0
      %p44 = por %p42, %p43
      %p45 = scmp.ne.s32.totalorder %s31, %s32
      %p46 = scmp.eq.s32.totalorder %s24, 1
      %p47 = por %p45, %p46
      %p49 = scmp.ne.s32.totalorder %s32, %s48
      %p50 = scmp.eq.s32.totalorder %s24, 0
      %p51 = por %p49, %p50
      %s53 = sadd.s32 %s52, 1
      %p56 = scmp.eq.s32.totalorder %s18, 1
      %p57 = scmp.ne.s32.totalorder %s52, %s54
      %p58 = scmp.eq.s32.totalorder %s18, 0
      %p59 = por %p57, %p58
      %p60 = scmp.ne.s32.totalorder %s52, %s54
      %p61 = scmp.eq.s32.totalorder %s23, 1
      %p62 = por %p60, %p61
      %p63 = scmp.ne.s32.totalorder %s54, %s55
      %p64 = scmp.eq.s32.totalorder %s23, 0
      %p65 = por %p63, %p64
      %p66 = scmp.ne.s32.totalorder %s54, %s55
      %p67 = scmp.eq.s32.totalorder %s24, 1
      %p68 = por %p66, %p67
      %p70 = scmp.ne.s32.totalorder %s55, %s69
      %p71 = scmp.eq.s32.totalorder %s24, 0
      %p72 = por %p70, %p71
      %s74 = sadd.s32 %s73, 1
      %p77 = scmp.eq.s32.totalorder %s18, 1
      %p78 = scmp.ne.s32.totalorder %s73, %s75
      %p79 = scmp.eq.s32.totalorder %s18, 0
      %p80 = por %p78, %p79
      %p81 = scmp.ne.s32.totalorder %s73, %s75
      %p82 = scmp.eq.s32.totalorder %s23, 1
      %p83 = por %p81, %p82
      %p84 = scmp.ne.s32.totalorder %s75, %s76
      %p85 = scmp.eq.s32.totalorder %s23, 0
      %p86 = por %p84, %p85
      %p87 = scmp.ne.s32.totalorder %s75, %s76
      %p88 = scmp.eq.s32.totalorder %s24, 1
      %p89 = por %p87, %p88
      %p91 = scmp.ne.s32.totalorder %s76, %s90
      %p92 = scmp.eq.s32.totalorder %s24, 0
      %p93 = por %p91, %p92
      %s95 = sadd.s32 %s94, 1
      %p98 = scmp.eq.s32.totalorder %s18, 1
      %p99 = scmp.ne.s32.totalorder %s94, %s96
      %p100 = scmp.eq.s32.totalorder %s18, 0
      %p101 = por %p99, %p100
      %p102 = scmp.ne.s32.totalorder %s94, %s96
      %p103 = scmp.eq.s32.totalorder %s23, 1
      %p104 = por %p102, %p103
      %p105 = scmp.ne.s32.totalorder %s96, %s97
      %p106 = scmp.eq.s32.totalorder %s23, 0
      %p107 = por %p105, %p106
      %p108 = scmp.ne.s32.totalorder %s96, %s97
      %p109 = scmp.eq.s32.totalorder %s24, 1
      %p110 = por %p108, %p109
      %p112 = scmp.ne.s32.totalorder %s97, %s111
      %p113 = scmp.eq.s32.totalorder %s24, 0
      %p114 = por %p112, %p113
      %s115 = ssub.s32 %s18, %s25
      %p116 = scmp.eq.s32.totalorder %s115, 0
      %s118 = sadd.s32 %s117, 1
      %s119 = scalar_select %p116, %s117, %s118
      %p122 = pneg %p116
      %p123 = scmp.eq.s32.totalorder %s18, 1
      %p124 = por %p122, %p123
      %p125 = scmp.ne.s32.totalorder %s117, %s120
      %p126 = scmp.eq.s32.totalorder %s18, 0
      %p127 = por %p125, %p126
      %p128 = scmp.ne.s32.totalorder %s117, %s120
      %p129 = scmp.eq.s32.totalorder %s23, 1
      %p130 = por %p128, %p129
      %p131 = scmp.ne.s32.totalorder %s120, %s121
      %p132 = scmp.eq.s32.totalorder %s23, 0
      %p133 = por %p131, %p132
      %p134 = scmp.ne.s32.totalorder %s120, %s121
      %p135 = scmp.eq.s32.totalorder %s24, 1
      %p136 = por %p134, %p135
      %p138 = scmp.ne.s32.totalorder %s121, %s137
      %p139 = scmp.eq.s32.totalorder %s24, 0
      %p140 = por %p138, %p139
      %p141 = scmp.le.s32.totalorder 1, %s18
      %p142 = scmp.lt.s32.totalorder %s18, 3
      %p143 = pnand %p141, %p142
      %p144 = pneg %p143
      // Predicated region
      $region9: #{tpu_custom_call.1} parent=5 // pred_check
        _
      $region10: #{tpu_custom_call.1} parent=5 // pred_check_branch
        %146 = sbr.rel (%p143) target = $region12
      $region11: #{tpu_custom_call.1} parent=5 // pred_region
        %s147 = ssub.s32 %s18, 1
        // Predicated region
        $region13: #{tpu_custom_call.1} parent=11 // pred_check
          %p148 = pneg %p65
        $region14: #{tpu_custom_call.1} parent=11 // pred_check_branch
          %150 = sbr.rel (%p148) target = $region16
        $region15: #{tpu_custom_call.1} parent=11 // pred_region
          %s152 = ssub.s32 19456, 19456
          %153 = vsyncadd [#allocation6], %s152
          %s154 = sshll.u32 [#allocation5], 4
          %s155 = int_to_ptr.vmem [resolvable:$true] %s154
          %160 = dma.hbm_to_vmem [thread:$0]  %s1, 19456, %s155, [#allocation6], 64, 64, 4
        $region16: #{tpu_custom_call.1} parent=11 // pred_fallthru
          _
        // Predicated region
        $region17: #{tpu_custom_call.1} parent=11 // pred_check
          %p161 = pneg %p86
        $region18: #{tpu_custom_call.1} parent=11 // pred_check_branch
          %163 = sbr.rel (%p161) target = $region20
        $region19: #{tpu_custom_call.1} parent=11 // pred_region
          %s165 = ssub.s32 128, 128
          %166 = vsyncadd [#allocation6], %s165
          %s168 = sshll.u32 [#allocation7], 4
          %s169 = int_to_ptr.vmem [resolvable:$true] %s168
          %171 = dma.hbm_to_vmem [thread:$0]  %s2, 128, %s169, [#allocation6]
        $region20: #{tpu_custom_call.1} parent=11 // pred_fallthru
          _
        // Predicated region
        $region21: #{tpu_custom_call.1} parent=11 // pred_check
          %p172 = pneg %p107
        $region22: #{tpu_custom_call.1} parent=11 // pred_check_branch
          %174 = sbr.rel (%p172) target = $region24
        $region23: #{tpu_custom_call.1} parent=11 // pred_region
          %s176 = ssub.s32 1536, 1536
          %177 = vsyncadd [#allocation9], %s176
          %s178 = sshll.u32 [#allocation8], 4
          %s179 = int_to_ptr.vmem [resolvable:$true] %s178
          %184 = dma.hbm_to_vmem [thread:$0]  %s3, 1536, %s179, [#allocation9], 64, 64, 4
        $region24: #{tpu_custom_call.1} parent=11 // pred_fallthru
          _
      $region12: #{tpu_custom_call.1} parent=5 // pred_fallthru
        _
      %p185 = scmp.lt.s32.totalorder %s18, 2
      // Predicated region
      $region25: #{tpu_custom_call.1} parent=5 // pred_check
        %p186 = pneg %p185
      $region26: #{tpu_custom_call.1} parent=5 // pred_check_branch
        %188 = sbr.rel (%p186) target = $region28
      $region27: #{tpu_custom_call.1} parent=5 // pred_region
        // Predicated region
        $region29: #{tpu_custom_call.1} parent=27 // pred_check
          %p189 = pneg %p38
        $region30: #{tpu_custom_call.1} parent=27 // pred_check_branch
          %191 = sbr.rel (%p189) target = $region32
        $region31: #{tpu_custom_call.1} parent=27 // pred_region
          %s192 = sand.u32 %s28, 1
          %s193 = scalar_lea.sflag [#allocation3], %s192
          %s194 = sand.u32 %s28, 1
          %s195 = smul.addr %s194, 96
          %s196 = scalar_lea.vmem [#allocation2], %s195
          %s198 = ssub.s32 1536, 1536
          %199 = vsyncadd %s193, %s198
          %s200 = smul.addr %s18, 12
          %s201 = smul.addr %s200, 128
          %s202 = scalar_lea.hbm %s0, %s201
          %s203 = sshll.u32 %s196, 4
          %s204 = int_to_ptr.vmem [resolvable:$true] %s203
          %209 = dma.hbm_to_vmem [thread:$0]  %s202, 1536, %s204, %s193, 128, 128, 8
        $region32: #{tpu_custom_call.1} parent=27 // pred_fallthru
          _
      $region28: #{tpu_custom_call.1} parent=5 // pred_fallthru
        _
      %p210 = scmp.le.s32.totalorder 1, %s18
      %p211 = scmp.lt.s32.totalorder %s18, 3
      %p212 = pnand %p210, %p211
      %p213 = pneg %p212
      // Predicated region
      $region33: #{tpu_custom_call.1} parent=5 // pred_check
        _
      $region34: #{tpu_custom_call.1} parent=5 // pred_check_branch
        %215 = sbr.rel (%p212) target = $region36
      $region35: #{tpu_custom_call.1} parent=5 // pred_region
        %s216 = ssub.s32 %s18, 1
        %s217 = sand.u32 %s31, 1
        %s218 = scalar_lea.sflag [#allocation3], %s217
        %s219 = sand.u32 %s31, 1
        %s220 = smul.addr %s219, 96
        %s221 = scalar_lea.vmem [#allocation2], %s220
        // Predicated region
        $region37: #{tpu_custom_call.1} parent=35 // pred_check
          %p222 = pneg %p44
        $region38: #{tpu_custom_call.1} parent=35 // pred_check_branch
          %224 = sbr.rel (%p222) target = $region40
        $region39: #{tpu_custom_call.1} parent=35 // pred_region
          %225 = dma.done %s218, 1536
        $region40: #{tpu_custom_call.1} parent=35 // pred_fallthru
          _
        // Predicated region
        $region41: #{tpu_custom_call.1} parent=35 // pred_check
          %p226 = pneg %p65
        $region42: #{tpu_custom_call.1} parent=35 // pred_check_branch
          %228 = sbr.rel (%p226) target = $region44
        $region43: #{tpu_custom_call.1} parent=35 // pred_region
          %229 = dma.done [#allocation6], 19456
        $region44: #{tpu_custom_call.1} parent=35 // pred_fallthru
          _
        // Predicated region
        $region45: #{tpu_custom_call.1} parent=35 // pred_check
          %p230 = pneg %p86
        $region46: #{tpu_custom_call.1} parent=35 // pred_check_branch
          %232 = sbr.rel (%p230) target = $region48
        $region47: #{tpu_custom_call.1} parent=35 // pred_region
          %233 = dma.done [#allocation6], 128
        $region48: #{tpu_custom_call.1} parent=35 // pred_fallthru
          _
        // Predicated region
        $region49: #{tpu_custom_call.1} parent=35 // pred_check
          %p234 = pneg %p107
        $region50: #{tpu_custom_call.1} parent=35 // pred_check_branch
          %236 = sbr.rel (%p234) target = $region52
        $region51: #{tpu_custom_call.1} parent=35 // pred_region
          %237 = dma.done [#allocation9], 1536
        $region52: #{tpu_custom_call.1} parent=35 // pred_fallthru
          _
        %s238 = sand.u32 %s31, 1
        %s239 = scalar_lea.sflag [#allocation3], %s238
        %s240 = sand.u32 %s31, 1
        %s241 = smul.addr %s240, 96
        %s242 = scalar_lea.vmem [#allocation2], %s241
        %p243 = pneg %p44
        %p244 = pneg %p41
        %p245 = pneg %p65
        %p246 = pneg %p62
        %p247 = pneg %p86
        %p248 = pneg %p83
        %p249 = pneg %p107
        %p250 = pneg %p104
        %p251 = pneg %p133
        %p252 = pneg %p130
        %s253 = sand.u32 %s120, 1
        %s254 = scalar_lea.sflag [#allocation4], %s253
        %s255 = sand.u32 %s120, 1
        %s256 = smul.addr %s255, 96
        %s257 = scalar_lea.vmem [#allocation10], %s256
        %v259 = vlaneseq
        %v260 = vshrl.u32 %v259, 7
        %v261 = vadd.s32 %v260, 8
        %v262 = vadd.s32 %v260, 16
        %v263 = vadd.s32 %v260, 24
        %v264 = vadd.s32 %v260, 32
        %v265 = vadd.s32 %v260, 40
        %v266 = vadd.s32 %v260, 48
        %v267 = vadd.s32 %v260, 56
        %v268 = vadd.s32 %v260, 64
        %v269 = vadd.s32 %v260, 72
        %v270 = vadd.s32 %v260, 80
        %v271 = vadd.s32 %v260, 88
        %vm272 = vcmp.lt.s32.totalorder %v260, 0
        %v273 = vsub.s32 0, %v260
        %v274 = vsel %vm272, %v273, %v260
        %v275 = vmul.u32.u64.compose %v274, 2863311531
        %v276 = vextract.low.u32 %v275
        %v277 = vextract.high.u32 %v275
        %v278 = vshrl.u32 %v277, 5
        %v279 = vmul.u32 %v278, 48
        %v280 = vsub.s32 %v274, %v279
        %v281 = vsub.s32 0, %v280
        %v282 = vsel %vm272, %v281, %v280
        %vm283 = vcmp.lt.s32.totalorder %v261, 0
        %v284 = vsub.s32 0, %v261
        %v285 = vsel %vm283, %v284, %v261
        %v286 = vmul.u32.u64.compose %v285, 2863311531
        %v287 = vextract.low.u32 %v286
        %v288 = vextract.high.u32 %v286
        %v289 = vshrl.u32 %v288, 5
        %v290 = vmul.u32 %v289, 48
        %v291 = vsub.s32 %v285, %v290
        %v292 = vsub.s32 0, %v291
        %v293 = vsel %vm283, %v292, %v291
        %vm294 = vcmp.lt.s32.totalorder %v262, 0
        %v295 = vsub.s32 0, %v262
        %v296 = vsel %vm294, %v295, %v262
        %v297 = vmul.u32.u64.compose %v296, 2863311531
        %v298 = vextract.low.u32 %v297
        %v299 = vextract.high.u32 %v297
        %v300 = vshrl.u32 %v299, 5
        %v301 = vmul.u32 %v300, 48
        %v302 = vsub.s32 %v296, %v301
        %v303 = vsub.s32 0, %v302
        %v304 = vsel %vm294, %v303, %v302
        %vm305 = vcmp.lt.s32.totalorder %v263, 0
        %v306 = vsub.s32 0, %v263
        %v307 = vsel %vm305, %v306, %v263
        %v308 = vmul.u32.u64.compose %v307, 2863311531
        %v309 = vextract.low.u32 %v308
        %v310 = vextract.high.u32 %v308
        %v311 = vshrl.u32 %v310, 5
        %v312 = vmul.u32 %v311, 48
        %v313 = vsub.s32 %v307, %v312
        %v314 = vsub.s32 0, %v313
        %v315 = vsel %vm305, %v314, %v313
        %vm316 = vcmp.lt.s32.totalorder %v264, 0
        %v317 = vsub.s32 0, %v264
        %v318 = vsel %vm316, %v317, %v264
        %v319 = vmul.u32.u64.compose %v318, 2863311531
        %v320 = vextract.low.u32 %v319
        %v321 = vextract.high.u32 %v319
        %v322 = vshrl.u32 %v321, 5
        %v323 = vmul.u32 %v322, 48
        %v324 = vsub.s32 %v318, %v323
        %v325 = vsub.s32 0, %v324
        %v326 = vsel %vm316, %v325, %v324
        %vm327 = vcmp.lt.s32.totalorder %v265, 0
        %v328 = vsub.s32 0, %v265
        %v329 = vsel %vm327, %v328, %v265
        %v330 = vmul.u32.u64.compose %v329, 2863311531
        %v331 = vextract.low.u32 %v330
        %v332 = vextract.high.u32 %v330
        %v333 = vshrl.u32 %v332, 5
        %v334 = vmul.u32 %v333, 48
        %v335 = vsub.s32 %v329, %v334
        %v336 = vsub.s32 0, %v335
        %v337 = vsel %vm327, %v336, %v335
        %vm338 = vcmp.lt.s32.totalorder %v266, 0
        %v339 = vsub.s32 0, %v266
        %v340 = vsel %vm338, %v339, %v266
        %v341 = vmul.u32.u64.compose %v340, 2863311531
        %v342 = vextract.low.u32 %v341
        %v343 = vextract.high.u32 %v341
        %v344 = vshrl.u32 %v343, 5
        %v345 = vmul.u32 %v344, 48
        %v346 = vsub.s32 %v340, %v345
        %v347 = vsub.s32 0, %v346
        %v348 = vsel %vm338, %v347, %v346
        %vm349 = vcmp.lt.s32.totalorder %v267, 0
        %v350 = vsub.s32 0, %v267
        %v351 = vsel %vm349, %v350, %v267
        %v352 = vmul.u32.u64.compose %v351, 2863311531
        %v353 = vextract.low.u32 %v352
        %v354 = vextract.high.u32 %v352
        %v355 = vshrl.u32 %v354, 5
        %v356 = vmul.u32 %v355, 48
        %v357 = vsub.s32 %v351, %v356
        %v358 = vsub.s32 0, %v357
        %v359 = vsel %vm349, %v358, %v357
        %vm360 = vcmp.lt.s32.totalorder %v268, 0
        %v361 = vsub.s32 0, %v268
        %v362 = vsel %vm360, %v361, %v268
        %v363 = vmul.u32.u64.compose %v362, 2863311531
        %v364 = vextract.low.u32 %v363
        %v365 = vextract.high.u32 %v363
        %v366 = vshrl.u32 %v365, 5
        %v367 = vmul.u32 %v366, 48
        %v368 = vsub.s32 %v362, %v367
        %v369 = vsub.s32 0, %v368
        %v370 = vsel %vm360, %v369, %v368
        %vm371 = vcmp.lt.s32.totalorder %v269, 0
        %v372 = vsub.s32 0, %v269
        %v373 = vsel %vm371, %v372, %v269
        %v374 = vmul.u32.u64.compose %v373, 2863311531
        %v375 = vextract.low.u32 %v374
        %v376 = vextract.high.u32 %v374
        %v377 = vshrl.u32 %v376, 5
        %v378 = vmul.u32 %v377, 48
        %v379 = vsub.s32 %v373, %v378
        %v380 = vsub.s32 0, %v379
        %v381 = vsel %vm371, %v380, %v379
        %vm382 = vcmp.lt.s32.totalorder %v270, 0
        %v383 = vsub.s32 0, %v270
        %v384 = vsel %vm382, %v383, %v270
        %v385 = vmul.u32.u64.compose %v384, 2863311531
        %v386 = vextract.low.u32 %v385
        %v387 = vextract.high.u32 %v385
        %v388 = vshrl.u32 %v387, 5
        %v389 = vmul.u32 %v388, 48
        %v390 = vsub.s32 %v384, %v389
        %v391 = vsub.s32 0, %v390
        %v392 = vsel %vm382, %v391, %v390
        %vm393 = vcmp.lt.s32.totalorder %v271, 0
        %v394 = vsub.s32 0, %v271
        %v395 = vsel %vm393, %v394, %v271
        %v396 = vmul.u32.u64.compose %v395, 2863311531
        %v397 = vextract.low.u32 %v396
        %v398 = vextract.high.u32 %v396
        %v399 = vshrl.u32 %v398, 5
        %v400 = vmul.u32 %v399, 48
        %v401 = vsub.s32 %v395, %v400
        %v402 = vsub.s32 0, %v401
        %v403 = vsel %vm393, %v402, %v401
        %vm404 = vcmp.ne.s32.totalorder %v282, 0
        %vm405 = vcmp.ne.s32.totalorder %v293, 0
        %vm406 = vcmp.ne.s32.totalorder %v304, 0
        %vm407 = vcmp.ne.s32.totalorder %v315, 0
        %vm408 = vcmp.ne.s32.totalorder %v326, 0
        %vm409 = vcmp.ne.s32.totalorder %v337, 0
        %vm410 = vcmp.ne.s32.totalorder %v348, 0
        %vm411 = vcmp.ne.s32.totalorder %v359, 0
        %vm412 = vcmp.ne.s32.totalorder %v370, 0
        %vm413 = vcmp.ne.s32.totalorder %v381, 0
        %vm414 = vcmp.ne.s32.totalorder %v392, 0
        %vm415 = vcmp.ne.s32.totalorder %v403, 0
        %vm416 = vcmp.lt.s32.totalorder %v282, 0
        %vm417 = vcmp.lt.s32.totalorder %v293, 0
        %vm418 = vcmp.lt.s32.totalorder %v304, 0
        %vm419 = vcmp.lt.s32.totalorder %v315, 0
        %vm420 = vcmp.lt.s32.totalorder %v326, 0
        %vm421 = vcmp.lt.s32.totalorder %v337, 0
        %vm422 = vcmp.lt.s32.totalorder %v348, 0
        %vm423 = vcmp.lt.s32.totalorder %v359, 0
        %vm424 = vcmp.lt.s32.totalorder %v370, 0
        %vm425 = vcmp.lt.s32.totalorder %v381, 0
        %vm426 = vcmp.lt.s32.totalorder %v392, 0
        %vm427 = vcmp.lt.s32.totalorder %v403, 0
        %vm428 = vmand %vm416, %vm404
        %vm429 = vmand %vm417, %vm405
        %vm430 = vmand %vm418, %vm406
        %vm431 = vmand %vm419, %vm407
        %vm432 = vmand %vm420, %vm408
        %vm433 = vmand %vm421, %vm409
        %vm434 = vmand %vm422, %vm410
        %vm435 = vmand %vm423, %vm411
        %vm436 = vmand %vm424, %vm412
        %vm437 = vmand %vm425, %vm413
        %vm438 = vmand %vm426, %vm414
        %vm439 = vmand %vm427, %vm415
        %v440 = vadd.s32 %v282, 48
        %v441 = vadd.s32 %v293, 48
        %v442 = vadd.s32 %v304, 48
        %v443 = vadd.s32 %v315, 48
        %v444 = vadd.s32 %v326, 48
        %v445 = vadd.s32 %v337, 48
        %v446 = vadd.s32 %v348, 48
        %v447 = vadd.s32 %v359, 48
        %v448 = vadd.s32 %v370, 48
        %v449 = vadd.s32 %v381, 48
        %v450 = vadd.s32 %v392, 48
        %v451 = vadd.s32 %v403, 48
        %v452 = vsel %vm428, %v440, %v282
        %v453 = vsel %vm429, %v441, %v293
        %v454 = vsel %vm430, %v442, %v304
        %v455 = vsel %vm431, %v443, %v315
        %v456 = vsel %vm432, %v444, %v326
        %v457 = vsel %vm433, %v445, %v337
        %v458 = vsel %vm434, %v446, %v348
        %v459 = vsel %vm435, %v447, %v359
        %v460 = vsel %vm436, %v448, %v370
        %v461 = vsel %vm437, %v449, %v381
        %v462 = vsel %vm438, %v450, %v392
        %v463 = vsel %vm439, %v451, %v403
        %v464 = vlaneseq
        %v465 = vand.u32 %v464, 127
        %vm466 = vcmp.lt.s32.totalorder %v465, 0
        %v467 = vsub.s32 0, %v465
        %v468 = vsel %vm466, %v467, %v465
        %v469 = vshrl.u32 %v468, 3
        %v470 = vand.u32 %v468, 7
        %v471 = vsub.s32 0, %v470
        %v472 = vsel %vm466, %v471, %v470
        %vm473 = vcmp.ne.s32.totalorder %v472, 0
        %vm474 = vcmp.lt.s32.totalorder %v472, 0
        %vm475 = vmand %vm474, %vm473
        %v476 = vadd.s32 %v472, 8
        %v477 = vsel %vm475, %v476, %v472
        %vm478 = vcmp.lt.s32.totalorder %v452, 4
        %vm479 = vcmp.lt.s32.totalorder %v453, 4
        %vm480 = vcmp.lt.s32.totalorder %v454, 4
        %vm481 = vcmp.lt.s32.totalorder %v455, 4
        %vm482 = vcmp.lt.s32.totalorder %v456, 4
        %vm483 = vcmp.lt.s32.totalorder %v457, 4
        %vm484 = vcmp.lt.s32.totalorder %v458, 4
        %vm485 = vcmp.lt.s32.totalorder %v459, 4
        %vm486 = vcmp.lt.s32.totalorder %v460, 4
        %vm487 = vcmp.lt.s32.totalorder %v461, 4
        %vm488 = vcmp.lt.s32.totalorder %v462, 4
        %vm489 = vcmp.lt.s32.totalorder %v463, 4
        %vm490 = vcmp.lt.s32.totalorder %v477, 4
        %vm491 = vmand %vm478, %vm490
        %vm492 = vmand %vm479, %vm490
        %vm493 = vmand %vm480, %vm490
        %vm494 = vmand %vm481, %vm490
        %vm495 = vmand %vm482, %vm490
        %vm496 = vmand %vm483, %vm490
        %vm497 = vmand %vm484, %vm490
        %vm498 = vmand %vm485, %vm490
        %vm499 = vmand %vm486, %vm490
        %vm500 = vmand %vm487, %vm490
        %vm501 = vmand %vm488, %vm490
        %vm502 = vmand %vm489, %vm490
        %v503 = vld [vmem:[#allocation7] sm:$0x1f]
        %v504 = vld [vmem:[%s221] sm:$0xff]
        %v505 = vld [vmem:[%s221 + $0x8] sm:$0xff]
        %v506 = vld [vmem:[%s221 + $0x10] sm:$0xff]
        %v507 = vld [vmem:[%s221 + $0x18] sm:$0xff]
        %v508 = vld [vmem:[%s221 + $0x20] sm:$0xff]
        %v509 = vld [vmem:[%s221 + $0x28] sm:$0xff]
        %v510 = vld [vmem:[%s221 + $0x30] sm:$0xff]
        %v511 = vld [vmem:[%s221 + $0x38] sm:$0xff]
        %v512 = vld [vmem:[%s221 + $0x40] sm:$0xff]
        %v513 = vld [vmem:[%s221 + $0x48] sm:$0xff]
        %v514 = vld [vmem:[%s221 + $0x50] sm:$0xff]
        %v515 = vld [vmem:[%s221 + $0x58] sm:$0xff]
        %v516 = vxor.u32 %v504, 2147483648
        %v517 = vxor.u32 %v505, 2147483648
        %v518 = vxor.u32 %v506, 2147483648
        %v519 = vxor.u32 %v507, 2147483648
        %v520 = vxor.u32 %v508, 2147483648
        %v521 = vxor.u32 %v509, 2147483648
        %v522 = vxor.u32 %v510, 2147483648
        %v523 = vxor.u32 %v511, 2147483648
        %v524 = vxor.u32 %v512, 2147483648
        %v525 = vxor.u32 %v513, 2147483648
        %v526 = vxor.u32 %v514, 2147483648
        %v527 = vxor.u32 %v515, 2147483648
        %v528 = vmul.f32 %v516, 1.442695
        %v529 = vpow.pop %v528
        %v530 = vmul.f32 %v517, 1.442695
        %v531 = vpow.pop %v530
        %v532 = vmul.f32 %v518, 1.442695
        %v533 = vpow.pop %v532
        %v534 = vmul.f32 %v519, 1.442695
        %v535 = vpow.pop %v534
        %v536 = vmul.f32 %v520, 1.442695
        %v537 = vpow.pop %v536
        %v538 = vmul.f32 %v521, 1.442695
        %v539 = vpow.pop %v538
        %v540 = vmul.f32 %v522, 1.442695
        %v541 = vpow.pop %v540
        %v542 = vmul.f32 %v523, 1.442695
        %v543 = vpow.pop %v542
        %v544 = vmul.f32 %v524, 1.442695
        %v545 = vpow.pop %v544
        %v546 = vmul.f32 %v525, 1.442695
        %v547 = vpow.pop %v546
        %v548 = vmul.f32 %v526, 1.442695
        %v549 = vpow.pop %v548
        %v550 = vmul.f32 %v527, 1.442695
        %v551 = vpow.pop %v550
        %v552 = vadd.f32 %v529, 1.0
        %v553 = vadd.f32 %v531, 1.0
        %v554 = vadd.f32 %v533, 1.0
        %v555 = vadd.f32 %v535, 1.0
        %v556 = vadd.f32 %v537, 1.0
        %v557 = vadd.f32 %v539, 1.0
        %v558 = vadd.f32 %v541, 1.0
        %v559 = vadd.f32 %v543, 1.0
        %v560 = vadd.f32 %v545, 1.0
        %v561 = vadd.f32 %v547, 1.0
        %v562 = vadd.f32 %v549, 1.0
        %v563 = vadd.f32 %v551, 1.0
        %v564 = vrcp.pop %v552
        %v565 = vmul.f32 1.0, %v564
        %v566 = vrcp.pop %v553
        %v567 = vmul.f32 1.0, %v566
        %v568 = vrcp.pop %v554
        %v569 = vmul.f32 1.0, %v568
        %v570 = vrcp.pop %v555
        %v571 = vmul.f32 1.0, %v570
        %v572 = vrcp.pop %v556
        %v573 = vmul.f32 1.0, %v572
        %v574 = vrcp.pop %v557
        %v575 = vmul.f32 1.0, %v574
        %v576 = vrcp.pop %v558
        %v577 = vmul.f32 1.0, %v576
        %v578 = vrcp.pop %v559
        %v579 = vmul.f32 1.0, %v578
        %v580 = vrcp.pop %v560
        %v581 = vmul.f32 1.0, %v580
        %v582 = vrcp.pop %v561
        %v583 = vmul.f32 1.0, %v582
        %v584 = vrcp.pop %v562
        %v585 = vmul.f32 1.0, %v584
        %v586 = vrcp.pop %v563
        %v587 = vmul.f32 1.0, %v586
        %v588 = vsel %vm491, %v565, 0.0
        %v589 = vsel %vm492, %v567, 0.0
        %v590 = vsel %vm493, %v569, 0.0
        %v591 = vsel %vm494, %v571, 0.0
        %v592 = vsel %vm495, %v573, 0.0
        %v593 = vsel %vm496, %v575, 0.0
        %v594 = vsel %vm497, %v577, 0.0
        %v595 = vsel %vm498, %v579, 0.0
        %v596 = vsel %vm499, %v581, 0.0
        %v597 = vsel %vm500, %v583, 0.0
        %v598 = vsel %vm501, %v585, 0.0
        %v599 = vsel %vm502, %v587, 0.0
        %v600 = vpack.c.bf16 %v589, %v588
        %v601 = vpack.c.bf16 %v591, %v590
        %v602 = vpack.c.bf16 %v593, %v592
        %v603 = vpack.c.bf16 %v595, %v594
        %v604 = vpack.c.bf16 %v597, %v596
        %v605 = vpack.c.bf16 %v599, %v598
        %v606 = vrot.slane %v588, 7
        %v607 = vrot.slane %v589, 7
        %v608 = vrot.slane %v590, 7
        %v609 = vrot.slane %v591, 7
        %v610 = vrot.slane %v592, 7
        %v611 = vrot.slane %v593, 7
        %v612 = vrot.slane %v594, 7
        %v613 = vrot.slane %v595, 7
        %v614 = vrot.slane %v596, 7
        %v615 = vrot.slane %v597, 7
        %v616 = vrot.slane %v598, 7
        %v617 = vrot.slane %v599, 7
        %vm618 = vcmp.lt.s32.totalorder %v260, 1
        %v619 = vsel %vm618, %v616, %v617
        %v620 = vsel %vm618, %v615, %v616
        %v621 = vsel %vm618, %v614, %v615
        %v622 = vsel %vm618, %v613, %v614
        %v623 = vsel %vm618, %v612, %v613
        %v624 = vsel %vm618, %v611, %v612
        %v625 = vsel %vm618, %v610, %v611
        %v626 = vsel %vm618, %v609, %v610
        %v627 = vsel %vm618, %v608, %v609
        %v628 = vsel %vm618, %v607, %v608
        %v629 = vsel %vm618, %v606, %v607
        %v630 = vsel %vm618, %v617, %v606
        %v631 = vpack.c.bf16 %v629, %v630
        %v632 = vpack.c.bf16 %v627, %v628
        %v633 = vpack.c.bf16 %v625, %v626
        %v634 = vpack.c.bf16 %v623, %v624
        %v635 = vpack.c.bf16 %v621, %v622
        %v636 = vpack.c.bf16 %v619, %v620
        %v637 = vrot.slane %v588, 6
        %v638 = vrot.slane %v589, 6
        %v639 = vrot.slane %v590, 6
        %v640 = vrot.slane %v591, 6
        %v641 = vrot.slane %v592, 6
        %v642 = vrot.slane %v593, 6
        %v643 = vrot.slane %v594, 6
        %v644 = vrot.slane %v595, 6
        %v645 = vrot.slane %v596, 6
        %v646 = vrot.slane %v597, 6
        %v647 = vrot.slane %v598, 6
        %v648 = vrot.slane %v599, 6
        %vm649 = vcmp.lt.s32.totalorder %v260, 2
        %v650 = vsel %vm649, %v647, %v648
        %v651 = vsel %vm649, %v646, %v647
        %v652 = vsel %vm649, %v645, %v646
        %v653 = vsel %vm649, %v644, %v645
        %v654 = vsel %vm649, %v643, %v644
        %v655 = vsel %vm649, %v642, %v643
        %v656 = vsel %vm649, %v641, %v642
        %v657 = vsel %vm649, %v640, %v641
        %v658 = vsel %vm649, %v639, %v640
        %v659 = vsel %vm649, %v638, %v639
        %v660 = vsel %vm649, %v637, %v638
        %v661 = vsel %vm649, %v648, %v637
        %v662 = vpack.c.bf16 %v660, %v661
        %v663 = vpack.c.bf16 %v658, %v659
        %v664 = vpack.c.bf16 %v656, %v657
        %v665 = vpack.c.bf16 %v654, %v655
        %v666 = vpack.c.bf16 %v652, %v653
        %v667 = vpack.c.bf16 %v650, %v651
        %v668 = vrot.slane %v588, 5
        %v669 = vrot.slane %v589, 5
        %v670 = vrot.slane %v590, 5
        %v671 = vrot.slane %v591, 5
        %v672 = vrot.slane %v592, 5
        %v673 = vrot.slane %v593, 5
        %v674 = vrot.slane %v594, 5
        %v675 = vrot.slane %v595, 5
        %v676 = vrot.slane %v596, 5
        %v677 = vrot.slane %v597, 5
        %v678 = vrot.slane %v598, 5
        %v679 = vrot.slane %v599, 5
        %vm680 = vcmp.lt.s32.totalorder %v260, 3
        %v681 = vsel %vm680, %v678, %v679
        %v682 = vsel %vm680, %v677, %v678
        %v683 = vsel %vm680, %v676, %v677
        %v684 = vsel %vm680, %v675, %v676
        %v685 = vsel %vm680, %v674, %v675
        %v686 = vsel %vm680, %v673, %v674
        %v687 = vsel %vm680, %v672, %v673
        %v688 = vsel %vm680, %v671, %v672
        %v689 = vsel %vm680, %v670, %v671
        %v690 = vsel %vm680, %v669, %v670
        %v691 = vsel %vm680, %v668, %v669
        %v692 = vsel %vm680, %v679, %v668
        %v693 = vpack.c.bf16 %v691, %v692
        %v694 = vpack.c.bf16 %v689, %v690
        %v695 = vpack.c.bf16 %v687, %v688
        %v696 = vpack.c.bf16 %v685, %v686
        %v697 = vpack.c.bf16 %v683, %v684
        %v698 = vpack.c.bf16 %v681, %v682
        %v699 = vrot.slane %v588, 4
        %v700 = vrot.slane %v589, 4
        %v701 = vrot.slane %v590, 4
        %v702 = vrot.slane %v591, 4
        %v703 = vrot.slane %v592, 4
        %v704 = vrot.slane %v593, 4
        %v705 = vrot.slane %v594, 4
        %v706 = vrot.slane %v595, 4
        %v707 = vrot.slane %v596, 4
        %v708 = vrot.slane %v597, 4
        %v709 = vrot.slane %v598, 4
        %v710 = vrot.slane %v599, 4
        %vm711 = vcmp.lt.s32.totalorder %v260, 4
        %v712 = vsel %vm711, %v709, %v710
        %v713 = vsel %vm711, %v708, %v709
        %v714 = vsel %vm711, %v707, %v708
        %v715 = vsel %vm711, %v706, %v707
        %v716 = vsel %vm711, %v705, %v706
        %v717 = vsel %vm711, %v704, %v705
        %v718 = vsel %vm711, %v703, %v704
        %v719 = vsel %vm711, %v702, %v703
        %v720 = vsel %vm711, %v701, %v702
        %v721 = vsel %vm711, %v700, %v701
        %v722 = vsel %vm711, %v699, %v700
        %v723 = vsel %vm711, %v710, %v699
        %v724 = vpack.c.bf16 %v722, %v723
        %v725 = vpack.c.bf16 %v720, %v721
        %v726 = vpack.c.bf16 %v718, %v719
        %v727 = vpack.c.bf16 %v716, %v717
        %v728 = vpack.c.bf16 %v714, %v715
        %v729 = vpack.c.bf16 %v712, %v713
        %v730 = vld [vmem:[#allocation5] sm:$0xf]
        %v731 = vld [vmem:[#allocation5 + $0x4] sm:$0xf]
        %v732 = vld [vmem:[#allocation5 + $0x8] sm:$0xf]
        %v733 = vld [vmem:[#allocation5 + $0xc] sm:$0xf]
        %v734 = vld [vmem:[#allocation5 + $0x10] sm:$0xf]
        %v735 = vld [vmem:[#allocation5 + $0x14] sm:$0xf]
        %v736 = vld [vmem:[#allocation5 + $0x18] sm:$0xf]
        %v737 = vld [vmem:[#allocation5 + $0x1c] sm:$0xf]
        %v738 = vld [vmem:[#allocation5 + $0x20] sm:$0xf]
        %v739 = vld [vmem:[#allocation5 + $0x24] sm:$0xf]
        %v740 = vld [vmem:[#allocation5 + $0x28] sm:$0xf]
        %v741 = vld [vmem:[#allocation5 + $0x2c] sm:$0xf]
        %v742 = vld [vmem:[#allocation5 + $0x30] sm:$0xf]
        %v743 = vld [vmem:[#allocation5 + $0x34] sm:$0xf]
        %v744 = vld [vmem:[#allocation5 + $0x38] sm:$0xf]
        %v745 = vld [vmem:[#allocation5 + $0x3c] sm:$0xf]
        %v746 = vld [vmem:[#allocation5 + $0x40] sm:$0xf]
        %v747 = vld [vmem:[#allocation5 + $0x44] sm:$0xf]
        %v748 = vld [vmem:[#allocation5 + $0x48] sm:$0xf]
        %v749 = vld [vmem:[#allocation5 + $0x4c] sm:$0xf]
        %v750 = vld [vmem:[#allocation5 + $0x50] sm:$0xf]
        %v751 = vld [vmem:[#allocation5 + $0x54] sm:$0xf]
        %v752 = vld [vmem:[#allocation5 + $0x58] sm:$0xf]
        %v753 = vld [vmem:[#allocation5 + $0x5c] sm:$0xf]
        %v754 = vld [vmem:[#allocation5 + $0x60] sm:$0xf]
        %v755 = vld [vmem:[#allocation5 + $0x64] sm:$0xf]
        %v756 = vld [vmem:[#allocation5 + $0x68] sm:$0xf]
        %v757 = vld [vmem:[#allocation5 + $0x6c] sm:$0xf]
        %v758 = vld [vmem:[#allocation5 + $0x70] sm:$0xf]
        %v759 = vld [vmem:[#allocation5 + $0x74] sm:$0xf]
        %v760 = vld [vmem:[#allocation5 + $0x78] sm:$0xf]
        %v761 = vld [vmem:[#allocation5 + $0x7c] sm:$0xf]
        %v762 = vld [vmem:[#allocation5 + $0x80] sm:$0xf]
        %v763 = vld [vmem:[#allocation5 + $0x84] sm:$0xf]
        %v764 = vld [vmem:[#allocation5 + $0x88] sm:$0xf]
        %v765 = vld [vmem:[#allocation5 + $0x8c] sm:$0xf]
        %v766 = vld [vmem:[#allocation5 + $0x90] sm:$0xf]
        %v767 = vld [vmem:[#allocation5 + $0x94] sm:$0xf]
        %v768 = vld [vmem:[#allocation5 + $0x98] sm:$0xf]
        %v769 = vld [vmem:[#allocation5 + $0x9c] sm:$0xf]
        %v770 = vld [vmem:[#allocation5 + $0xa0] sm:$0xf]
        %v771 = vld [vmem:[#allocation5 + $0xa4] sm:$0xf]
        %v772 = vld [vmem:[#allocation5 + $0xa8] sm:$0xf]
        %v773 = vld [vmem:[#allocation5 + $0xac] sm:$0xf]
        %v774 = vld [vmem:[#allocation5 + $0xb0] sm:$0xf]
        %v775 = vld [vmem:[#allocation5 + $0xb4] sm:$0xf]
        %v776 = vld [vmem:[#allocation5 + $0xb8] sm:$0xf]
        %v777 = vld [vmem:[#allocation5 + $0xbc] sm:$0xf]
        %v778 = vld [vmem:[#allocation5 + $0xc0] sm:$0xf]
        %v779 = vld [vmem:[#allocation5 + $0xc4] sm:$0xf]
        %v780 = vld [vmem:[#allocation5 + $0xc8] sm:$0xf]
        %v781 = vld [vmem:[#allocation5 + $0xcc] sm:$0xf]
        %v782 = vld [vmem:[#allocation5 + $0xd0] sm:$0xf]
        %v783 = vld [vmem:[#allocation5 + $0xd4] sm:$0xf]
        %v784 = vld [vmem:[#allocation5 + $0xd8] sm:$0xf]
        %v785 = vld [vmem:[#allocation5 + $0xdc] sm:$0xf]
        %v786 = vld [vmem:[#allocation5 + $0xe0] sm:$0xf]
        %v787 = vld [vmem:[#allocation5 + $0xe4] sm:$0xf]
        %v788 = vld [vmem:[#allocation5 + $0xe8] sm:$0xf]
        %v789 = vld [vmem:[#allocation5 + $0xec] sm:$0xf]
        %v790 = vld [vmem:[#allocation5 + $0xf0] sm:$0xf]
        %v791 = vld [vmem:[#allocation5 + $0xf4] sm:$0xf]
        %v792 = vld [vmem:[#allocation5 + $0xf8] sm:$0xf]
        %v793 = vld [vmem:[#allocation5 + $0xfc] sm:$0xf]
        %v794 = vld [vmem:[#allocation5 + $0x100] sm:$0xf]
        %v795 = vld [vmem:[#allocation5 + $0x104] sm:$0xf]
        %v796 = vld [vmem:[#allocation5 + $0x108] sm:$0xf]
        %v797 = vld [vmem:[#allocation5 + $0x10c] sm:$0xf]
        %v798 = vld [vmem:[#allocation5 + $0x110] sm:$0xf]
        %v799 = vld [vmem:[#allocation5 + $0x114] sm:$0xf]
        %v800 = vld [vmem:[#allocation5 + $0x118] sm:$0xf]
        %v801 = vld [vmem:[#allocation5 + $0x11c] sm:$0xf]
        %v802 = vld [vmem:[#allocation5 + $0x120] sm:$0xf]
        %v803 = vld [vmem:[#allocation5 + $0x124] sm:$0xf]
        %v804 = vld [vmem:[#allocation5 + $0x128] sm:$0xf]
        %v805 = vld [vmem:[#allocation5 + $0x12c] sm:$0xf]
        %v806 = vld [vmem:[#allocation5 + $0x130] sm:$0xf]
        %v807 = vld [vmem:[#allocation5 + $0x134] sm:$0xf]
        %v808 = vld [vmem:[#allocation5 + $0x138] sm:$0xf]
        %v809 = vld [vmem:[#allocation5 + $0x13c] sm:$0xf]
        %vm810 = vcmp.lt.s32.totalorder %v452, 8
        %vm811 = vcmp.lt.s32.totalorder %v453, 8
        %vm812 = vcmp.lt.s32.totalorder %v454, 8
        %vm813 = vcmp.lt.s32.totalorder %v455, 8
        %vm814 = vcmp.lt.s32.totalorder %v456, 8
        %vm815 = vcmp.lt.s32.totalorder %v457, 8
        %vm816 = vcmp.lt.s32.totalorder %v458, 8
        %vm817 = vcmp.lt.s32.totalorder %v459, 8
        %vm818 = vcmp.lt.s32.totalorder %v460, 8
        %vm819 = vcmp.lt.s32.totalorder %v461, 8
        %vm820 = vcmp.lt.s32.totalorder %v462, 8
        %vm821 = vcmp.lt.s32.totalorder %v463, 8
        %v822 = vlaneseq
        %v823 = vshrl.u32 %v822, 7
        %v824 = vsub.s32 0, %v823
        %v825 = vrot.slane %v503, %v824
        %v906 = vunpack.c.l.b16 %v730
        %v907 = vunpack.c.l.b16 %v731
        %v908 = vunpack.c.l.b16 %v732
        %v909 = vunpack.c.l.b16 %v733
        %v910 = vunpack.c.l.b16 %v734
        %v911 = vunpack.c.l.b16 %v735
        %v912 = vunpack.c.l.b16 %v736
        %v913 = vunpack.c.l.b16 %v737
        %v914 = vunpack.c.l.b16 %v738
        %v915 = vunpack.c.l.b16 %v739
        %v916 = vunpack.c.l.b16 %v740
        %v917 = vunpack.c.l.b16 %v741
        %v918 = vunpack.c.l.b16 %v742
        %v919 = vunpack.c.l.b16 %v743
        %v920 = vunpack.c.l.b16 %v744
        %v921 = vunpack.c.l.b16 %v745
        %v922 = vunpack.c.l.b16 %v746
        %v923 = vunpack.c.l.b16 %v747
        %v924 = vunpack.c.l.b16 %v748
        %v925 = vunpack.c.l.b16 %v749
        %v926 = vunpack.c.l.b16 %v750
        %v927 = vunpack.c.l.b16 %v751
        %v928 = vunpack.c.l.b16 %v752
        %v929 = vunpack.c.l.b16 %v753
        %v930 = vunpack.c.l.b16 %v754
        %v931 = vunpack.c.l.b16 %v755
        %v932 = vunpack.c.l.b16 %v756
        %v933 = vunpack.c.l.b16 %v757
        %v934 = vunpack.c.l.b16 %v758
        %v935 = vunpack.c.l.b16 %v759
        %v936 = vunpack.c.l.b16 %v760
        %v937 = vunpack.c.l.b16 %v761
        %v938 = vunpack.c.l.b16 %v762
        %v939 = vunpack.c.l.b16 %v763
        %v940 = vunpack.c.l.b16 %v764
        %v941 = vunpack.c.l.b16 %v765
        %v942 = vunpack.c.l.b16 %v766
        %v943 = vunpack.c.l.b16 %v767
        %v944 = vunpack.c.l.b16 %v768
        %v945 = vunpack.c.l.b16 %v769
        %v946 = vunpack.c.l.b16 %v770
        %v947 = vunpack.c.l.b16 %v771
        %v948 = vunpack.c.l.b16 %v772
        %v949 = vunpack.c.l.b16 %v773
        %v950 = vunpack.c.l.b16 %v774
        %v951 = vunpack.c.l.b16 %v775
        %v952 = vunpack.c.l.b16 %v776
        %v953 = vunpack.c.l.b16 %v777
        %v954 = vunpack.c.l.b16 %v778
        %v955 = vunpack.c.l.b16 %v779
        %v956 = vunpack.c.l.b16 %v780
        %v957 = vunpack.c.l.b16 %v781
        %v958 = vunpack.c.l.b16 %v782
        %v959 = vunpack.c.l.b16 %v783
        %v960 = vunpack.c.l.b16 %v784
        %v961 = vunpack.c.l.b16 %v785
        %v962 = vunpack.c.l.b16 %v786
        %v963 = vunpack.c.l.b16 %v787
        %v964 = vunpack.c.l.b16 %v788
        %v965 = vunpack.c.l.b16 %v789
        %v966 = vunpack.c.l.b16 %v790
        %v967 = vunpack.c.l.b16 %v791
        %v968 = vunpack.c.l.b16 %v792
        %v969 = vunpack.c.l.b16 %v793
        %v970 = vunpack.c.l.b16 %v794
        %v971 = vunpack.c.l.b16 %v795
        %v972 = vunpack.c.l.b16 %v796
        %v973 = vunpack.c.l.b16 %v797
        %v974 = vunpack.c.l.b16 %v798
        %v975 = vunpack.c.l.b16 %v799
        %v976 = vunpack.c.l.b16 %v800
        %v977 = vunpack.c.l.b16 %v801
        %v978 = vunpack.c.l.b16 %v802
        %v979 = vunpack.c.l.b16 %v803
        %v980 = vunpack.c.l.b16 %v804
        %v981 = vunpack.c.l.b16 %v805
        %v982 = vunpack.c.l.b16 %v806
        %v983 = vunpack.c.l.b16 %v807
        %v984 = vunpack.c.l.b16 %v808
        %v985 = vunpack.c.l.b16 %v809
        %v986 = vpack.c.b16 %v907, %v906
        %v987 = vpack.c.b16 %v909, %v908
        %v988 = vpack.c.b16 %v911, %v910
        %v989 = vpack.c.b16 %v913, %v912
        %v990 = vpack.c.b16 %v915, %v914
        %v991 = vpack.c.b16 %v917, %v916
        %v992 = vpack.c.b16 %v919, %v918
        %v993 = vpack.c.b16 %v921, %v920
        %v994 = vpack.c.b16 %v923, %v922
        %v995 = vpack.c.b16 %v925, %v924
        %v996 = vpack.c.b16 %v927, %v926
        %v997 = vpack.c.b16 %v929, %v928
        %v998 = vpack.c.b16 %v931, %v930
        %v999 = vpack.c.b16 %v933, %v932
        %v1000 = vpack.c.b16 %v935, %v934
        %v1001 = vpack.c.b16 %v937, %v936
        %v1002 = vpack.c.b16 %v939, %v938
        %v1003 = vpack.c.b16 %v941, %v940
        %v1004 = vpack.c.b16 %v943, %v942
        %v1005 = vpack.c.b16 %v945, %v944
        %v1006 = vpack.c.b16 %v947, %v946
        %v1007 = vpack.c.b16 %v949, %v948
        %v1008 = vpack.c.b16 %v951, %v950
        %v1009 = vpack.c.b16 %v953, %v952
        %v1010 = vpack.c.b16 %v955, %v954
        %v1011 = vpack.c.b16 %v957, %v956
        %v1012 = vpack.c.b16 %v959, %v958
        %v1013 = vpack.c.b16 %v961, %v960
        %v1014 = vpack.c.b16 %v963, %v962
        %v1015 = vpack.c.b16 %v965, %v964
        %v1016 = vpack.c.b16 %v967, %v966
        %v1017 = vpack.c.b16 %v969, %v968
        %v1018 = vpack.c.b16 %v971, %v970
        %v1019 = vpack.c.b16 %v973, %v972
        %v1020 = vpack.c.b16 %v975, %v974
        %v1021 = vpack.c.b16 %v977, %v976
        %v1022 = vpack.c.b16 %v979, %v978
        %v1023 = vpack.c.b16 %v981, %v980
        %v1024 = vpack.c.b16 %v983, %v982
        %v1025 = vpack.c.b16 %v985, %v984
        %1066 = vmatprep.subr.bf16.mxu0 0
        %1067 = vmatpush1.bf16.msra.mxu0 %v986
        %1068 = vmatprep.subr.bf16.mxu0 0
        %1069 = vmatpush1.bf16.msra.mxu0 %v987
        %1070 = vmatprep.subr.bf16.mxu0 0
        %1071 = vmatpush1.bf16.msra.mxu0 %v988
        %1072 = vmatprep.subr.bf16.mxu0 0
        %1073 = vmatpush1.bf16.msra.mxu0 %v989
        %1074 = vmatprep.subr.bf16.mxu0 0
        %1075 = vmatpush1.bf16.msra.mxu0 %v990
        %1076 = vmatprep.subr.bf16.mxu0 0
        %1077 = vmatpush1.bf16.msra.mxu0 %v991
        %1078 = vmatprep.subr.bf16.mxu0 0
        %1079 = vmatpush1.bf16.msra.mxu0 %v992
        %1080 = vmatprep.subr.bf16.mxu0 0
        %1081 = vmatpush1.bf16.msra.mxu0 %v993
        %1082 = vmatprep.subr.bf16.mxu0 0
        %1083 = vmatpush1.bf16.msra.mxu0 %v994
        %1084 = vmatprep.subr.bf16.mxu0 0
        %1085 = vmatpush1.bf16.msra.mxu0 %v995
        %1086 = vmatprep.subr.bf16.mxu0 0
        %1087 = vmatpush1.bf16.msra.mxu0 %v996
        %1088 = vmatprep.subr.bf16.mxu0 0
        %1089 = vmatpush1.bf16.msra.mxu0 %v997
        %1090 = vmatprep.subr.bf16.mxu0 0
        %1091 = vmatpush1.bf16.msra.mxu0 %v998
        %1092 = vmatprep.subr.bf16.mxu0 0
        %1093 = vmatpush1.bf16.msra.mxu0 %v999
        %1094 = vmatprep.subr.bf16.mxu0 0
        %1095 = vmatpush1.bf16.msra.mxu0 %v1000
        %1096 = vmatprep.subr.bf16.mxu0 0
        %1097 = vmatpush1.bf16.msra.mxu0 %v1001
        %1098 = vmatprep.mubr.bf16.mxu0 %v631
        %1099 = vmatmul.mubr.bf16.gmra.mrb[0].mxu0 %v600
        %v1100 = vpop.f32.mrb[0].mxu0
        %v1101 = vadd.f32 %v825, %v1100
        %v1102 = vpop.f32.mrb[0].mxu0
        %v1103 = vpop.f32.mrb[0].mxu0
        %v1104 = vadd.f32 %v825, %v1103
        %v1105 = vpop.f32.mrb[0].mxu0
        %1106 = vmatprep.mubr.bf16.mxu0 %v632
        %1107 = vmatmul.mubr.bf16.gmra.mrb[0].mxu0 %v601
        %v1108 = vpop.f32.mrb[0].mxu0
        %v1109 = vadd.f32 %v825, %v1108
        %v1110 = vpop.f32.mrb[0].mxu0
        %v1111 = vpop.f32.mrb[0].mxu0
        %v1112 = vadd.f32 %v825, %v1111
        %v1113 = vpop.f32.mrb[0].mxu0
        %1114 = vmatprep.mubr.bf16.mxu0 %v633
        %1115 = vmatmul.mubr.bf16.gmra.mrb[0].mxu0 %v602
        %v1116 = vpop.f32.mrb[0].mxu0
        %v1117 = vadd.f32 %v825, %v1116
        %v1118 = vpop.f32.mrb[0].mxu0
        %v1119 = vpop.f32.mrb[0].mxu0
        %v1120 = vadd.f32 %v825, %v1119
        %v1121 = vpop.f32.mrb[0].mxu0
        %1122 = vmatprep.mubr.bf16.mxu0 %v634
        %1123 = vmatmul.mubr.bf16.gmra.mrb[0].mxu0 %v603
        %v1124 = vpop.f32.mrb[0].mxu0
        %v1125 = vadd.f32 %v825, %v1124
        %v1126 = vpop.f32.mrb[0].mxu0
        %v1127 = vpop.f32.mrb[0].mxu0
        %v1128 = vadd.f32 %v825, %v1127
        %v1129 = vpop.f32.mrb[0].mxu0
        %1130 = vmatprep.mubr.bf16.mxu0 %v635
        %1131 = vmatmul.mubr.bf16.gmra.mrb[0].mxu0 %v604
        %v1132 = vpop.f32.mrb[0].mxu0
        %v1133 = vadd.f32 %v825, %v1132
        %v1134 = vpop.f32.mrb[0].mxu0
        %v1135 = vpop.f32.mrb[0].mxu0
        %v1136 = vadd.f32 %v825, %v1135
        %v1137 = vpop.f32.mrb[0].mxu0
        %1138 = vmatprep.mubr.bf16.mxu0 %v636
        %1139 = vmatmul.mubr.bf16.gmra.mrb[0].mxu0 %v605
        %v1140 = vpop.f32.mrb[0].mxu0
        %v1141 = vadd.f32 %v825, %v1140
        %v1142 = vpop.f32.mrb[0].mxu0
        %v1143 = vpop.f32.mrb[0].mxu0
        %v1144 = vadd.f32 %v825, %v1143
        %v1145 = vpop.f32.mrb[0].mxu0
        %1146 = vdwg.mxu0
        %1147 = vmatprep.subr.bf16.mxu0 0
        %1148 = vmatpush1.bf16.msra.mxu0 %v1002
        %1149 = vmatprep.subr.bf16.mxu0 0
        %1150 = vmatpush1.bf16.msra.mxu0 %v1003
        %1151 = vmatprep.subr.bf16.mxu0 0
        %1152 = vmatpush1.bf16.msra.mxu0 %v1004
        %1153 = vmatprep.subr.bf16.mxu0 0
        %1154 = vmatpush1.bf16.msra.mxu0 %v1005
        %1155 = vmatprep.subr.bf16.mxu0 0
        %1156 = vmatpush1.bf16.msra.mxu0 %v1006
        %1157 = vmatprep.subr.bf16.mxu0 0
        %1158 = vmatpush1.bf16.msra.mxu0 %v1007
        %1159 = vmatprep.subr.bf16.mxu0 0
        %1160 = vmatpush1.bf16.msra.mxu0 %v1008
        %1161 = vmatprep.subr.bf16.mxu0 0
        %1162 = vmatpush1.bf16.msra.mxu0 %v1009
        %1163 = vmatprep.subr.bf16.mxu0 0
        %1164 = vmatpush1.bf16.msra.mxu0 %v1010
        %1165 = vmatprep.subr.bf16.mxu0 0
        %1166 = vmatpush1.bf16.msra.mxu0 %v1011
        %1167 = vmatprep.subr.bf16.mxu0 0
        %1168 = vmatpush1.bf16.msra.mxu0 %v1012
        %1169 = vmatprep.subr.bf16.mxu0 0
        %1170 = vmatpush1.bf16.msra.mxu0 %v1013
        %1171 = vmatprep.subr.bf16.mxu0 0
        %1172 = vmatpush1.bf16.msra.mxu0 %v1014
        %1173 = vmatprep.subr.bf16.mxu0 0
        %1174 = vmatpush1.bf16.msra.mxu0 %v1015
        %1175 = vmatprep.subr.bf16.mxu0 0
        %1176 = vmatpush1.bf16.msra.mxu0 %v1016
        %1177 = vmatprep.subr.bf16.mxu0 0
        %1178 = vmatpush1.bf16.msra.mxu0 %v1017
        %1179 = vmatprep.mubr.bf16.mxu0 %v693
        %1180 = vmatmul.mubr.bf16.gmra.mrb[0].mxu0 %v662
        %v1181 = vpop.f32.mrb[0].mxu0
        %v1182 = vadd.f32 %v1101, %v1181
        %v1183 = vpop.f32.mrb[0].mxu0
        %v1184 = vpop.f32.mrb[0].mxu0
        %v1185 = vadd.f32 %v1104, %v1184
        %v1186 = vpop.f32.mrb[0].mxu0
        %1187 = vmatprep.mubr.bf16.mxu0 %v694
        %1188 = vmatmul.mubr.bf16.gmra.mrb[0].mxu0 %v663
        %v1189 = vpop.f32.mrb[0].mxu0
        %v1190 = vadd.f32 %v1109, %v1189
        %v1191 = vpop.f32.mrb[0].mxu0
        %v1192 = vpop.f32.mrb[0].mxu0
        %v1193 = vadd.f32 %v1112, %v1192
        %v1194 = vpop.f32.mrb[0].mxu0
        %1195 = vmatprep.mubr.bf16.mxu0 %v695
        %1196 = vmatmul.mubr.bf16.gmra.mrb[0].mxu0 %v664
        %v1197 = vpop.f32.mrb[0].mxu0
        %v1198 = vadd.f32 %v1117, %v1197
        %v1199 = vpop.f32.mrb[0].mxu0
        %v1200 = vpop.f32.mrb[0].mxu0
        %v1201 = vadd.f32 %v1120, %v1200
        %v1202 = vpop.f32.mrb[0].mxu0
        %1203 = vmatprep.mubr.bf16.mxu0 %v696
        %1204 = vmatmul.mubr.bf16.gmra.mrb[0].mxu0 %v665
        %v1205 = vpop.f32.mrb[0].mxu0
        %v1206 = vadd.f32 %v1125, %v1205
        %v1207 = vpop.f32.mrb[0].mxu0
        %v1208 = vpop.f32.mrb[0].mxu0
        %v1209 = vadd.f32 %v1128, %v1208
        %v1210 = vpop.f32.mrb[0].mxu0
        %1211 = vmatprep.mubr.bf16.mxu0 %v697
        %1212 = vmatmul.mubr.bf16.gmra.mrb[0].mxu0 %v666
        %v1213 = vpop.f32.mrb[0].mxu0
        %v1214 = vadd.f32 %v1133, %v1213
        %v1215 = vpop.f32.mrb[0].mxu0
        %v1216 = vpop.f32.mrb[0].mxu0
        %v1217 = vadd.f32 %v1136, %v1216
        %v1218 = vpop.f32.mrb[0].mxu0
        %1219 = vmatprep.mubr.bf16.mxu0 %v698
        %1220 = vmatmul.mubr.bf16.gmra.mrb[0].mxu0 %v667
        %v1221 = vpop.f32.mrb[0].mxu0
        %v1222 = vadd.f32 %v1141, %v1221
        %v1223 = vpop.f32.mrb[0].mxu0
        %v1224 = vpop.f32.mrb[0].mxu0
        %v1225 = vadd.f32 %v1144, %v1224
        %v1226 = vpop.f32.mrb[0].mxu0
        %1227 = vdwg.mxu0
        %1228 = vmatprep.subr.bf16.mxu0 0
        %1229 = vmatpush1.bf16.msra.mxu0 %v1018
        %1230 = vmatprep.subr.bf16.mxu0 0
        %1231 = vmatpush1.bf16.msra.mxu0 %v1019
        %1232 = vmatprep.subr.bf16.mxu0 0
        %1233 = vmatpush1.bf16.msra.mxu0 %v1020
        %1234 = vmatprep.subr.bf16.mxu0 0
        %1235 = vmatpush1.bf16.msra.mxu0 %v1021
        %1236 = vmatprep.subr.bf16.mxu0 0
        %1237 = vmatpush1.bf16.msra.mxu0 %v1022
        %1238 = vmatprep.subr.bf16.mxu0 0
        %1239 = vmatpush1.bf16.msra.mxu0 %v1023
        %1240 = vmatprep.subr.bf16.mxu0 0
        %1241 = vmatpush1.bf16.msra.mxu0 %v1024
        %1242 = vmatprep.subr.bf16.mxu0 0
        %1243 = vmatpush1.bf16.msra.mxu0 %v1025
        %1244 = vmatprep.subr.bf16.mxu0 0
        %1245 = vmatpush1.bf16.msra.mxu0 0
        %1246 = vmatprep.subr.bf16.mxu0 0
        %1247 = vmatpush1.bf16.msra.mxu0 0
        %1248 = vmatprep.subr.bf16.mxu0 0
        %1249 = vmatpush1.bf16.msra.mxu0 0
        %1250 = vmatprep.subr.bf16.mxu0 0
        %1251 = vmatpush1.bf16.msra.mxu0 0
        %1252 = vmatprep.subr.bf16.mxu0 0
        %1253 = vmatpush1.bf16.msra.mxu0 0
        %1254 = vmatprep.subr.bf16.mxu0 0
        %1255 = vmatpush1.bf16.msra.mxu0 0
        %1256 = vmatprep.subr.bf16.mxu0 0
        %1257 = vmatpush1.bf16.msra.mxu0 0
        %1258 = vmatprep.subr.bf16.mxu0 0
        %1259 = vmatpush1.bf16.msra.mxu0 0
        %1260 = vmatprep.mubr.bf16.mxu0 0
        %1261 = vmatmul.mubr.bf16.gmra.mrb[0].mxu0 %v724
        %v1262 = vpop.f32.mrb[0].mxu0
        %v1263 = vadd.f32 %v1182, %v1262
        %v1264 = vpop.f32.mrb[0].mxu0
        %v1265 = vpop.f32.mrb[0].mxu0
        %v1266 = vadd.f32 %v1185, %v1265
        %v1267 = vpop.f32.mrb[0].mxu0
        %1268 = vmatprep.mubr.bf16.mxu0 0
        %1269 = vmatmul.mubr.bf16.gmra.mrb[0].mxu0 %v725
        %v1270 = vpop.f32.mrb[0].mxu0
        %v1271 = vadd.f32 %v1190, %v1270
        %v1272 = vpop.f32.mrb[0].mxu0
        %v1273 = vpop.f32.mrb[0].mxu0
        %v1274 = vadd.f32 %v1193, %v1273
        %v1275 = vpop.f32.mrb[0].mxu0
        %1276 = vmatprep.mubr.bf16.mxu0 0
        %1277 = vmatmul.mubr.bf16.gmra.mrb[0].mxu0 %v726
        %v1278 = vpop.f32.mrb[0].mxu0
        %v1279 = vadd.f32 %v1198, %v1278
        %v1280 = vpop.f32.mrb[0].mxu0
        %v1281 = vpop.f32.mrb[0].mxu0
        %v1282 = vadd.f32 %v1201, %v1281
        %v1283 = vpop.f32.mrb[0].mxu0
        %1284 = vmatprep.mubr.bf16.mxu0 0
        %1285 = vmatmul.mubr.bf16.gmra.mrb[0].mxu0 %v727
        %v1286 = vpop.f32.mrb[0].mxu0
        %v1287 = vadd.f32 %v1206, %v1286
        %v1288 = vpop.f32.mrb[0].mxu0
        %v1289 = vpop.f32.mrb[0].mxu0
        %v1290 = vadd.f32 %v1209, %v1289
        %v1291 = vpop.f32.mrb[0].mxu0
        %1292 = vmatprep.mubr.bf16.mxu0 0
        %1293 = vmatmul.mubr.bf16.gmra.mrb[0].mxu0 %v728
        %v1294 = vpop.f32.mrb[0].mxu0
        %v1295 = vadd.f32 %v1214, %v1294
        %v1296 = vpop.f32.mrb[0].mxu0
        %v1297 = vpop.f32.mrb[0].mxu0
        %v1298 = vadd.f32 %v1217, %v1297
        %v1299 = vpop.f32.mrb[0].mxu0
        %1300 = vmatprep.mubr.bf16.mxu0 0
        %1301 = vmatmul.mubr.bf16.gmra.mrb[0].mxu0 %v729
        %v1302 = vpop.f32.mrb[0].mxu0
        %v1303 = vadd.f32 %v1222, %v1302
        %v1304 = vpop.f32.mrb[0].mxu0
        %v1305 = vpop.f32.mrb[0].mxu0
        %v1306 = vadd.f32 %v1225, %v1305
        %v1307 = vpop.f32.mrb[0].mxu0
        %1308 = vdwg.mxu0
        %v1309 = vsel %vm810, %v1263, 0.0
        %v1310 = vsel %vm811, %v1266, 0.0
        %v1311 = vsel %vm812, %v1271, 0.0
        %v1312 = vsel %vm813, %v1274, 0.0
        %v1313 = vsel %vm814, %v1279, 0.0
        %v1314 = vsel %vm815, %v1282, 0.0
        %v1315 = vsel %vm816, %v1287, 0.0
        %v1316 = vsel %vm817, %v1290, 0.0
        %v1317 = vsel %vm818, %v1295, 0.0
        %v1318 = vsel %vm819, %v1298, 0.0
        %v1319 = vsel %vm820, %v1303, 0.0
        %v1320 = vsel %vm821, %v1306, 0.0
        %v1321 = vmax.f32 %v1309, 0.0
        %v1322 = vmax.f32 %v1310, 0.0
        %v1323 = vmax.f32 %v1311, 0.0
        %v1324 = vmax.f32 %v1312, 0.0
        %v1325 = vmax.f32 %v1313, 0.0
        %v1326 = vmax.f32 %v1314, 0.0
        %v1327 = vmax.f32 %v1315, 0.0
        %v1328 = vmax.f32 %v1316, 0.0
        %v1329 = vmax.f32 %v1317, 0.0
        %v1330 = vmax.f32 %v1318, 0.0
        %v1331 = vmax.f32 %v1319, 0.0
        %v1332 = vmax.f32 %v1320, 0.0
        %v1333 = vld [vmem:[#allocation8] sm:$0xf]
        %v1334 = vld [vmem:[#allocation8 + $0x4] sm:$0xf]
        %v1335 = vld [vmem:[#allocation8 + $0x8] sm:$0xf]
        %v1336 = vld [vmem:[#allocation8 + $0xc] sm:$0xf]
        %v1337 = vld [vmem:[#allocation8 + $0x10] sm:$0xf]
        %v1338 = vld [vmem:[#allocation8 + $0x14] sm:$0xf]
        %v1339 = vld [vmem:[#allocation8 + $0x18] sm:$0xf]
        %v1340 = vld [vmem:[#allocation8 + $0x1c] sm:$0xf]
        %v1341 = vld [vmem:[#allocation8 + $0x20] sm:$0xf]
        %v1342 = vld [vmem:[#allocation8 + $0x24] sm:$0xf]
        %v1343 = vld [vmem:[#allocation8 + $0x28] sm:$0xf]
        %v1344 = vld [vmem:[#allocation8 + $0x2c] sm:$0xf]
        %v1345 = vpack.c.bf16 %v1322, %v1321
        %v1346 = vpack.c.bf16 %v1324, %v1323
        %v1347 = vpack.c.bf16 %v1326, %v1325
        %v1348 = vpack.c.bf16 %v1328, %v1327
        %v1349 = vpack.c.bf16 %v1330, %v1329
        %v1350 = vpack.c.bf16 %v1332, %v1331
        %v1363 = vunpack.c.l.b16 %v1333
        %v1364 = vunpack.c.l.b16 %v1334
        %v1365 = vunpack.c.l.b16 %v1335
        %v1366 = vunpack.c.l.b16 %v1336
        %v1367 = vunpack.c.l.b16 %v1337
        %v1368 = vunpack.c.l.b16 %v1338
        %v1369 = vunpack.c.l.b16 %v1339
        %v1370 = vunpack.c.l.b16 %v1340
        %v1371 = vunpack.c.l.b16 %v1341
        %v1372 = vunpack.c.l.b16 %v1342
        %v1373 = vunpack.c.l.b16 %v1343
        %v1374 = vunpack.c.l.b16 %v1344
        %v1375 = vpack.c.b16 %v1364, %v1363
        %v1376 = vpack.c.b16 %v1366, %v1365
        %v1377 = vpack.c.b16 %v1368, %v1367
        %v1378 = vpack.c.b16 %v1370, %v1369
        %v1379 = vpack.c.b16 %v1372, %v1371
        %v1380 = vpack.c.b16 %v1374, %v1373
        %vm1381 = vcmask 785408
        %v1383 = vsel %vm1381, %v1375, 0
        %v1386 = vsel %vm1381, %v1376, 0
        %v1389 = vsel %vm1381, %v1377, 0
        %v1392 = vsel %vm1381, %v1378, 0
        %v1395 = vsel %vm1381, %v1379, 0
        %v1398 = vsel %vm1381, %v1380, 0
        %1400 = vmatprep.subr.bf16.mxu0 0
        %1401 = vmatpush1.bf16.msra.mxu0 %v1345
        %1402 = vmatprep.subr.bf16.mxu0 0
        %1403 = vmatpush1.bf16.msra.mxu0 %v1346
        %1404 = vmatprep.subr.bf16.mxu0 0
        %1405 = vmatpush1.bf16.msra.mxu0 %v1347
        %1406 = vmatprep.subr.bf16.mxu0 0
        %1407 = vmatpush1.bf16.msra.mxu0 %v1348
        %1408 = vmatprep.subr.bf16.mxu0 0
        %1409 = vmatpush1.bf16.msra.mxu0 %v1349
        %1410 = vmatprep.subr.bf16.mxu0 0
        %1411 = vmatpush1.bf16.msra.mxu0 %v1350
        %1412 = vmatprep.subr.bf16.mxu0 0
        %1413 = vmatpush1.bf16.msra.mxu0 0
        %1414 = vmatprep.subr.bf16.mxu0 0
        %1415 = vmatpush1.bf16.msra.mxu0 0
        %1416 = vmatprep.subr.bf16.mxu0 0
        %1417 = vmatpush1.bf16.msra.mxu0 0
        %1418 = vmatprep.subr.bf16.mxu0 0
        %1419 = vmatpush1.bf16.msra.mxu0 0
        %1420 = vmatprep.subr.bf16.mxu0 0
        %1421 = vmatpush1.bf16.msra.mxu0 0
        %1422 = vmatprep.subr.bf16.mxu0 0
        %1423 = vmatpush1.bf16.msra.mxu0 0
        %1424 = vmatprep.subr.bf16.mxu0 0
        %1425 = vmatpush1.bf16.msra.mxu0 0
        %1426 = vmatprep.subr.bf16.mxu0 0
        %1427 = vmatpush1.bf16.msra.mxu0 0
        %1428 = vmatprep.subr.bf16.mxu0 0
        %1429 = vmatpush1.bf16.msra.mxu0 0
        %1430 = vmatprep.subr.bf16.mxu0 0
        %1431 = vmatpush1.bf16.msra.mxu0 0
        %1432 = vmatprep.mubr.bf16.mxu0 0
        %1433 = vmatmul.mubr.bf16.gmra.mrb[0].mxu0 %v1383
        %v1434 = vpop.f32.mrb[0].mxu0
        %v1435 = vadd.f32 0.0, %v1434
        %v1436 = vpop.f32.mrb[0].mxu0
        %v1437 = vpop.f32.mrb[0].mxu0
        %v1438 = vadd.f32 0.0, %v1437
        %v1439 = vpop.f32.mrb[0].mxu0
        %1440 = vmatprep.mubr.bf16.mxu0 0
        %1441 = vmatmul.mubr.bf16.gmra.mrb[0].mxu0 %v1386
        %v1442 = vpop.f32.mrb[0].mxu0
        %v1443 = vadd.f32 0.0, %v1442
        %v1444 = vpop.f32.mrb[0].mxu0
        %v1445 = vpop.f32.mrb[0].mxu0
        %v1446 = vadd.f32 0.0, %v1445
        %v1447 = vpop.f32.mrb[0].mxu0
        %1448 = vmatprep.mubr.bf16.mxu0 0
        %1449 = vmatmul.mubr.bf16.gmra.mrb[0].mxu0 %v1389
        %v1450 = vpop.f32.mrb[0].mxu0
        %v1451 = vadd.f32 0.0, %v1450
        %v1452 = vpop.f32.mrb[0].mxu0
        %v1453 = vpop.f32.mrb[0].mxu0
        %v1454 = vadd.f32 0.0, %v1453
        %v1455 = vpop.f32.mrb[0].mxu0
        %1456 = vmatprep.mubr.bf16.mxu0 0
        %1457 = vmatmul.mubr.bf16.gmra.mrb[0].mxu0 %v1392
        %v1458 = vpop.f32.mrb[0].mxu0
        %v1459 = vadd.f32 0.0, %v1458
        %v1460 = vpop.f32.mrb[0].mxu0
        %v1461 = vpop.f32.mrb[0].mxu0
        %v1462 = vadd.f32 0.0, %v1461
        %v1463 = vpop.f32.mrb[0].mxu0
        %1464 = vmatprep.mubr.bf16.mxu0 0
        %1465 = vmatmul.mubr.bf16.gmra.mrb[0].mxu0 %v1395
        %v1466 = vpop.f32.mrb[0].mxu0
        %v1467 = vadd.f32 0.0, %v1466
        %v1468 = vpop.f32.mrb[0].mxu0
        %v1469 = vpop.f32.mrb[0].mxu0
        %v1470 = vadd.f32 0.0, %v1469
        %v1471 = vpop.f32.mrb[0].mxu0
        %1472 = vmatprep.mubr.bf16.mxu0 0
        %1473 = vmatmul.mubr.bf16.gmra.mrb[0].mxu0 %v1398
        %v1474 = vpop.f32.mrb[0].mxu0
        %v1475 = vadd.f32 0.0, %v1474
        %v1476 = vpop.f32.mrb[0].mxu0
        %v1477 = vpop.f32.mrb[0].mxu0
        %v1478 = vadd.f32 0.0, %v1477
        %v1479 = vpop.f32.mrb[0].mxu0
        %1480 = vdwg.mxu0
        %v1481 = vpack.c.bf16 %v1438, %v1435
        %v1482 = vpack.c.bf16 %v1446, %v1443
        %v1483 = vpack.c.bf16 %v1454, %v1451
        %v1484 = vpack.c.bf16 %v1462, %v1459
        %v1485 = vpack.c.bf16 %v1470, %v1467
        %v1486 = vpack.c.bf16 %v1478, %v1475
        %v1487 = vrot.slane %v1435, 7
        %v1488 = vrot.slane %v1438, 7
        %v1489 = vrot.slane %v1443, 7
        %v1490 = vrot.slane %v1446, 7
        %v1491 = vrot.slane %v1451, 7
        %v1492 = vrot.slane %v1454, 7
        %v1493 = vrot.slane %v1459, 7
        %v1494 = vrot.slane %v1462, 7
        %v1495 = vrot.slane %v1467, 7
        %v1496 = vrot.slane %v1470, 7
        %v1497 = vrot.slane %v1475, 7
        %v1498 = vrot.slane %v1478, 7
        %v1499 = vsel %vm618, %v1497, %v1498
        %v1500 = vsel %vm618, %v1496, %v1497
        %v1501 = vsel %vm618, %v1495, %v1496
        %v1502 = vsel %vm618, %v1494, %v1495
        %v1503 = vsel %vm618, %v1493, %v1494
        %v1504 = vsel %vm618, %v1492, %v1493
        %v1505 = vsel %vm618, %v1491, %v1492
        %v1506 = vsel %vm618, %v1490, %v1491
        %v1507 = vsel %vm618, %v1489, %v1490
        %v1508 = vsel %vm618, %v1488, %v1489
        %v1509 = vsel %vm618, %v1487, %v1488
        %v1510 = vsel %vm618, %v1498, %v1487
        %v1511 = vpack.c.bf16 %v1509, %v1510
        %v1512 = vpack.c.bf16 %v1507, %v1508
        %v1513 = vpack.c.bf16 %v1505, %v1506
        %v1514 = vpack.c.bf16 %v1503, %v1504
        %v1515 = vpack.c.bf16 %v1501, %v1502
        %v1516 = vpack.c.bf16 %v1499, %v1500
        %v1517 = vrot.slane %v1435, 6
        %v1518 = vrot.slane %v1438, 6
        %v1519 = vrot.slane %v1443, 6
        %v1520 = vrot.slane %v1446, 6
        %v1521 = vrot.slane %v1451, 6
        %v1522 = vrot.slane %v1454, 6
        %v1523 = vrot.slane %v1459, 6
        %v1524 = vrot.slane %v1462, 6
        %v1525 = vrot.slane %v1467, 6
        %v1526 = vrot.slane %v1470, 6
        %v1527 = vrot.slane %v1475, 6
        %v1528 = vrot.slane %v1478, 6
        %v1529 = vsel %vm649, %v1527, %v1528
        %v1530 = vsel %vm649, %v1526, %v1527
        %v1531 = vsel %vm649, %v1525, %v1526
        %v1532 = vsel %vm649, %v1524, %v1525
        %v1533 = vsel %vm649, %v1523, %v1524
        %v1534 = vsel %vm649, %v1522, %v1523
        %v1535 = vsel %vm649, %v1521, %v1522
        %v1536 = vsel %vm649, %v1520, %v1521
        %v1537 = vsel %vm649, %v1519, %v1520
        %v1538 = vsel %vm649, %v1518, %v1519
        %v1539 = vsel %vm649, %v1517, %v1518
        %v1540 = vsel %vm649, %v1528, %v1517
        %v1541 = vpack.c.bf16 %v1539, %v1540
        %v1542 = vpack.c.bf16 %v1537, %v1538
        %v1543 = vpack.c.bf16 %v1535, %v1536
        %v1544 = vpack.c.bf16 %v1533, %v1534
        %v1545 = vpack.c.bf16 %v1531, %v1532
        %v1546 = vpack.c.bf16 %v1529, %v1530
        %v1547 = vrot.slane %v1435, 5
        %v1548 = vrot.slane %v1438, 5
        %v1549 = vrot.slane %v1443, 5
        %v1550 = vrot.slane %v1446, 5
        %v1551 = vrot.slane %v1451, 5
        %v1552 = vrot.slane %v1454, 5
        %v1553 = vrot.slane %v1459, 5
        %v1554 = vrot.slane %v1462, 5
        %v1555 = vrot.slane %v1467, 5
        %v1556 = vrot.slane %v1470, 5
        %v1557 = vrot.slane %v1475, 5
        %v1558 = vrot.slane %v1478, 5
        %v1559 = vsel %vm680, %v1557, %v1558
        %v1560 = vsel %vm680, %v1556, %v1557
        %v1561 = vsel %vm680, %v1555, %v1556
        %v1562 = vsel %vm680, %v1554, %v1555
        %v1563 = vsel %vm680, %v1553, %v1554
        %v1564 = vsel %vm680, %v1552, %v1553
        %v1565 = vsel %vm680, %v1551, %v1552
        %v1566 = vsel %vm680, %v1550, %v1551
        %v1567 = vsel %vm680, %v1549, %v1550
        %v1568 = vsel %vm680, %v1548, %v1549
        %v1569 = vsel %vm680, %v1547, %v1548
        %v1570 = vsel %vm680, %v1558, %v1547
        %v1571 = vpack.c.bf16 %v1569, %v1570
        %v1572 = vpack.c.bf16 %v1567, %v1568
        %v1573 = vpack.c.bf16 %v1565, %v1566
        %v1574 = vpack.c.bf16 %v1563, %v1564
        %v1575 = vpack.c.bf16 %v1561, %v1562
        %v1576 = vpack.c.bf16 %v1559, %v1560
        %v1577 = vrot.slane %v1435, 4
        %v1578 = vrot.slane %v1438, 4
        %v1579 = vrot.slane %v1443, 4
        %v1580 = vrot.slane %v1446, 4
        %v1581 = vrot.slane %v1451, 4
        %v1582 = vrot.slane %v1454, 4
        %v1583 = vrot.slane %v1459, 4
        %v1584 = vrot.slane %v1462, 4
        %v1585 = vrot.slane %v1467, 4
        %v1586 = vrot.slane %v1470, 4
        %v1587 = vrot.slane %v1475, 4
        %v1588 = vrot.slane %v1478, 4
        %v1589 = vsel %vm711, %v1587, %v1588
        %v1590 = vsel %vm711, %v1586, %v1587
        %v1591 = vsel %vm711, %v1585, %v1586
        %v1592 = vsel %vm711, %v1584, %v1585
        %v1593 = vsel %vm711, %v1583, %v1584
        %v1594 = vsel %vm711, %v1582, %v1583
        %v1595 = vsel %vm711, %v1581, %v1582
        %v1596 = vsel %vm711, %v1580, %v1581
        %v1597 = vsel %vm711, %v1579, %v1580
        %v1598 = vsel %vm711, %v1578, %v1579
        %v1599 = vsel %vm711, %v1577, %v1578
        %v1600 = vsel %vm711, %v1588, %v1577
        %v1601 = vpack.c.bf16 %v1599, %v1600
        %v1602 = vpack.c.bf16 %v1597, %v1598
        %v1603 = vpack.c.bf16 %v1595, %v1596
        %v1604 = vpack.c.bf16 %v1593, %v1594
        %v1605 = vpack.c.bf16 %v1591, %v1592
        %v1606 = vpack.c.bf16 %v1589, %v1590
        %v1607 = vld [vmem:[#allocation5 + $0x140] sm:$0xf]
        %v1608 = vld [vmem:[#allocation5 + $0x144] sm:$0xf]
        %v1609 = vld [vmem:[#allocation5 + $0x148] sm:$0xf]
        %v1610 = vld [vmem:[#allocation5 + $0x14c] sm:$0xf]
        %v1611 = vld [vmem:[#allocation5 + $0x150] sm:$0xf]
        %v1612 = vld [vmem:[#allocation5 + $0x154] sm:$0xf]
        %v1613 = vld [vmem:[#allocation5 + $0x158] sm:$0xf]
        %v1614 = vld [vmem:[#allocation5 + $0x15c] sm:$0xf]
        %v1615 = vld [vmem:[#allocation5 + $0x160] sm:$0xf]
        %v1616 = vld [vmem:[#allocation5 + $0x164] sm:$0xf]
        %v1617 = vld [vmem:[#allocation5 + $0x168] sm:$0xf]
        %v1618 = vld [vmem:[#allocation5 + $0x16c] sm:$0xf]
        %v1619 = vld [vmem:[#allocation5 + $0x170] sm:$0xf]
        %v1620 = vld [vmem:[#allocation5 + $0x174] sm:$0xf]
        %v1621 = vld [vmem:[#allocation5 + $0x178] sm:$0xf]
        %v1622 = vld [vmem:[#allocation5 + $0x17c] sm:$0xf]
        %v1623 = vld [vmem:[#allocation5 + $0x180] sm:$0xf]
        %v1624 = vld [vmem:[#allocation5 + $0x184] sm:$0xf]
        %v1625 = vld [vmem:[#allocation5 + $0x188] sm:$0xf]
        %v1626 = vld [vmem:[#allocation5 + $0x18c] sm:$0xf]
        %v1627 = vld [vmem:[#allocation5 + $0x190] sm:$0xf]
        %v1628 = vld [vmem:[#allocation5 + $0x194] sm:$0xf]
        %v1629 = vld [vmem:[#allocation5 + $0x198] sm:$0xf]
        %v1630 = vld [vmem:[#allocation5 + $0x19c] sm:$0xf]
        %v1631 = vld [vmem:[#allocation5 + $0x1a0] sm:$0xf]
        %v1632 = vld [vmem:[#allocation5 + $0x1a4] sm:$0xf]
        %v1633 = vld [vmem:[#allocation5 + $0x1a8] sm:$0xf]
        %v1634 = vld [vmem:[#allocation5 + $0x1ac] sm:$0xf]
        %v1635 = vld [vmem:[#allocation5 + $0x1b0] sm:$0xf]
        %v1636 = vld [vmem:[#allocation5 + $0x1b4] sm:$0xf]
        %v1637 = vld [vmem:[#allocation5 + $0x1b8] sm:$0xf]
        %v1638 = vld [vmem:[#allocation5 + $0x1bc] sm:$0xf]
        %v1639 = vld [vmem:[#allocation5 + $0x1c0] sm:$0xf]
        %v1640 = vld [vmem:[#allocation5 + $0x1c4] sm:$0xf]
        %v1641 = vld [vmem:[#allocation5 + $0x1c8] sm:$0xf]
        %v1642 = vld [vmem:[#allocation5 + $0x1cc] sm:$0xf]
        %v1643 = vld [vmem:[#allocation5 + $0x1d0] sm:$0xf]
        %v1644 = vld [vmem:[#allocation5 + $0x1d4] sm:$0xf]
        %v1645 = vld [vmem:[#allocation5 + $0x1d8] sm:$0xf]
        %v1646 = vld [vmem:[#allocation5 + $0x1dc] sm:$0xf]
        %v1647 = vld [vmem:[#allocation5 + $0x1e0] sm:$0xf]
        %v1648 = vld [vmem:[#allocation5 + $0x1e4] sm:$0xf]
        %v1649 = vld [vmem:[#allocation5 + $0x1e8] sm:$0xf]
        %v1650 = vld [vmem:[#allocation5 + $0x1ec] sm:$0xf]
        %v1651 = vld [vmem:[#allocation5 + $0x1f0] sm:$0xf]
        %v1652 = vld [vmem:[#allocation5 + $0x1f4] sm:$0xf]
        %v1653 = vld [vmem:[#allocation5 + $0x1f8] sm:$0xf]
        %v1654 = vld [vmem:[#allocation5 + $0x1fc] sm:$0xf]
        %v1655 = vld [vmem:[#allocation5 + $0x200] sm:$0xf]
        %v1656 = vld [vmem:[#allocation5 + $0x204] sm:$0xf]
        %v1657 = vld [vmem:[#allocation5 + $0x208] sm:$0xf]
        %v1658 = vld [vmem:[#allocation5 + $0x20c] sm:$0xf]
        %v1659 = vld [vmem:[#allocation5 + $0x210] sm:$0xf]
        %v1660 = vld [vmem:[#allocation5 + $0x214] sm:$0xf]
        %v1661 = vld [vmem:[#allocation5 + $0x218] sm:$0xf]
        %v1662 = vld [vmem:[#allocation5 + $0x21c] sm:$0xf]
        %v1663 = vld [vmem:[#allocation5 + $0x220] sm:$0xf]
        %v1664 = vld [vmem:[#allocation5 + $0x224] sm:$0xf]
        %v1665 = vld [vmem:[#allocation5 + $0x228] sm:$0xf]
        %v1666 = vld [vmem:[#allocation5 + $0x22c] sm:$0xf]
        %v1667 = vld [vmem:[#allocation5 + $0x230] sm:$0xf]
        %v1668 = vld [vmem:[#allocation5 + $0x234] sm:$0xf]
        %v1669 = vld [vmem:[#allocation5 + $0x238] sm:$0xf]
        %v1670 = vld [vmem:[#allocation5 + $0x23c] sm:$0xf]
        %v1671 = vld [vmem:[#allocation5 + $0x240] sm:$0xf]
        %v1672 = vld [vmem:[#allocation5 + $0x244] sm:$0xf]
        %v1673 = vld [vmem:[#allocation5 + $0x248] sm:$0xf]
        %v1674 = vld [vmem:[#allocation5 + $0x24c] sm:$0xf]
        %v1675 = vld [vmem:[#allocation5 + $0x250] sm:$0xf]
        %v1676 = vld [vmem:[#allocation5 + $0x254] sm:$0xf]
        %v1677 = vld [vmem:[#allocation5 + $0x258] sm:$0xf]
        %v1678 = vld [vmem:[#allocation5 + $0x25c] sm:$0xf]
        %v1679 = vld [vmem:[#allocation5 + $0x260] sm:$0xf]
        %v1680 = vld [vmem:[#allocation5 + $0x264] sm:$0xf]
        %v1681 = vld [vmem:[#allocation5 + $0x268] sm:$0xf]
        %v1682 = vld [vmem:[#allocation5 + $0x26c] sm:$0xf]
        %v1683 = vld [vmem:[#allocation5 + $0x270] sm:$0xf]
        %v1684 = vld [vmem:[#allocation5 + $0x274] sm:$0xf]
        %v1685 = vld [vmem:[#allocation5 + $0x278] sm:$0xf]
        %v1686 = vld [vmem:[#allocation5 + $0x27c] sm:$0xf]
        %vm1687 = vcmp.lt.s32.totalorder %v452, 20
        %vm1688 = vcmp.lt.s32.totalorder %v453, 20
        %vm1689 = vcmp.lt.s32.totalorder %v454, 20
        %vm1690 = vcmp.lt.s32.totalorder %v455, 20
        %vm1691 = vcmp.lt.s32.totalorder %v456, 20
        %vm1692 = vcmp.lt.s32.totalorder %v457, 20
        %vm1693 = vcmp.lt.s32.totalorder %v458, 20
        %vm1694 = vcmp.lt.s32.totalorder %v459, 20
        %vm1695 = vcmp.lt.s32.totalorder %v460, 20
        %vm1696 = vcmp.lt.s32.totalorder %v461, 20
        %vm1697 = vcmp.lt.s32.totalorder %v462, 20
        %vm1698 = vcmp.lt.s32.totalorder %v463, 20
        %v1699 = vlaneseq
        %v1700 = vshrl.u32 %v1699, 7
        %v1701 = vsub.s32 1, %v1700
        %v1702 = vrot.slane %v503, %v1701
        %v1783 = vunpack.c.l.b16 %v1607
        %v1784 = vunpack.c.l.b16 %v1608
        %v1785 = vunpack.c.l.b16 %v1609
        %v1786 = vunpack.c.l.b16 %v1610
        %v1787 = vunpack.c.l.b16 %v1611
        %v1788 = vunpack.c.l.b16 %v1612
        %v1789 = vunpack.c.l.b16 %v1613
        %v1790 = vunpack.c.l.b16 %v1614
        %v1791 = vunpack.c.l.b16 %v1615
        %v1792 = vunpack.c.l.b16 %v1616
        %v1793 = vunpack.c.l.b16 %v1617
        %v1794 = vunpack.c.l.b16 %v1618
        %v1795 = vunpack.c.l.b16 %v1619
        %v1796 = vunpack.c.l.b16 %v1620
        %v1797 = vunpack.c.l.b16 %v1621
        %v1798 = vunpack.c.l.b16 %v1622
        %v1799 = vunpack.c.l.b16 %v1623
        %v1800 = vunpack.c.l.b16 %v1624
        %v1801 = vunpack.c.l.b16 %v1625
        %v1802 = vunpack.c.l.b16 %v1626
        %v1803 = vunpack.c.l.b16 %v1627
        %v1804 = vunpack.c.l.b16 %v1628
        %v1805 = vunpack.c.l.b16 %v1629
        %v1806 = vunpack.c.l.b16 %v1630
        %v1807 = vunpack.c.l.b16 %v1631
        %v1808 = vunpack.c.l.b16 %v1632
        %v1809 = vunpack.c.l.b16 %v1633
        %v1810 = vunpack.c.l.b16 %v1634
        %v1811 = vunpack.c.l.b16 %v1635
        %v1812 = vunpack.c.l.b16 %v1636
        %v1813 = vunpack.c.l.b16 %v1637
        %v1814 = vunpack.c.l.b16 %v1638
        %v1815 = vunpack.c.l.b16 %v1639
        %v1816 = vunpack.c.l.b16 %v1640
        %v1817 = vunpack.c.l.b16 %v1641
        %v1818 = vunpack.c.l.b16 %v1642
        %v1819 = vunpack.c.l.b16 %v1643
        %v1820 = vunpack.c.l.b16 %v1644
        %v1821 = vunpack.c.l.b16 %v1645
        %v1822 = vunpack.c.l.b16 %v1646
        %v1823 = vunpack.c.l.b16 %v1647
        %v1824 = vunpack.c.l.b16 %v1648
        %v1825 = vunpack.c.l.b16 %v1649
        %v1826 = vunpack.c.l.b16 %v1650
        %v1827 = vunpack.c.l.b16 %v1651
        %v1828 = vunpack.c.l.b16 %v1652
        %v1829 = vunpack.c.l.b16 %v1653
        %v1830 = vunpack.c.l.b16 %v1654
        %v1831 = vunpack.c.l.b16 %v1655
        %v1832 = vunpack.c.l.b16 %v1656
        %v1833 = vunpack.c.l.b16 %v1657
        %v1834 = vunpack.c.l.b16 %v1658
        %v1835 = vunpack.c.l.b16 %v1659
        %v1836 = vunpack.c.l.b16 %v1660
        %v1837 = vunpack.c.l.b16 %v1661
        %v1838 = vunpack.c.l.b16 %v1662
        %v1839 = vunpack.c.l.b16 %v1663
        %v1840 = vunpack.c.l.b16 %v1664
        %v1841 = vunpack.c.l.b16 %v1665
        %v1842 = vunpack.c.l.b16 %v1666
        %v1843 = vunpack.c.l.b16 %v1667
        %v1844 = vunpack.c.l.b16 %v1668
        %v1845 = vunpack.c.l.b16 %v1669
        %v1846 = vunpack.c.l.b16 %v1670
        %v1847 = vunpack.c.l.b16 %v1671
        %v1848 = vunpack.c.l.b16 %v1672
        %v1849 = vunpack.c.l.b16 %v1673
        %v1850 = vunpack.c.l.b16 %v1674
        %v1851 = vunpack.c.l.b16 %v1675
        %v1852 = vunpack.c.l.b16 %v1676
        %v1853 = vunpack.c.l.b16 %v1677
        %v1854 = vunpack.c.l.b16 %v1678
        %v1855 = vunpack.c.l.b16 %v1679
        %v1856 = vunpack.c.l.b16 %v1680
        %v1857 = vunpack.c.l.b16 %v1681
        %v1858 = vunpack.c.l.b16 %v1682
        %v1859 = vunpack.c.l.b16 %v1683
        %v1860 = vunpack.c.l.b16 %v1684
        %v1861 = vunpack.c.l.b16 %v1685
        %v1862 = vunpack.c.l.b16 %v1686
        %v1863 = vpack.c.b16 %v1784, %v1783
        %v1864 = vpack.c.b16 %v1786, %v1785
        %v1865 = vpack.c.b16 %v1788, %v1787
        %v1866 = vpack.c.b16 %v1790, %v1789
        %v1867 = vpack.c.b16 %v1792, %v1791
        %v1868 = vpack.c.b16 %v1794, %v1793
        %v1869 = vpack.c.b16 %v1796, %v1795
        %v1870 = vpack.c.b16 %v1798, %v1797
        %v1871 = vpack.c.b16 %v1800, %v1799
        %v1872 = vpack.c.b16 %v1802, %v1801
        %v1873 = vpack.c.b16 %v1804, %v1803
        %v1874 = vpack.c.b16 %v1806, %v1805
        %v1875 = vpack.c.b16 %v1808, %v1807
        %v1876 = vpack.c.b16 %v1810, %v1809
        %v1877 = vpack.c.b16 %v1812, %v1811
        %v1878 = vpack.c.b16 %v1814, %v1813
        %v1879 = vpack.c.b16 %v1816, %v1815
        %v1880 = vpack.c.b16 %v1818, %v1817
        %v1881 = vpack.c.b16 %v1820, %v1819
        %v1882 = vpack.c.b16 %v1822, %v1821
        %v1883 = vpack.c.b16 %v1824, %v1823
        %v1884 = vpack.c.b16 %v1826, %v1825
        %v1885 = vpack.c.b16 %v1828, %v1827
        %v1886 = vpack.c.b16 %v1830, %v1829
        %v1887 = vpack.c.b16 %v1832, %v1831
        %v1888 = vpack.c.b16 %v1834, %v1833
        %v1889 = vpack.c.b16 %v1836, %v1835
        %v1890 = vpack.c.b16 %v1838, %v1837
        %v1891 = vpack.c.b16 %v1840, %v1839
        %v1892 = vpack.c.b16 %v1842, %v1841
        %v1893 = vpack.c.b16 %v1844, %v1843
        %v1894 = vpack.c.b16 %v1846, %v1845
        %v1895 = vpack.c.b16 %v1848, %v1847
        %v1896 = vpack.c.b16 %v1850, %v1849
        %v1897 = vpack.c.b16 %v1852, %v1851
        %v1898 = vpack.c.b16 %v1854, %v1853
        %v1899 = vpack.c.b16 %v1856, %v1855
        %v1900 = vpack.c.b16 %v1858, %v1857
        %v1901 = vpack.c.b16 %v1860, %v1859
        %v1902 = vpack.c.b16 %v1862, %v1861
        %1943 = vmatprep.subr.bf16.mxu0 0
        %1944 = vmatpush1.bf16.msra.mxu0 %v1863
        %1945 = vmatprep.subr.bf16.mxu0 0
        %1946 = vmatpush1.bf16.msra.mxu0 %v1864
        %1947 = vmatprep.subr.bf16.mxu0 0
        %1948 = vmatpush1.bf16.msra.mxu0 %v1865
        %1949 = vmatprep.subr.bf16.mxu0 0
        %1950 = vmatpush1.bf16.msra.mxu0 %v1866
        %1951 = vmatprep.subr.bf16.mxu0 0
        %1952 = vmatpush1.bf16.msra.mxu0 %v1867
        %1953 = vmatprep.subr.bf16.mxu0 0
        %1954 = vmatpush1.bf16.msra.mxu0 %v1868
        %1955 = vmatprep.subr.bf16.mxu0 0
        %1956 = vmatpush1.bf16.msra.mxu0 %v1869
        %1957 = vmatprep.subr.bf16.mxu0 0
        %1958 = vmatpush1.bf16.msra.mxu0 %v1870
        %1959 = vmatprep.subr.bf16.mxu0 0
        %1960 = vmatpush1.bf16.msra.mxu0 %v1871
        %1961 = vmatprep.subr.bf16.mxu0 0
        %1962 = vmatpush1.bf16.msra.mxu0 %v1872
        %1963 = vmatprep.subr.bf16.mxu0 0
        %1964 = vmatpush1.bf16.msra.mxu0 %v1873
        %1965 = vmatprep.subr.bf16.mxu0 0
        %1966 = vmatpush1.bf16.msra.mxu0 %v1874
        %1967 = vmatprep.subr.bf16.mxu0 0
        %1968 = vmatpush1.bf16.msra.mxu0 %v1875
        %1969 = vmatprep.subr.bf16.mxu0 0
        %1970 = vmatpush1.bf16.msra.mxu0 %v1876
        %1971 = vmatprep.subr.bf16.mxu0 0
        %1972 = vmatpush1.bf16.msra.mxu0 %v1877
        %1973 = vmatprep.subr.bf16.mxu0 0
        %1974 = vmatpush1.bf16.msra.mxu0 %v1878
        %1975 = vmatprep.mubr.bf16.mxu0 %v1511
        %1976 = vmatmul.mubr.bf16.gmra.mrb[0].mxu0 %v1481
        %v1977 = vpop.f32.mrb[0].mxu0
        %v1978 = vadd.f32 %v1702, %v1977
        %v1979 = vpop.f32.mrb[0].mxu0
        %v1980 = vpop.f32.mrb[0].mxu0
        %v1981 = vadd.f32 %v1702, %v1980
        %v1982 = vpop.f32.mrb[0].mxu0
        %1983 = vmatprep.mubr.bf16.mxu0 %v1512
        %1984 = vmatmul.mubr.bf16.gmra.mrb[0].mxu0 %v1482
        %v1985 = vpop.f32.mrb[0].mxu0
        %v1986 = vadd.f32 %v1702, %v1985
        %v1987 = vpop.f32.mrb[0].mxu0
        %v1988 = vpop.f32.mrb[0].mxu0
        %v1989 = vadd.f32 %v1702, %v1988
        %v1990 = vpop.f32.mrb[0].mxu0
        %1991 = vmatprep.mubr.bf16.mxu0 %v1513
        %1992 = vmatmul.mubr.bf16.gmra.mrb[0].mxu0 %v1483
        %v1993 = vpop.f32.mrb[0].mxu0
        %v1994 = vadd.f32 %v1702, %v1993
        %v1995 = vpop.f32.mrb[0].mxu0
        %v1996 = vpop.f32.mrb[0].mxu0
        %v1997 = vadd.f32 %v1702, %v1996
        %v1998 = vpop.f32.mrb[0].mxu0
        %1999 = vmatprep.mubr.bf16.mxu0 %v1514
        %2000 = vmatmul.mubr.bf16.gmra.mrb[0].mxu0 %v1484
        %v2001 = vpop.f32.mrb[0].mxu0
        %v2002 = vadd.f32 %v1702, %v2001
        %v2003 = vpop.f32.mrb[0].mxu0
        %v2004 = vpop.f32.mrb[0].mxu0
        %v2005 = vadd.f32 %v1702, %v2004
        %v2006 = vpop.f32.mrb[0].mxu0
        %2007 = vmatprep.mubr.bf16.mxu0 %v1515
        %2008 = vmatmul.mubr.bf16.gmra.mrb[0].mxu0 %v1485
        %v2009 = vpop.f32.mrb[0].mxu0
        %v2010 = vadd.f32 %v1702, %v2009
        %v2011 = vpop.f32.mrb[0].mxu0
        %v2012 = vpop.f32.mrb[0].mxu0
        %v2013 = vadd.f32 %v1702, %v2012
        %v2014 = vpop.f32.mrb[0].mxu0
        %2015 = vmatprep.mubr.bf16.mxu0 %v1516
        %2016 = vmatmul.mubr.bf16.gmra.mrb[0].mxu0 %v1486
        %v2017 = vpop.f32.mrb[0].mxu0
        %v2018 = vadd.f32 %v1702, %v2017
        %v2019 = vpop.f32.mrb[0].mxu0
        %v2020 = vpop.f32.mrb[0].mxu0
        %v2021 = vadd.f32 %v1702, %v2020
        %v2022 = vpop.f32.mrb[0].mxu0
        %2023 = vdwg.mxu0
        %2024 = vmatprep.subr.bf16.mxu0 0
        %2025 = vmatpush1.bf16.msra.mxu0 %v1879
        %2026 = vmatprep.subr.bf16.mxu0 0
        %2027 = vmatpush1.bf16.msra.mxu0 %v1880
        %2028 = vmatprep.subr.bf16.mxu0 0
        %2029 = vmatpush1.bf16.msra.mxu0 %v1881
        %2030 = vmatprep.subr.bf16.mxu0 0
        %2031 = vmatpush1.bf16.msra.mxu0 %v1882
        %2032 = vmatprep.subr.bf16.mxu0 0
        %2033 = vmatpush1.bf16.msra.mxu0 %v1883
        %2034 = vmatprep.subr.bf16.mxu0 0
        %2035 = vmatpush1.bf16.msra.mxu0 %v1884
        %2036 = vmatprep.subr.bf16.mxu0 0
        %2037 = vmatpush1.bf16.msra.mxu0 %v1885
        %2038 = vmatprep.subr.bf16.mxu0 0
        %2039 = vmatpush1.bf16.msra.mxu0 %v1886
        %2040 = vmatprep.subr.bf16.mxu0 0
        %2041 = vmatpush1.bf16.msra.mxu0 %v1887
        %2042 = vmatprep.subr.bf16.mxu0 0
        %2043 = vmatpush1.bf16.msra.mxu0 %v1888
        %2044 = vmatprep.subr.bf16.mxu0 0
        %2045 = vmatpush1.bf16.msra.mxu0 %v1889
        %2046 = vmatprep.subr.bf16.mxu0 0
        %2047 = vmatpush1.bf16.msra.mxu0 %v1890
        %2048 = vmatprep.subr.bf16.mxu0 0
        %2049 = vmatpush1.bf16.msra.mxu0 %v1891
        %2050 = vmatprep.subr.bf16.mxu0 0
        %2051 = vmatpush1.bf16.msra.mxu0 %v1892
        %2052 = vmatprep.subr.bf16.mxu0 0
        %2053 = vmatpush1.bf16.msra.mxu0 %v1893
        %2054 = vmatprep.subr.bf16.mxu0 0
        %2055 = vmatpush1.bf16.msra.mxu0 %v1894
        %2056 = vmatprep.mubr.bf16.mxu0 %v1571
        %2057 = vmatmul.mubr.bf16.gmra.mrb[0].mxu0 %v1541
        %v2058 = vpop.f32.mrb[0].mxu0
        %v2059 = vadd.f32 %v1978, %v2058
        %v2060 = vpop.f32.mrb[0].mxu0
        %v2061 = vpop.f32.mrb[0].mxu0
        %v2062 = vadd.f32 %v1981, %v2061
        %v2063 = vpop.f32.mrb[0].mxu0
        %2064 = vmatprep.mubr.bf16.mxu0 %v1572
        %2065 = vmatmul.mubr.bf16.gmra.mrb[0].mxu0 %v1542
        %v2066 = vpop.f32.mrb[0].mxu0
        %v2067 = vadd.f32 %v1986, %v2066
        %v2068 = vpop.f32.mrb[0].mxu0
        %v2069 = vpop.f32.mrb[0].mxu0
        %v2070 = vadd.f32 %v1989, %v2069
        %v2071 = vpop.f32.mrb[0].mxu0
        %2072 = vmatprep.mubr.bf16.mxu0 %v1573
        %2073 = vmatmul.mubr.bf16.gmra.mrb[0].mxu0 %v1543
        %v2074 = vpop.f32.mrb[0].mxu0
        %v2075 = vadd.f32 %v1994, %v2074
        %v2076 = vpop.f32.mrb[0].mxu0
        %v2077 = vpop.f32.mrb[0].mxu0
        %v2078 = vadd.f32 %v1997, %v2077
        %v2079 = vpop.f32.mrb[0].mxu0
        %2080 = vmatprep.mubr.bf16.mxu0 %v1574
        %2081 = vmatmul.mubr.bf16.gmra.mrb[0].mxu0 %v1544
        %v2082 = vpop.f32.mrb[0].mxu0
        %v2083 = vadd.f32 %v2002, %v2082
        %v2084 = vpop.f32.mrb[0].mxu0
        %v2085 = vpop.f32.mrb[0].mxu0
        %v2086 = vadd.f32 %v2005, %v2085
        %v2087 = vpop.f32.mrb[0].mxu0
        %2088 = vmatprep.mubr.bf16.mxu0 %v1575
        %2089 = vmatmul.mubr.bf16.gmra.mrb[0].mxu0 %v1545
        %v2090 = vpop.f32.mrb[0].mxu0
        %v2091 = vadd.f32 %v2010, %v2090
        %v2092 = vpop.f32.mrb[0].mxu0
        %v2093 = vpop.f32.mrb[0].mxu0
        %v2094 = vadd.f32 %v2013, %v2093
        %v2095 = vpop.f32.mrb[0].mxu0
        %2096 = vmatprep.mubr.bf16.mxu0 %v1576
        %2097 = vmatmul.mubr.bf16.gmra.mrb[0].mxu0 %v1546
        %v2098 = vpop.f32.mrb[0].mxu0
        %v2099 = vadd.f32 %v2018, %v2098
        %v2100 = vpop.f32.mrb[0].mxu0
        %v2101 = vpop.f32.mrb[0].mxu0
        %v2102 = vadd.f32 %v2021, %v2101
        %v2103 = vpop.f32.mrb[0].mxu0
        %2104 = vdwg.mxu0
        %2105 = vmatprep.subr.bf16.mxu0 0
        %2106 = vmatpush1.bf16.msra.mxu0 %v1895
        %2107 = vmatprep.subr.bf16.mxu0 0
        %2108 = vmatpush1.bf16.msra.mxu0 %v1896
        %2109 = vmatprep.subr.bf16.mxu0 0
        %2110 = vmatpush1.bf16.msra.mxu0 %v1897
        %2111 = vmatprep.subr.bf16.mxu0 0
        %2112 = vmatpush1.bf16.msra.mxu0 %v1898
        %2113 = vmatprep.subr.bf16.mxu0 0
        %2114 = vmatpush1.bf16.msra.mxu0 %v1899
        %2115 = vmatprep.subr.bf16.mxu0 0
        %2116 = vmatpush1.bf16.msra.mxu0 %v1900
        %2117 = vmatprep.subr.bf16.mxu0 0
        %2118 = vmatpush1.bf16.msra.mxu0 %v1901
        %2119 = vmatprep.subr.bf16.mxu0 0
        %2120 = vmatpush1.bf16.msra.mxu0 %v1902
        %2121 = vmatprep.subr.bf16.mxu0 0
        %2122 = vmatpush1.bf16.msra.mxu0 0
        %2123 = vmatprep.subr.bf16.mxu0 0
        %2124 = vmatpush1.bf16.msra.mxu0 0
        %2125 = vmatprep.subr.bf16.mxu0 0
        %2126 = vmatpush1.bf16.msra.mxu0 0
        %2127 = vmatprep.subr.bf16.mxu0 0
        %2128 = vmatpush1.bf16.msra.mxu0 0
        %2129 = vmatprep.subr.bf16.mxu0 0
        %2130 = vmatpush1.bf16.msra.mxu0 0
        %2131 = vmatprep.subr.bf16.mxu0 0
        %2132 = vmatpush1.bf16.msra.mxu0 0
        %2133 = vmatprep.subr.bf16.mxu0 0
        %2134 = vmatpush1.bf16.msra.mxu0 0
        %2135 = vmatprep.subr.bf16.mxu0 0
        %2136 = vmatpush1.bf16.msra.mxu0 0
        %2137 = vmatprep.mubr.bf16.mxu0 0
        %2138 = vmatmul.mubr.bf16.gmra.mrb[0].mxu0 %v1601
        %v2139 = vpop.f32.mrb[0].mxu0
        %v2140 = vadd.f32 %v2059, %v2139
        %v2141 = vpop.f32.mrb[0].mxu0
        %v2142 = vpop.f32.mrb[0].mxu0
        %v2143 = vadd.f32 %v2062, %v2142
        %v2144 = vpop.f32.mrb[0].mxu0
        %2145 = vmatprep.mubr.bf16.mxu0 0
        %2146 = vmatmul.mubr.bf16.gmra.mrb[0].mxu0 %v1602
        %v2147 = vpop.f32.mrb[0].mxu0
        %v2148 = vadd.f32 %v2067, %v2147
        %v2149 = vpop.f32.mrb[0].mxu0
        %v2150 = vpop.f32.mrb[0].mxu0
        %v2151 = vadd.f32 %v2070, %v2150
        %v2152 = vpop.f32.mrb[0].mxu0
        %2153 = vmatprep.mubr.bf16.mxu0 0
        %2154 = vmatmul.mubr.bf16.gmra.mrb[0].mxu0 %v1603
        %v2155 = vpop.f32.mrb[0].mxu0
        %v2156 = vadd.f32 %v2075, %v2155
        %v2157 = vpop.f32.mrb[0].mxu0
        %v2158 = vpop.f32.mrb[0].mxu0
        %v2159 = vadd.f32 %v2078, %v2158
        %v2160 = vpop.f32.mrb[0].mxu0
        %2161 = vmatprep.mubr.bf16.mxu0 0
        %2162 = vmatmul.mubr.bf16.gmra.mrb[0].mxu0 %v1604
        %v2163 = vpop.f32.mrb[0].mxu0
        %v2164 = vadd.f32 %v2083, %v2163
        %v2165 = vpop.f32.mrb[0].mxu0
        %v2166 = vpop.f32.mrb[0].mxu0
        %v2167 = vadd.f32 %v2086, %v2166
        %v2168 = vpop.f32.mrb[0].mxu0
        %2169 = vmatprep.mubr.bf16.mxu0 0
        %2170 = vmatmul.mubr.bf16.gmra.mrb[0].mxu0 %v1605
        %v2171 = vpop.f32.mrb[0].mxu0
        %v2172 = vadd.f32 %v2091, %v2171
        %v2173 = vpop.f32.mrb[0].mxu0
        %v2174 = vpop.f32.mrb[0].mxu0
        %v2175 = vadd.f32 %v2094, %v2174
        %v2176 = vpop.f32.mrb[0].mxu0
        %2177 = vmatprep.mubr.bf16.mxu0 0
        %2178 = vmatmul.mubr.bf16.gmra.mrb[0].mxu0 %v1606
        %v2179 = vpop.f32.mrb[0].mxu0
        %v2180 = vadd.f32 %v2099, %v2179
        %v2181 = vpop.f32.mrb[0].mxu0
        %v2182 = vpop.f32.mrb[0].mxu0
        %v2183 = vadd.f32 %v2102, %v2182
        %v2184 = vpop.f32.mrb[0].mxu0
        %2185 = vdwg.mxu0
        %v2186 = vsel %vm1687, %v2140, 0.0
        %v2187 = vsel %vm1688, %v2143, 0.0
        %v2188 = vsel %vm1689, %v2148, 0.0
        %v2189 = vsel %vm1690, %v2151, 0.0
        %v2190 = vsel %vm1691, %v2156, 0.0
        %v2191 = vsel %vm1692, %v2159, 0.0
        %v2192 = vsel %vm1693, %v2164, 0.0
        %v2193 = vsel %vm1694, %v2167, 0.0
        %v2194 = vsel %vm1695, %v2172, 0.0
        %v2195 = vsel %vm1696, %v2175, 0.0
        %v2196 = vsel %vm1697, %v2180, 0.0
        %v2197 = vsel %vm1698, %v2183, 0.0
        %v2198 = vmax.f32 %v2186, 0.0
        %v2199 = vmax.f32 %v2187, 0.0
        %v2200 = vmax.f32 %v2188, 0.0
        %v2201 = vmax.f32 %v2189, 0.0
        %v2202 = vmax.f32 %v2190, 0.0
        %v2203 = vmax.f32 %v2191, 0.0
        %v2204 = vmax.f32 %v2192, 0.0
        %v2205 = vmax.f32 %v2193, 0.0
        %v2206 = vmax.f32 %v2194, 0.0
        %v2207 = vmax.f32 %v2195, 0.0
        %v2208 = vmax.f32 %v2196, 0.0
        %v2209 = vmax.f32 %v2197, 0.0
        %v2210 = vld [vmem:[#allocation8 + $0x30] sm:$0xf]
        %v2211 = vld [vmem:[#allocation8 + $0x34] sm:$0xf]
        %v2212 = vld [vmem:[#allocation8 + $0x38] sm:$0xf]
        %v2213 = vld [vmem:[#allocation8 + $0x3c] sm:$0xf]
        %v2214 = vld [vmem:[#allocation8 + $0x40] sm:$0xf]
        %v2215 = vld [vmem:[#allocation8 + $0x44] sm:$0xf]
        %v2216 = vld [vmem:[#allocation8 + $0x48] sm:$0xf]
        %v2217 = vld [vmem:[#allocation8 + $0x4c] sm:$0xf]
        %v2218 = vld [vmem:[#allocation8 + $0x50] sm:$0xf]
        %v2219 = vld [vmem:[#allocation8 + $0x54] sm:$0xf]
        %v2220 = vld [vmem:[#allocation8 + $0x58] sm:$0xf]
        %v2221 = vld [vmem:[#allocation8 + $0x5c] sm:$0xf]
        %v2222 = vpack.c.bf16 %v2199, %v2198
        %v2223 = vpack.c.bf16 %v2201, %v2200
        %v2224 = vpack.c.bf16 %v2203, %v2202
        %v2225 = vpack.c.bf16 %v2205, %v2204
        %v2226 = vpack.c.bf16 %v2207, %v2206
        %v2227 = vpack.c.bf16 %v2209, %v2208
        %v2240 = vunpack.c.l.b16 %v2210
        %v2241 = vunpack.c.l.b16 %v2211
        %v2242 = vunpack.c.l.b16 %v2212
        %v2243 = vunpack.c.l.b16 %v2213
        %v2244 = vunpack.c.l.b16 %v2214
        %v2245 = vunpack.c.l.b16 %v2215
        %v2246 = vunpack.c.l.b16 %v2216
        %v2247 = vunpack.c.l.b16 %v2217
        %v2248 = vunpack.c.l.b16 %v2218
        %v2249 = vunpack.c.l.b16 %v2219
        %v2250 = vunpack.c.l.b16 %v2220
        %v2251 = vunpack.c.l.b16 %v2221
        %v2252 = vpack.c.b16 %v2241, %v2240
        %v2253 = vpack.c.b16 %v2243, %v2242
        %v2254 = vpack.c.b16 %v2245, %v2244
        %v2255 = vpack.c.b16 %v2247, %v2246
        %v2256 = vpack.c.b16 %v2249, %v2248
        %v2257 = vpack.c.b16 %v2251, %v2250
        %v2259 = vsel %vm1381, %v2252, 0
        %v2262 = vsel %vm1381, %v2253, 0
        %v2265 = vsel %vm1381, %v2254, 0
        %v2268 = vsel %vm1381, %v2255, 0
        %v2271 = vsel %vm1381, %v2256, 0
        %v2274 = vsel %vm1381, %v2257, 0
        %2276 = vmatprep.subr.bf16.mxu0 0
        %2277 = vmatpush1.bf16.msra.mxu0 %v2222
        %2278 = vmatprep.subr.bf16.mxu0 0
        %2279 = vmatpush1.bf16.msra.mxu0 %v2223
        %2280 = vmatprep.subr.bf16.mxu0 0
        %2281 = vmatpush1.bf16.msra.mxu0 %v2224
        %2282 = vmatprep.subr.bf16.mxu0 0
        %2283 = vmatpush1.bf16.msra.mxu0 %v2225
        %2284 = vmatprep.subr.bf16.mxu0 0
        %2285 = vmatpush1.bf16.msra.mxu0 %v2226
        %2286 = vmatprep.subr.bf16.mxu0 0
        %2287 = vmatpush1.bf16.msra.mxu0 %v2227
        %2288 = vmatprep.subr.bf16.mxu0 0
        %2289 = vmatpush1.bf16.msra.mxu0 0
        %2290 = vmatprep.subr.bf16.mxu0 0
        %2291 = vmatpush1.bf16.msra.mxu0 0
        %2292 = vmatprep.subr.bf16.mxu0 0
        %2293 = vmatpush1.bf16.msra.mxu0 0
        %2294 = vmatprep.subr.bf16.mxu0 0
        %2295 = vmatpush1.bf16.msra.mxu0 0
        %2296 = vmatprep.subr.bf16.mxu0 0
        %2297 = vmatpush1.bf16.msra.mxu0 0
        %2298 = vmatprep.subr.bf16.mxu0 0
        %2299 = vmatpush1.bf16.msra.mxu0 0
        %2300 = vmatprep.subr.bf16.mxu0 0
        %2301 = vmatpush1.bf16.msra.mxu0 0
        %2302 = vmatprep.subr.bf16.mxu0 0
        %2303 = vmatpush1.bf16.msra.mxu0 0
        %2304 = vmatprep.subr.bf16.mxu0 0
        %2305 = vmatpush1.bf16.msra.mxu0 0
        %2306 = vmatprep.subr.bf16.mxu0 0
        %2307 = vmatpush1.bf16.msra.mxu0 0
        %2308 = vmatprep.mubr.bf16.mxu0 0
        %2309 = vmatmul.mubr.bf16.gmra.mrb[0].mxu0 %v2259
        %v2310 = vpop.f32.mrb[0].mxu0
        %v2311 = vadd.f32 0.0, %v2310
        %v2312 = vpop.f32.mrb[0].mxu0
        %v2313 = vpop.f32.mrb[0].mxu0
        %v2314 = vadd.f32 0.0, %v2313
        %v2315 = vpop.f32.mrb[0].mxu0
        %2316 = vmatprep.mubr.bf16.mxu0 0
        %2317 = vmatmul.mubr.bf16.gmra.mrb[0].mxu0 %v2262
        %v2318 = vpop.f32.mrb[0].mxu0
        %v2319 = vadd.f32 0.0, %v2318
        %v2320 = vpop.f32.mrb[0].mxu0
        %v2321 = vpop.f32.mrb[0].mxu0
        %v2322 = vadd.f32 0.0, %v2321
        %v2323 = vpop.f32.mrb[0].mxu0
        %2324 = vmatprep.mubr.bf16.mxu0 0
        %2325 = vmatmul.mubr.bf16.gmra.mrb[0].mxu0 %v2265
        %v2326 = vpop.f32.mrb[0].mxu0
        %v2327 = vadd.f32 0.0, %v2326
        %v2328 = vpop.f32.mrb[0].mxu0
        %v2329 = vpop.f32.mrb[0].mxu0
        %v2330 = vadd.f32 0.0, %v2329
        %v2331 = vpop.f32.mrb[0].mxu0
        %2332 = vmatprep.mubr.bf16.mxu0 0
        %2333 = vmatmul.mubr.bf16.gmra.mrb[0].mxu0 %v2268
        %v2334 = vpop.f32.mrb[0].mxu0
        %v2335 = vadd.f32 0.0, %v2334
        %v2336 = vpop.f32.mrb[0].mxu0
        %v2337 = vpop.f32.mrb[0].mxu0
        %v2338 = vadd.f32 0.0, %v2337
        %v2339 = vpop.f32.mrb[0].mxu0
        %2340 = vmatprep.mubr.bf16.mxu0 0
        %2341 = vmatmul.mubr.bf16.gmra.mrb[0].mxu0 %v2271
        %v2342 = vpop.f32.mrb[0].mxu0
        %v2343 = vadd.f32 0.0, %v2342
        %v2344 = vpop.f32.mrb[0].mxu0
        %v2345 = vpop.f32.mrb[0].mxu0
        %v2346 = vadd.f32 0.0, %v2345
        %v2347 = vpop.f32.mrb[0].mxu0
        %2348 = vmatprep.mubr.bf16.mxu0 0
        %2349 = vmatmul.mubr.bf16.gmra.mrb[0].mxu0 %v2274
        %v2350 = vpop.f32.mrb[0].mxu0
        %v2351 = vadd.f32 0.0, %v2350
        %v2352 = vpop.f32.mrb[0].mxu0
        %v2353 = vpop.f32.mrb[0].mxu0
        %v2354 = vadd.f32 0.0, %v2353
        %v2355 = vpop.f32.mrb[0].mxu0
        %2356 = vdwg.mxu0
        %v2357 = vpack.c.bf16 %v2314, %v2311
        %v2358 = vpack.c.bf16 %v2322, %v2319
        %v2359 = vpack.c.bf16 %v2330, %v2327
        %v2360 = vpack.c.bf16 %v2338, %v2335
        %v2361 = vpack.c.bf16 %v2346, %v2343
        %v2362 = vpack.c.bf16 %v2354, %v2351
        %v2363 = vrot.slane %v2311, 7
        %v2364 = vrot.slane %v2314, 7
        %v2365 = vrot.slane %v2319, 7
        %v2366 = vrot.slane %v2322, 7
        %v2367 = vrot.slane %v2327, 7
        %v2368 = vrot.slane %v2330, 7
        %v2369 = vrot.slane %v2335, 7
        %v2370 = vrot.slane %v2338, 7
        %v2371 = vrot.slane %v2343, 7
        %v2372 = vrot.slane %v2346, 7
        %v2373 = vrot.slane %v2351, 7
        %v2374 = vrot.slane %v2354, 7
        %v2375 = vsel %vm618, %v2373, %v2374
        %v2376 = vsel %vm618, %v2372, %v2373
        %v2377 = vsel %vm618, %v2371, %v2372
        %v2378 = vsel %vm618, %v2370, %v2371
        %v2379 = vsel %vm618, %v2369, %v2370
        %v2380 = vsel %vm618, %v2368, %v2369
        %v2381 = vsel %vm618, %v2367, %v2368
        %v2382 = vsel %vm618, %v2366, %v2367
        %v2383 = vsel %vm618, %v2365, %v2366
        %v2384 = vsel %vm618, %v2364, %v2365
        %v2385 = vsel %vm618, %v2363, %v2364
        %v2386 = vsel %vm618, %v2374, %v2363
        %v2387 = vpack.c.bf16 %v2385, %v2386
        %v2388 = vpack.c.bf16 %v2383, %v2384
        %v2389 = vpack.c.bf16 %v2381, %v2382
        %v2390 = vpack.c.bf16 %v2379, %v2380
        %v2391 = vpack.c.bf16 %v2377, %v2378
        %v2392 = vpack.c.bf16 %v2375, %v2376
        %v2393 = vrot.slane %v2311, 6
        %v2394 = vrot.slane %v2314, 6
        %v2395 = vrot.slane %v2319, 6
        %v2396 = vrot.slane %v2322, 6
        %v2397 = vrot.slane %v2327, 6
        %v2398 = vrot.slane %v2330, 6
        %v2399 = vrot.slane %v2335, 6
        %v2400 = vrot.slane %v2338, 6
        %v2401 = vrot.slane %v2343, 6
        %v2402 = vrot.slane %v2346, 6
        %v2403 = vrot.slane %v2351, 6
        %v2404 = vrot.slane %v2354, 6
        %v2405 = vsel %vm649, %v2403, %v2404
        %v2406 = vsel %vm649, %v2402, %v2403
        %v2407 = vsel %vm649, %v2401, %v2402
        %v2408 = vsel %vm649, %v2400, %v2401
        %v2409 = vsel %vm649, %v2399, %v2400
        %v2410 = vsel %vm649, %v2398, %v2399
        %v2411 = vsel %vm649, %v2397, %v2398
        %v2412 = vsel %vm649, %v2396, %v2397
        %v2413 = vsel %vm649, %v2395, %v2396
        %v2414 = vsel %vm649, %v2394, %v2395
        %v2415 = vsel %vm649, %v2393, %v2394
        %v2416 = vsel %vm649, %v2404, %v2393
        %v2417 = vpack.c.bf16 %v2415, %v2416
        %v2418 = vpack.c.bf16 %v2413, %v2414
        %v2419 = vpack.c.bf16 %v2411, %v2412
        %v2420 = vpack.c.bf16 %v2409, %v2410
        %v2421 = vpack.c.bf16 %v2407, %v2408
        %v2422 = vpack.c.bf16 %v2405, %v2406
        %v2423 = vrot.slane %v2311, 5
        %v2424 = vrot.slane %v2314, 5
        %v2425 = vrot.slane %v2319, 5
        %v2426 = vrot.slane %v2322, 5
        %v2427 = vrot.slane %v2327, 5
        %v2428 = vrot.slane %v2330, 5
        %v2429 = vrot.slane %v2335, 5
        %v2430 = vrot.slane %v2338, 5
        %v2431 = vrot.slane %v2343, 5
        %v2432 = vrot.slane %v2346, 5
        %v2433 = vrot.slane %v2351, 5
        %v2434 = vrot.slane %v2354, 5
        %v2435 = vsel %vm680, %v2433, %v2434
        %v2436 = vsel %vm680, %v2432, %v2433
        %v2437 = vsel %vm680, %v2431, %v2432
        %v2438 = vsel %vm680, %v2430, %v2431
        %v2439 = vsel %vm680, %v2429, %v2430
        %v2440 = vsel %vm680, %v2428, %v2429
        %v2441 = vsel %vm680, %v2427, %v2428
        %v2442 = vsel %vm680, %v2426, %v2427
        %v2443 = vsel %vm680, %v2425, %v2426
        %v2444 = vsel %vm680, %v2424, %v2425
        %v2445 = vsel %vm680, %v2423, %v2424
        %v2446 = vsel %vm680, %v2434, %v2423
        %v2447 = vpack.c.bf16 %v2445, %v2446
        %v2448 = vpack.c.bf16 %v2443, %v2444
        %v2449 = vpack.c.bf16 %v2441, %v2442
        %v2450 = vpack.c.bf16 %v2439, %v2440
        %v2451 = vpack.c.bf16 %v2437, %v2438
        %v2452 = vpack.c.bf16 %v2435, %v2436
        %v2453 = vrot.slane %v2311, 4
        %v2454 = vrot.slane %v2314, 4
        %v2455 = vrot.slane %v2319, 4
        %v2456 = vrot.slane %v2322, 4
        %v2457 = vrot.slane %v2327, 4
        %v2458 = vrot.slane %v2330, 4
        %v2459 = vrot.slane %v2335, 4
        %v2460 = vrot.slane %v2338, 4
        %v2461 = vrot.slane %v2343, 4
        %v2462 = vrot.slane %v2346, 4
        %v2463 = vrot.slane %v2351, 4
        %v2464 = vrot.slane %v2354, 4
        %v2465 = vsel %vm711, %v2463, %v2464
        %v2466 = vsel %vm711, %v2462, %v2463
        %v2467 = vsel %vm711, %v2461, %v2462
        %v2468 = vsel %vm711, %v2460, %v2461
        %v2469 = vsel %vm711, %v2459, %v2460
        %v2470 = vsel %vm711, %v2458, %v2459
        %v2471 = vsel %vm711, %v2457, %v2458
        %v2472 = vsel %vm711, %v2456, %v2457
        %v2473 = vsel %vm711, %v2455, %v2456
        %v2474 = vsel %vm711, %v2454, %v2455
        %v2475 = vsel %vm711, %v2453, %v2454
        %v2476 = vsel %vm711, %v2464, %v2453
        %v2477 = vpack.c.bf16 %v2475, %v2476
        %v2478 = vpack.c.bf16 %v2473, %v2474
        %v2479 = vpack.c.bf16 %v2471, %v2472
        %v2480 = vpack.c.bf16 %v2469, %v2470
        %v2481 = vpack.c.bf16 %v2467, %v2468
        %v2482 = vpack.c.bf16 %v2465, %v2466
        %v2483 = vld [vmem:[#allocation5 + $0x280] sm:$0xf]
        %v2484 = vld [vmem:[#allocation5 + $0x284] sm:$0xf]
        %v2485 = vld [vmem:[#allocation5 + $0x288] sm:$0xf]
        %v2486 = vld [vmem:[#allocation5 + $0x28c] sm:$0xf]
        %v2487 = vld [vmem:[#allocation5 + $0x290] sm:$0xf]
        %v2488 = vld [vmem:[#allocation5 + $0x294] sm:$0xf]
        %v2489 = vld [vmem:[#allocation5 + $0x298] sm:$0xf]
        %v2490 = vld [vmem:[#allocation5 + $0x29c] sm:$0xf]
        %v2491 = vld [vmem:[#allocation5 + $0x2a0] sm:$0xf]
        %v2492 = vld [vmem:[#allocation5 + $0x2a4] sm:$0xf]
        %v2493 = vld [vmem:[#allocation5 + $0x2a8] sm:$0xf]
        %v2494 = vld [vmem:[#allocation5 + $0x2ac] sm:$0xf]
        %v2495 = vld [vmem:[#allocation5 + $0x2b0] sm:$0xf]
        %v2496 = vld [vmem:[#allocation5 + $0x2b4] sm:$0xf]
        %v2497 = vld [vmem:[#allocation5 + $0x2b8] sm:$0xf]
        %v2498 = vld [vmem:[#allocation5 + $0x2bc] sm:$0xf]
        %v2499 = vld [vmem:[#allocation5 + $0x2c0] sm:$0xf]
        %v2500 = vld [vmem:[#allocation5 + $0x2c4] sm:$0xf]
        %v2501 = vld [vmem:[#allocation5 + $0x2c8] sm:$0xf]
        %v2502 = vld [vmem:[#allocation5 + $0x2cc] sm:$0xf]
        %v2503 = vld [vmem:[#allocation5 + $0x2d0] sm:$0xf]
        %v2504 = vld [vmem:[#allocation5 + $0x2d4] sm:$0xf]
        %v2505 = vld [vmem:[#allocation5 + $0x2d8] sm:$0xf]
        %v2506 = vld [vmem:[#allocation5 + $0x2dc] sm:$0xf]
        %v2507 = vld [vmem:[#allocation5 + $0x2e0] sm:$0xf]
        %v2508 = vld [vmem:[#allocation5 + $0x2e4] sm:$0xf]
        %v2509 = vld [vmem:[#allocation5 + $0x2e8] sm:$0xf]
        %v2510 = vld [vmem:[#allocation5 + $0x2ec] sm:$0xf]
        %v2511 = vld [vmem:[#allocation5 + $0x2f0] sm:$0xf]
        %v2512 = vld [vmem:[#allocation5 + $0x2f4] sm:$0xf]
        %v2513 = vld [vmem:[#allocation5 + $0x2f8] sm:$0xf]
        %v2514 = vld [vmem:[#allocation5 + $0x2fc] sm:$0xf]
        %v2515 = vld [vmem:[#allocation5 + $0x300] sm:$0xf]
        %v2516 = vld [vmem:[#allocation5 + $0x304] sm:$0xf]
        %v2517 = vld [vmem:[#allocation5 + $0x308] sm:$0xf]
        %v2518 = vld [vmem:[#allocation5 + $0x30c] sm:$0xf]
        %v2519 = vld [vmem:[#allocation5 + $0x310] sm:$0xf]
        %v2520 = vld [vmem:[#allocation5 + $0x314] sm:$0xf]
        %v2521 = vld [vmem:[#allocation5 + $0x318] sm:$0xf]
        %v2522 = vld [vmem:[#allocation5 + $0x31c] sm:$0xf]
        %v2523 = vld [vmem:[#allocation5 + $0x320] sm:$0xf]
        %v2524 = vld [vmem:[#allocation5 + $0x324] sm:$0xf]
        %v2525 = vld [vmem:[#allocation5 + $0x328] sm:$0xf]
        %v2526 = vld [vmem:[#allocation5 + $0x32c] sm:$0xf]
        %v2527 = vld [vmem:[#allocation5 + $0x330] sm:$0xf]
        %v2528 = vld [vmem:[#allocation5 + $0x334] sm:$0xf]
        %v2529 = vld [vmem:[#allocation5 + $0x338] sm:$0xf]
        %v2530 = vld [vmem:[#allocation5 + $0x33c] sm:$0xf]
        %v2531 = vld [vmem:[#allocation5 + $0x340] sm:$0xf]
        %v2532 = vld [vmem:[#allocation5 + $0x344] sm:$0xf]
        %v2533 = vld [vmem:[#allocation5 + $0x348] sm:$0xf]
        %v2534 = vld [vmem:[#allocation5 + $0x34c] sm:$0xf]
        %v2535 = vld [vmem:[#allocation5 + $0x350] sm:$0xf]
        %v2536 = vld [vmem:[#allocation5 + $0x354] sm:$0xf]
        %v2537 = vld [vmem:[#allocation5 + $0x358] sm:$0xf]
        %v2538 = vld [vmem:[#allocation5 + $0x35c] sm:$0xf]
        %v2539 = vld [vmem:[#allocation5 + $0x360] sm:$0xf]
        %v2540 = vld [vmem:[#allocation5 + $0x364] sm:$0xf]
        %v2541 = vld [vmem:[#allocation5 + $0x368] sm:$0xf]
        %v2542 = vld [vmem:[#allocation5 + $0x36c] sm:$0xf]
        %v2543 = vld [vmem:[#allocation5 + $0x370] sm:$0xf]
        %v2544 = vld [vmem:[#allocation5 + $0x374] sm:$0xf]
        %v2545 = vld [vmem:[#allocation5 + $0x378] sm:$0xf]
        %v2546 = vld [vmem:[#allocation5 + $0x37c] sm:$0xf]
        %v2547 = vld [vmem:[#allocation5 + $0x380] sm:$0xf]
        %v2548 = vld [vmem:[#allocation5 + $0x384] sm:$0xf]
        %v2549 = vld [vmem:[#allocation5 + $0x388] sm:$0xf]
        %v2550 = vld [vmem:[#allocation5 + $0x38c] sm:$0xf]
        %v2551 = vld [vmem:[#allocation5 + $0x390] sm:$0xf]
        %v2552 = vld [vmem:[#allocation5 + $0x394] sm:$0xf]
        %v2553 = vld [vmem:[#allocation5 + $0x398] sm:$0xf]
        %v2554 = vld [vmem:[#allocation5 + $0x39c] sm:$0xf]
        %v2555 = vld [vmem:[#allocation5 + $0x3a0] sm:$0xf]
        %v2556 = vld [vmem:[#allocation5 + $0x3a4] sm:$0xf]
        %v2557 = vld [vmem:[#allocation5 + $0x3a8] sm:$0xf]
        %v2558 = vld [vmem:[#allocation5 + $0x3ac] sm:$0xf]
        %v2559 = vld [vmem:[#allocation5 + $0x3b0] sm:$0xf]
        %v2560 = vld [vmem:[#allocation5 + $0x3b4] sm:$0xf]
        %v2561 = vld [vmem:[#allocation5 + $0x3b8] sm:$0xf]
        %v2562 = vld [vmem:[#allocation5 + $0x3bc] sm:$0xf]
        %vm2563 = vcmp.lt.s32.totalorder %v452, 44
        %vm2564 = vcmp.lt.s32.totalorder %v453, 44
        %vm2565 = vcmp.lt.s32.totalorder %v454, 44
        %vm2566 = vcmp.lt.s32.totalorder %v455, 44
        %vm2567 = vcmp.lt.s32.totalorder %v456, 44
        %vm2568 = vcmp.lt.s32.totalorder %v457, 44
        %vm2569 = vcmp.lt.s32.totalorder %v458, 44
        %vm2570 = vcmp.lt.s32.totalorder %v459, 44
        %vm2571 = vcmp.lt.s32.totalorder %v460, 44
        %vm2572 = vcmp.lt.s32.totalorder %v461, 44
        %vm2573 = vcmp.lt.s32.totalorder %v462, 44
        %vm2574 = vcmp.lt.s32.totalorder %v463, 44
        %v2575 = vlaneseq
        %v2576 = vshrl.u32 %v2575, 7
        %v2577 = vsub.s32 2, %v2576
        %v2578 = vrot.slane %v503, %v2577
        %v2659 = vunpack.c.l.b16 %v2483
        %v2660 = vunpack.c.l.b16 %v2484
        %v2661 = vunpack.c.l.b16 %v2485
        %v2662 = vunpack.c.l.b16 %v2486
        %v2663 = vunpack.c.l.b16 %v2487
        %v2664 = vunpack.c.l.b16 %v2488
        %v2665 = vunpack.c.l.b16 %v2489
        %v2666 = vunpack.c.l.b16 %v2490
        %v2667 = vunpack.c.l.b16 %v2491
        %v2668 = vunpack.c.l.b16 %v2492
        %v2669 = vunpack.c.l.b16 %v2493
        %v2670 = vunpack.c.l.b16 %v2494
        %v2671 = vunpack.c.l.b16 %v2495
        %v2672 = vunpack.c.l.b16 %v2496
        %v2673 = vunpack.c.l.b16 %v2497
        %v2674 = vunpack.c.l.b16 %v2498
        %v2675 = vunpack.c.l.b16 %v2499
        %v2676 = vunpack.c.l.b16 %v2500
        %v2677 = vunpack.c.l.b16 %v2501
        %v2678 = vunpack.c.l.b16 %v2502
        %v2679 = vunpack.c.l.b16 %v2503
        %v2680 = vunpack.c.l.b16 %v2504
        %v2681 = vunpack.c.l.b16 %v2505
        %v2682 = vunpack.c.l.b16 %v2506
        %v2683 = vunpack.c.l.b16 %v2507
        %v2684 = vunpack.c.l.b16 %v2508
        %v2685 = vunpack.c.l.b16 %v2509
        %v2686 = vunpack.c.l.b16 %v2510
        %v2687 = vunpack.c.l.b16 %v2511
        %v2688 = vunpack.c.l.b16 %v2512
        %v2689 = vunpack.c.l.b16 %v2513
        %v2690 = vunpack.c.l.b16 %v2514
        %v2691 = vunpack.c.l.b16 %v2515
        %v2692 = vunpack.c.l.b16 %v2516
        %v2693 = vunpack.c.l.b16 %v2517
        %v2694 = vunpack.c.l.b16 %v2518
        %v2695 = vunpack.c.l.b16 %v2519
        %v2696 = vunpack.c.l.b16 %v2520
        %v2697 = vunpack.c.l.b16 %v2521
        %v2698 = vunpack.c.l.b16 %v2522
        %v2699 = vunpack.c.l.b16 %v2523
        %v2700 = vunpack.c.l.b16 %v2524
        %v2701 = vunpack.c.l.b16 %v2525
        %v2702 = vunpack.c.l.b16 %v2526
        %v2703 = vunpack.c.l.b16 %v2527
        %v2704 = vunpack.c.l.b16 %v2528
        %v2705 = vunpack.c.l.b16 %v2529
        %v2706 = vunpack.c.l.b16 %v2530
        %v2707 = vunpack.c.l.b16 %v2531
        %v2708 = vunpack.c.l.b16 %v2532
        %v2709 = vunpack.c.l.b16 %v2533
        %v2710 = vunpack.c.l.b16 %v2534
        %v2711 = vunpack.c.l.b16 %v2535
        %v2712 = vunpack.c.l.b16 %v2536
        %v2713 = vunpack.c.l.b16 %v2537
        %v2714 = vunpack.c.l.b16 %v2538
        %v2715 = vunpack.c.l.b16 %v2539
        %v2716 = vunpack.c.l.b16 %v2540
        %v2717 = vunpack.c.l.b16 %v2541
        %v2718 = vunpack.c.l.b16 %v2542
        %v2719 = vunpack.c.l.b16 %v2543
        %v2720 = vunpack.c.l.b16 %v2544
        %v2721 = vunpack.c.l.b16 %v2545
        %v2722 = vunpack.c.l.b16 %v2546
        %v2723 = vunpack.c.l.b16 %v2547
        %v2724 = vunpack.c.l.b16 %v2548
        %v2725 = vunpack.c.l.b16 %v2549
        %v2726 = vunpack.c.l.b16 %v2550
        %v2727 = vunpack.c.l.b16 %v2551
        %v2728 = vunpack.c.l.b16 %v2552
        %v2729 = vunpack.c.l.b16 %v2553
        %v2730 = vunpack.c.l.b16 %v2554
        %v2731 = vunpack.c.l.b16 %v2555
        %v2732 = vunpack.c.l.b16 %v2556
        %v2733 = vunpack.c.l.b16 %v2557
        %v2734 = vunpack.c.l.b16 %v2558
        %v2735 = vunpack.c.l.b16 %v2559
        %v2736 = vunpack.c.l.b16 %v2560
        %v2737 = vunpack.c.l.b16 %v2561
        %v2738 = vunpack.c.l.b16 %v2562
        %v2739 = vpack.c.b16 %v2660, %v2659
        %v2740 = vpack.c.b16 %v2662, %v2661
        %v2741 = vpack.c.b16 %v2664, %v2663
        %v2742 = vpack.c.b16 %v2666, %v2665
        %v2743 = vpack.c.b16 %v2668, %v2667
        %v2744 = vpack.c.b16 %v2670, %v2669
        %v2745 = vpack.c.b16 %v2672, %v2671
        %v2746 = vpack.c.b16 %v2674, %v2673
        %v2747 = vpack.c.b16 %v2676, %v2675
        %v2748 = vpack.c.b16 %v2678, %v2677
        %v2749 = vpack.c.b16 %v2680, %v2679
        %v2750 = vpack.c.b16 %v2682, %v2681
        %v2751 = vpack.c.b16 %v2684, %v2683
        %v2752 = vpack.c.b16 %v2686, %v2685
        %v2753 = vpack.c.b16 %v2688, %v2687
        %v2754 = vpack.c.b16 %v2690, %v2689
        %v2755 = vpack.c.b16 %v2692, %v2691
        %v2756 = vpack.c.b16 %v2694, %v2693
        %v2757 = vpack.c.b16 %v2696, %v2695
        %v2758 = vpack.c.b16 %v2698, %v2697
        %v2759 = vpack.c.b16 %v2700, %v2699
        %v2760 = vpack.c.b16 %v2702, %v2701
        %v2761 = vpack.c.b16 %v2704, %v2703
        %v2762 = vpack.c.b16 %v2706, %v2705
        %v2763 = vpack.c.b16 %v2708, %v2707
        %v2764 = vpack.c.b16 %v2710, %v2709
        %v2765 = vpack.c.b16 %v2712, %v2711
        %v2766 = vpack.c.b16 %v2714, %v2713
        %v2767 = vpack.c.b16 %v2716, %v2715
        %v2768 = vpack.c.b16 %v2718, %v2717
        %v2769 = vpack.c.b16 %v2720, %v2719
        %v2770 = vpack.c.b16 %v2722, %v2721
        %v2771 = vpack.c.b16 %v2724, %v2723
        %v2772 = vpack.c.b16 %v2726, %v2725
        %v2773 = vpack.c.b16 %v2728, %v2727
        %v2774 = vpack.c.b16 %v2730, %v2729
        %v2775 = vpack.c.b16 %v2732, %v2731
        %v2776 = vpack.c.b16 %v2734, %v2733
        %v2777 = vpack.c.b16 %v2736, %v2735
        %v2778 = vpack.c.b16 %v2738, %v2737
        %2819 = vmatprep.subr.bf16.mxu0 0
        %2820 = vmatpush1.bf16.msra.mxu0 %v2739
        %2821 = vmatprep.subr.bf16.mxu0 0
        %2822 = vmatpush1.bf16.msra.mxu0 %v2740
        %2823 = vmatprep.subr.bf16.mxu0 0
        %2824 = vmatpush1.bf16.msra.mxu0 %v2741
        %2825 = vmatprep.subr.bf16.mxu0 0
        %2826 = vmatpush1.bf16.msra.mxu0 %v2742
        %2827 = vmatprep.subr.bf16.mxu0 0
        %2828 = vmatpush1.bf16.msra.mxu0 %v2743
        %2829 = vmatprep.subr.bf16.mxu0 0
        %2830 = vmatpush1.bf16.msra.mxu0 %v2744
        %2831 = vmatprep.subr.bf16.mxu0 0
        %2832 = vmatpush1.bf16.msra.mxu0 %v2745
        %2833 = vmatprep.subr.bf16.mxu0 0
        %2834 = vmatpush1.bf16.msra.mxu0 %v2746
        %2835 = vmatprep.subr.bf16.mxu0 0
        %2836 = vmatpush1.bf16.msra.mxu0 %v2747
        %2837 = vmatprep.subr.bf16.mxu0 0
        %2838 = vmatpush1.bf16.msra.mxu0 %v2748
        %2839 = vmatprep.subr.bf16.mxu0 0
        %2840 = vmatpush1.bf16.msra.mxu0 %v2749
        %2841 = vmatprep.subr.bf16.mxu0 0
        %2842 = vmatpush1.bf16.msra.mxu0 %v2750
        %2843 = vmatprep.subr.bf16.mxu0 0
        %2844 = vmatpush1.bf16.msra.mxu0 %v2751
        %2845 = vmatprep.subr.bf16.mxu0 0
        %2846 = vmatpush1.bf16.msra.mxu0 %v2752
        %2847 = vmatprep.subr.bf16.mxu0 0
        %2848 = vmatpush1.bf16.msra.mxu0 %v2753
        %2849 = vmatprep.subr.bf16.mxu0 0
        %2850 = vmatpush1.bf16.msra.mxu0 %v2754
        %2851 = vmatprep.mubr.bf16.mxu0 %v2387
        %2852 = vmatmul.mubr.bf16.gmra.mrb[0].mxu0 %v2357
        %v2853 = vpop.f32.mrb[0].mxu0
        %v2854 = vadd.f32 %v2578, %v2853
        %v2855 = vpop.f32.mrb[0].mxu0
        %v2856 = vpop.f32.mrb[0].mxu0
        %v2857 = vadd.f32 %v2578, %v2856
        %v2858 = vpop.f32.mrb[0].mxu0
        %2859 = vmatprep.mubr.bf16.mxu0 %v2388
        %2860 = vmatmul.mubr.bf16.gmra.mrb[0].mxu0 %v2358
        %v2861 = vpop.f32.mrb[0].mxu0
        %v2862 = vadd.f32 %v2578, %v2861
        %v2863 = vpop.f32.mrb[0].mxu0
        %v2864 = vpop.f32.mrb[0].mxu0
        %v2865 = vadd.f32 %v2578, %v2864
        %v2866 = vpop.f32.mrb[0].mxu0
        %2867 = vmatprep.mubr.bf16.mxu0 %v2389
        %2868 = vmatmul.mubr.bf16.gmra.mrb[0].mxu0 %v2359
        %v2869 = vpop.f32.mrb[0].mxu0
        %v2870 = vadd.f32 %v2578, %v2869
        %v2871 = vpop.f32.mrb[0].mxu0
        %v2872 = vpop.f32.mrb[0].mxu0
        %v2873 = vadd.f32 %v2578, %v2872
        %v2874 = vpop.f32.mrb[0].mxu0
        %2875 = vmatprep.mubr.bf16.mxu0 %v2390
        %2876 = vmatmul.mubr.bf16.gmra.mrb[0].mxu0 %v2360
        %v2877 = vpop.f32.mrb[0].mxu0
        %v2878 = vadd.f32 %v2578, %v2877
        %v2879 = vpop.f32.mrb[0].mxu0
        %v2880 = vpop.f32.mrb[0].mxu0
        %v2881 = vadd.f32 %v2578, %v2880
        %v2882 = vpop.f32.mrb[0].mxu0
        %2883 = vmatprep.mubr.bf16.mxu0 %v2391
        %2884 = vmatmul.mubr.bf16.gmra.mrb[0].mxu0 %v2361
        %v2885 = vpop.f32.mrb[0].mxu0
        %v2886 = vadd.f32 %v2578, %v2885
        %v2887 = vpop.f32.mrb[0].mxu0
        %v2888 = vpop.f32.mrb[0].mxu0
        %v2889 = vadd.f32 %v2578, %v2888
        %v2890 = vpop.f32.mrb[0].mxu0
        %2891 = vmatprep.mubr.bf16.mxu0 %v2392
        %2892 = vmatmul.mubr.bf16.gmra.mrb[0].mxu0 %v2362
        %v2893 = vpop.f32.mrb[0].mxu0
        %v2894 = vadd.f32 %v2578, %v2893
        %v2895 = vpop.f32.mrb[0].mxu0
        %v2896 = vpop.f32.mrb[0].mxu0
        %v2897 = vadd.f32 %v2578, %v2896
        %v2898 = vpop.f32.mrb[0].mxu0
        %2899 = vdwg.mxu0
        %2900 = vmatprep.subr.bf16.mxu0 0
        %2901 = vmatpush1.bf16.msra.mxu0 %v2755
        %2902 = vmatprep.subr.bf16.mxu0 0
        %2903 = vmatpush1.bf16.msra.mxu0 %v2756
        %2904 = vmatprep.subr.bf16.mxu0 0
        %2905 = vmatpush1.bf16.msra.mxu0 %v2757
        %2906 = vmatprep.subr.bf16.mxu0 0
        %2907 = vmatpush1.bf16.msra.mxu0 %v2758
        %2908 = vmatprep.subr.bf16.mxu0 0
        %2909 = vmatpush1.bf16.msra.mxu0 %v2759
        %2910 = vmatprep.subr.bf16.mxu0 0
        %2911 = vmatpush1.bf16.msra.mxu0 %v2760
        %2912 = vmatprep.subr.bf16.mxu0 0
        %2913 = vmatpush1.bf16.msra.mxu0 %v2761
        %2914 = vmatprep.subr.bf16.mxu0 0
        %2915 = vmatpush1.bf16.msra.mxu0 %v2762
        %2916 = vmatprep.subr.bf16.mxu0 0
        %2917 = vmatpush1.bf16.msra.mxu0 %v2763
        %2918 = vmatprep.subr.bf16.mxu0 0
        %2919 = vmatpush1.bf16.msra.mxu0 %v2764
        %2920 = vmatprep.subr.bf16.mxu0 0
        %2921 = vmatpush1.bf16.msra.mxu0 %v2765
        %2922 = vmatprep.subr.bf16.mxu0 0
        %2923 = vmatpush1.bf16.msra.mxu0 %v2766
        %2924 = vmatprep.subr.bf16.mxu0 0
        %2925 = vmatpush1.bf16.msra.mxu0 %v2767
        %2926 = vmatprep.subr.bf16.mxu0 0
        %2927 = vmatpush1.bf16.msra.mxu0 %v2768
        %2928 = vmatprep.subr.bf16.mxu0 0
        %2929 = vmatpush1.bf16.msra.mxu0 %v2769
        %2930 = vmatprep.subr.bf16.mxu0 0
        %2931 = vmatpush1.bf16.msra.mxu0 %v2770
        %2932 = vmatprep.mubr.bf16.mxu0 %v2447
        %2933 = vmatmul.mubr.bf16.gmra.mrb[0].mxu0 %v2417
        %v2934 = vpop.f32.mrb[0].mxu0
        %v2935 = vadd.f32 %v2854, %v2934
        %v2936 = vpop.f32.mrb[0].mxu0
        %v2937 = vpop.f32.mrb[0].mxu0
        %v2938 = vadd.f32 %v2857, %v2937
        %v2939 = vpop.f32.mrb[0].mxu0
        %2940 = vmatprep.mubr.bf16.mxu0 %v2448
        %2941 = vmatmul.mubr.bf16.gmra.mrb[0].mxu0 %v2418
        %v2942 = vpop.f32.mrb[0].mxu0
        %v2943 = vadd.f32 %v2862, %v2942
        %v2944 = vpop.f32.mrb[0].mxu0
        %v2945 = vpop.f32.mrb[0].mxu0
        %v2946 = vadd.f32 %v2865, %v2945
        %v2947 = vpop.f32.mrb[0].mxu0
        %2948 = vmatprep.mubr.bf16.mxu0 %v2449
        %2949 = vmatmul.mubr.bf16.gmra.mrb[0].mxu0 %v2419
        %v2950 = vpop.f32.mrb[0].mxu0
        %v2951 = vadd.f32 %v2870, %v2950
        %v2952 = vpop.f32.mrb[0].mxu0
        %v2953 = vpop.f32.mrb[0].mxu0
        %v2954 = vadd.f32 %v2873, %v2953
        %v2955 = vpop.f32.mrb[0].mxu0
        %2956 = vmatprep.mubr.bf16.mxu0 %v2450
        %2957 = vmatmul.mubr.bf16.gmra.mrb[0].mxu0 %v2420
        %v2958 = vpop.f32.mrb[0].mxu0
        %v2959 = vadd.f32 %v2878, %v2958
        %v2960 = vpop.f32.mrb[0].mxu0
        %v2961 = vpop.f32.mrb[0].mxu0
        %v2962 = vadd.f32 %v2881, %v2961
        %v2963 = vpop.f32.mrb[0].mxu0
        %2964 = vmatprep.mubr.bf16.mxu0 %v2451
        %2965 = vmatmul.mubr.bf16.gmra.mrb[0].mxu0 %v2421
        %v2966 = vpop.f32.mrb[0].mxu0
        %v2967 = vadd.f32 %v2886, %v2966
        %v2968 = vpop.f32.mrb[0].mxu0
        %v2969 = vpop.f32.mrb[0].mxu0
        %v2970 = vadd.f32 %v2889, %v2969
        %v2971 = vpop.f32.mrb[0].mxu0
        %2972 = vmatprep.mubr.bf16.mxu0 %v2452
        %2973 = vmatmul.mubr.bf16.gmra.mrb[0].mxu0 %v2422
        %v2974 = vpop.f32.mrb[0].mxu0
        %v2975 = vadd.f32 %v2894, %v2974
        %v2976 = vpop.f32.mrb[0].mxu0
        %v2977 = vpop.f32.mrb[0].mxu0
        %v2978 = vadd.f32 %v2897, %v2977
        %v2979 = vpop.f32.mrb[0].mxu0
        %2980 = vdwg.mxu0
        %2981 = vmatprep.subr.bf16.mxu0 0
        %2982 = vmatpush1.bf16.msra.mxu0 %v2771
        %2983 = vmatprep.subr.bf16.mxu0 0
        %2984 = vmatpush1.bf16.msra.mxu0 %v2772
        %2985 = vmatprep.subr.bf16.mxu0 0
        %2986 = vmatpush1.bf16.msra.mxu0 %v2773
        %2987 = vmatprep.subr.bf16.mxu0 0
        %2988 = vmatpush1.bf16.msra.mxu0 %v2774
        %2989 = vmatprep.subr.bf16.mxu0 0
        %2990 = vmatpush1.bf16.msra.mxu0 %v2775
        %2991 = vmatprep.subr.bf16.mxu0 0
        %2992 = vmatpush1.bf16.msra.mxu0 %v2776
        %2993 = vmatprep.subr.bf16.mxu0 0
        %2994 = vmatpush1.bf16.msra.mxu0 %v2777
        %2995 = vmatprep.subr.bf16.mxu0 0
        %2996 = vmatpush1.bf16.msra.mxu0 %v2778
        %2997 = vmatprep.subr.bf16.mxu0 0
        %2998 = vmatpush1.bf16.msra.mxu0 0
        %2999 = vmatprep.subr.bf16.mxu0 0
        %3000 = vmatpush1.bf16.msra.mxu0 0
        %3001 = vmatprep.subr.bf16.mxu0 0
        %3002 = vmatpush1.bf16.msra.mxu0 0
        %3003 = vmatprep.subr.bf16.mxu0 0
        %3004 = vmatpush1.bf16.msra.mxu0 0
        %3005 = vmatprep.subr.bf16.mxu0 0
        %3006 = vmatpush1.bf16.msra.mxu0 0
        %3007 = vmatprep.subr.bf16.mxu0 0
        %3008 = vmatpush1.bf16.msra.mxu0 0
        %3009 = vmatprep.subr.bf16.mxu0 0
        %3010 = vmatpush1.bf16.msra.mxu0 0
        %3011 = vmatprep.subr.bf16.mxu0 0
        %3012 = vmatpush1.bf16.msra.mxu0 0
        %3013 = vmatprep.mubr.bf16.mxu0 0
        %3014 = vmatmul.mubr.bf16.gmra.mrb[0].mxu0 %v2477
        %v3015 = vpop.f32.mrb[0].mxu0
        %v3016 = vadd.f32 %v2935, %v3015
        %v3017 = vpop.f32.mrb[0].mxu0
        %v3018 = vpop.f32.mrb[0].mxu0
        %v3019 = vadd.f32 %v2938, %v3018
        %v3020 = vpop.f32.mrb[0].mxu0
        %3021 = vmatprep.mubr.bf16.mxu0 0
        %3022 = vmatmul.mubr.bf16.gmra.mrb[0].mxu0 %v2478
        %v3023 = vpop.f32.mrb[0].mxu0
        %v3024 = vadd.f32 %v2943, %v3023
        %v3025 = vpop.f32.mrb[0].mxu0
        %v3026 = vpop.f32.mrb[0].mxu0
        %v3027 = vadd.f32 %v2946, %v3026
        %v3028 = vpop.f32.mrb[0].mxu0
        %3029 = vmatprep.mubr.bf16.mxu0 0
        %3030 = vmatmul.mubr.bf16.gmra.mrb[0].mxu0 %v2479
        %v3031 = vpop.f32.mrb[0].mxu0
        %v3032 = vadd.f32 %v2951, %v3031
        %v3033 = vpop.f32.mrb[0].mxu0
        %v3034 = vpop.f32.mrb[0].mxu0
        %v3035 = vadd.f32 %v2954, %v3034
        %v3036 = vpop.f32.mrb[0].mxu0
        %3037 = vmatprep.mubr.bf16.mxu0 0
        %3038 = vmatmul.mubr.bf16.gmra.mrb[0].mxu0 %v2480
        %v3039 = vpop.f32.mrb[0].mxu0
        %v3040 = vadd.f32 %v2959, %v3039
        %v3041 = vpop.f32.mrb[0].mxu0
        %v3042 = vpop.f32.mrb[0].mxu0
        %v3043 = vadd.f32 %v2962, %v3042
        %v3044 = vpop.f32.mrb[0].mxu0
        %3045 = vmatprep.mubr.bf16.mxu0 0
        %3046 = vmatmul.mubr.bf16.gmra.mrb[0].mxu0 %v2481
        %v3047 = vpop.f32.mrb[0].mxu0
        %v3048 = vadd.f32 %v2967, %v3047
        %v3049 = vpop.f32.mrb[0].mxu0
        %v3050 = vpop.f32.mrb[0].mxu0
        %v3051 = vadd.f32 %v2970, %v3050
        %v3052 = vpop.f32.mrb[0].mxu0
        %3053 = vmatprep.mubr.bf16.mxu0 0
        %3054 = vmatmul.mubr.bf16.gmra.mrb[0].mxu0 %v2482
        %v3055 = vpop.f32.mrb[0].mxu0
        %v3056 = vadd.f32 %v2975, %v3055
        %v3057 = vpop.f32.mrb[0].mxu0
        %v3058 = vpop.f32.mrb[0].mxu0
        %v3059 = vadd.f32 %v2978, %v3058
        %v3060 = vpop.f32.mrb[0].mxu0
        %3061 = vdwg.mxu0
        %v3062 = vsel %vm2563, %v3016, 0.0
        %v3063 = vsel %vm2564, %v3019, 0.0
        %v3064 = vsel %vm2565, %v3024, 0.0
        %v3065 = vsel %vm2566, %v3027, 0.0
        %v3066 = vsel %vm2567, %v3032, 0.0
        %v3067 = vsel %vm2568, %v3035, 0.0
        %v3068 = vsel %vm2569, %v3040, 0.0
        %v3069 = vsel %vm2570, %v3043, 0.0
        %v3070 = vsel %vm2571, %v3048, 0.0
        %v3071 = vsel %vm2572, %v3051, 0.0
        %v3072 = vsel %vm2573, %v3056, 0.0
        %v3073 = vsel %vm2574, %v3059, 0.0
        %v3074 = vmax.f32 %v3062, 0.0
        %v3075 = vmax.f32 %v3063, 0.0
        %v3076 = vmax.f32 %v3064, 0.0
        %v3077 = vmax.f32 %v3065, 0.0
        %v3078 = vmax.f32 %v3066, 0.0
        %v3079 = vmax.f32 %v3067, 0.0
        %v3080 = vmax.f32 %v3068, 0.0
        %v3081 = vmax.f32 %v3069, 0.0
        %v3082 = vmax.f32 %v3070, 0.0
        %v3083 = vmax.f32 %v3071, 0.0
        %v3084 = vmax.f32 %v3072, 0.0
        %v3085 = vmax.f32 %v3073, 0.0
        %v3086 = vpack.c.bf16 %v3075, %v3074
        %v3087 = vpack.c.bf16 %v3077, %v3076
        %v3088 = vpack.c.bf16 %v3079, %v3078
        %v3089 = vpack.c.bf16 %v3081, %v3080
        %v3090 = vpack.c.bf16 %v3083, %v3082
        %v3091 = vpack.c.bf16 %v3085, %v3084
        %v3092 = vrot.slane %v3074, 7
        %v3093 = vrot.slane %v3075, 7
        %v3094 = vrot.slane %v3076, 7
        %v3095 = vrot.slane %v3077, 7
        %v3096 = vrot.slane %v3078, 7
        %v3097 = vrot.slane %v3079, 7
        %v3098 = vrot.slane %v3080, 7
        %v3099 = vrot.slane %v3081, 7
        %v3100 = vrot.slane %v3082, 7
        %v3101 = vrot.slane %v3083, 7
        %v3102 = vrot.slane %v3084, 7
        %v3103 = vrot.slane %v3085, 7
        %v3104 = vsel %vm618, %v3102, %v3103
        %v3105 = vsel %vm618, %v3101, %v3102
        %v3106 = vsel %vm618, %v3100, %v3101
        %v3107 = vsel %vm618, %v3099, %v3100
        %v3108 = vsel %vm618, %v3098, %v3099
        %v3109 = vsel %vm618, %v3097, %v3098
        %v3110 = vsel %vm618, %v3096, %v3097
        %v3111 = vsel %vm618, %v3095, %v3096
        %v3112 = vsel %vm618, %v3094, %v3095
        %v3113 = vsel %vm618, %v3093, %v3094
        %v3114 = vsel %vm618, %v3092, %v3093
        %v3115 = vsel %vm618, %v3103, %v3092
        %v3116 = vpack.c.bf16 %v3114, %v3115
        %v3117 = vpack.c.bf16 %v3112, %v3113
        %v3118 = vpack.c.bf16 %v3110, %v3111
        %v3119 = vpack.c.bf16 %v3108, %v3109
        %v3120 = vpack.c.bf16 %v3106, %v3107
        %v3121 = vpack.c.bf16 %v3104, %v3105
        %v3122 = vrot.slane %v3074, 6
        %v3123 = vrot.slane %v3075, 6
        %v3124 = vrot.slane %v3076, 6
        %v3125 = vrot.slane %v3077, 6
        %v3126 = vrot.slane %v3078, 6
        %v3127 = vrot.slane %v3079, 6
        %v3128 = vrot.slane %v3080, 6
        %v3129 = vrot.slane %v3081, 6
        %v3130 = vrot.slane %v3082, 6
        %v3131 = vrot.slane %v3083, 6
        %v3132 = vrot.slane %v3084, 6
        %v3133 = vrot.slane %v3085, 6
        %v3134 = vsel %vm649, %v3132, %v3133
        %v3135 = vsel %vm649, %v3131, %v3132
        %v3136 = vsel %vm649, %v3130, %v3131
        %v3137 = vsel %vm649, %v3129, %v3130
        %v3138 = vsel %vm649, %v3128, %v3129
        %v3139 = vsel %vm649, %v3127, %v3128
        %v3140 = vsel %vm649, %v3126, %v3127
        %v3141 = vsel %vm649, %v3125, %v3126
        %v3142 = vsel %vm649, %v3124, %v3125
        %v3143 = vsel %vm649, %v3123, %v3124
        %v3144 = vsel %vm649, %v3122, %v3123
        %v3145 = vsel %vm649, %v3133, %v3122
        %v3146 = vpack.c.bf16 %v3144, %v3145
        %v3147 = vpack.c.bf16 %v3142, %v3143
        %v3148 = vpack.c.bf16 %v3140, %v3141
        %v3149 = vpack.c.bf16 %v3138, %v3139
        %v3150 = vpack.c.bf16 %v3136, %v3137
        %v3151 = vpack.c.bf16 %v3134, %v3135
        %v3152 = vld [vmem:[#allocation5 + $0x3c0] sm:$0xf]
        %v3153 = vld [vmem:[#allocation5 + $0x3c4] sm:$0xf]
        %v3154 = vld [vmem:[#allocation5 + $0x3c8] sm:$0xf]
        %v3155 = vld [vmem:[#allocation5 + $0x3cc] sm:$0xf]
        %v3156 = vld [vmem:[#allocation5 + $0x3d0] sm:$0xf]
        %v3157 = vld [vmem:[#allocation5 + $0x3d4] sm:$0xf]
        %v3158 = vld [vmem:[#allocation5 + $0x3d8] sm:$0xf]
        %v3159 = vld [vmem:[#allocation5 + $0x3dc] sm:$0xf]
        %v3160 = vld [vmem:[#allocation5 + $0x3e0] sm:$0xf]
        %v3161 = vld [vmem:[#allocation5 + $0x3e4] sm:$0xf]
        %v3162 = vld [vmem:[#allocation5 + $0x3e8] sm:$0xf]
        %v3163 = vld [vmem:[#allocation5 + $0x3ec] sm:$0xf]
        %v3164 = vld [vmem:[#allocation5 + $0x3f0] sm:$0xf]
        %v3165 = vld [vmem:[#allocation5 + $0x3f4] sm:$0xf]
        %v3166 = vld [vmem:[#allocation5 + $0x3f8] sm:$0xf]
        %v3167 = vld [vmem:[#allocation5 + $0x3fc] sm:$0xf]
        %v3168 = vld [vmem:[#allocation5 + $0x400] sm:$0xf]
        %v3169 = vld [vmem:[#allocation5 + $0x404] sm:$0xf]
        %v3170 = vld [vmem:[#allocation5 + $0x408] sm:$0xf]
        %v3171 = vld [vmem:[#allocation5 + $0x40c] sm:$0xf]
        %v3172 = vld [vmem:[#allocation5 + $0x410] sm:$0xf]
        %v3173 = vld [vmem:[#allocation5 + $0x414] sm:$0xf]
        %v3174 = vld [vmem:[#allocation5 + $0x418] sm:$0xf]
        %v3175 = vld [vmem:[#allocation5 + $0x41c] sm:$0xf]
        %v3176 = vld [vmem:[#allocation5 + $0x420] sm:$0xf]
        %v3177 = vld [vmem:[#allocation5 + $0x424] sm:$0xf]
        %v3178 = vld [vmem:[#allocation5 + $0x428] sm:$0xf]
        %v3179 = vld [vmem:[#allocation5 + $0x42c] sm:$0xf]
        %v3180 = vld [vmem:[#allocation5 + $0x430] sm:$0xf]
        %v3181 = vld [vmem:[#allocation5 + $0x434] sm:$0xf]
        %v3182 = vld [vmem:[#allocation5 + $0x438] sm:$0xf]
        %v3183 = vld [vmem:[#allocation5 + $0x43c] sm:$0xf]
        %v3184 = vld [vmem:[#allocation5 + $0x440] sm:$0xf]
        %v3185 = vld [vmem:[#allocation5 + $0x444] sm:$0xf]
        %v3186 = vld [vmem:[#allocation5 + $0x448] sm:$0xf]
        %v3187 = vld [vmem:[#allocation5 + $0x44c] sm:$0xf]
        %v3188 = vld [vmem:[#allocation5 + $0x450] sm:$0xf]
        %v3189 = vld [vmem:[#allocation5 + $0x454] sm:$0xf]
        %v3190 = vld [vmem:[#allocation5 + $0x458] sm:$0xf]
        %v3191 = vld [vmem:[#allocation5 + $0x45c] sm:$0xf]
        %v3192 = vld [vmem:[#allocation5 + $0x460] sm:$0xf]
        %v3193 = vld [vmem:[#allocation5 + $0x464] sm:$0xf]
        %v3194 = vld [vmem:[#allocation5 + $0x468] sm:$0xf]
        %v3195 = vld [vmem:[#allocation5 + $0x46c] sm:$0xf]
        %v3196 = vld [vmem:[#allocation5 + $0x470] sm:$0xf]
        %v3197 = vld [vmem:[#allocation5 + $0x474] sm:$0xf]
        %v3198 = vld [vmem:[#allocation5 + $0x478] sm:$0xf]
        %v3199 = vld [vmem:[#allocation5 + $0x47c] sm:$0xf]
        %vm3200 = vcmp.lt.s32.totalorder %v452, 46
        %vm3201 = vcmp.lt.s32.totalorder %v453, 46
        %vm3202 = vcmp.lt.s32.totalorder %v454, 46
        %vm3203 = vcmp.lt.s32.totalorder %v455, 46
        %vm3204 = vcmp.lt.s32.totalorder %v456, 46
        %vm3205 = vcmp.lt.s32.totalorder %v457, 46
        %vm3206 = vcmp.lt.s32.totalorder %v458, 46
        %vm3207 = vcmp.lt.s32.totalorder %v459, 46
        %vm3208 = vcmp.lt.s32.totalorder %v460, 46
        %vm3209 = vcmp.lt.s32.totalorder %v461, 46
        %vm3210 = vcmp.lt.s32.totalorder %v462, 46
        %vm3211 = vcmp.lt.s32.totalorder %v463, 46
        %v3212 = vlaneseq
        %v3213 = vshrl.u32 %v3212, 7
        %v3214 = vsub.s32 3, %v3213
        %v3215 = vrot.slane %v503, %v3214
        %v3264 = vunpack.c.l.b16 %v3152
        %v3265 = vunpack.c.l.b16 %v3153
        %v3266 = vunpack.c.l.b16 %v3154
        %v3267 = vunpack.c.l.b16 %v3155
        %v3268 = vunpack.c.l.b16 %v3156
        %v3269 = vunpack.c.l.b16 %v3157
        %v3270 = vunpack.c.l.b16 %v3158
        %v3271 = vunpack.c.l.b16 %v3159
        %v3272 = vunpack.c.l.b16 %v3160
        %v3273 = vunpack.c.l.b16 %v3161
        %v3274 = vunpack.c.l.b16 %v3162
        %v3275 = vunpack.c.l.b16 %v3163
        %v3276 = vunpack.c.l.b16 %v3164
        %v3277 = vunpack.c.l.b16 %v3165
        %v3278 = vunpack.c.l.b16 %v3166
        %v3279 = vunpack.c.l.b16 %v3167
        %v3280 = vunpack.c.l.b16 %v3168
        %v3281 = vunpack.c.l.b16 %v3169
        %v3282 = vunpack.c.l.b16 %v3170
        %v3283 = vunpack.c.l.b16 %v3171
        %v3284 = vunpack.c.l.b16 %v3172
        %v3285 = vunpack.c.l.b16 %v3173
        %v3286 = vunpack.c.l.b16 %v3174
        %v3287 = vunpack.c.l.b16 %v3175
        %v3288 = vunpack.c.l.b16 %v3176
        %v3289 = vunpack.c.l.b16 %v3177
        %v3290 = vunpack.c.l.b16 %v3178
        %v3291 = vunpack.c.l.b16 %v3179
        %v3292 = vunpack.c.l.b16 %v3180
        %v3293 = vunpack.c.l.b16 %v3181
        %v3294 = vunpack.c.l.b16 %v3182
        %v3295 = vunpack.c.l.b16 %v3183
        %v3296 = vunpack.c.l.b16 %v3184
        %v3297 = vunpack.c.l.b16 %v3185
        %v3298 = vunpack.c.l.b16 %v3186
        %v3299 = vunpack.c.l.b16 %v3187
        %v3300 = vunpack.c.l.b16 %v3188
        %v3301 = vunpack.c.l.b16 %v3189
        %v3302 = vunpack.c.l.b16 %v3190
        %v3303 = vunpack.c.l.b16 %v3191
        %v3304 = vunpack.c.l.b16 %v3192
        %v3305 = vunpack.c.l.b16 %v3193
        %v3306 = vunpack.c.l.b16 %v3194
        %v3307 = vunpack.c.l.b16 %v3195
        %v3308 = vunpack.c.l.b16 %v3196
        %v3309 = vunpack.c.l.b16 %v3197
        %v3310 = vunpack.c.l.b16 %v3198
        %v3311 = vunpack.c.l.b16 %v3199
        %v3312 = vpack.c.b16 %v3265, %v3264
        %v3313 = vpack.c.b16 %v3267, %v3266
        %v3314 = vpack.c.b16 %v3269, %v3268
        %v3315 = vpack.c.b16 %v3271, %v3270
        %v3316 = vpack.c.b16 %v3273, %v3272
        %v3317 = vpack.c.b16 %v3275, %v3274
        %v3318 = vpack.c.b16 %v3277, %v3276
        %v3319 = vpack.c.b16 %v3279, %v3278
        %v3320 = vpack.c.b16 %v3281, %v3280
        %v3321 = vpack.c.b16 %v3283, %v3282
        %v3322 = vpack.c.b16 %v3285, %v3284
        %v3323 = vpack.c.b16 %v3287, %v3286
        %v3324 = vpack.c.b16 %v3289, %v3288
        %v3325 = vpack.c.b16 %v3291, %v3290
        %v3326 = vpack.c.b16 %v3293, %v3292
        %v3327 = vpack.c.b16 %v3295, %v3294
        %v3328 = vpack.c.b16 %v3297, %v3296
        %v3329 = vpack.c.b16 %v3299, %v3298
        %v3330 = vpack.c.b16 %v3301, %v3300
        %v3331 = vpack.c.b16 %v3303, %v3302
        %v3332 = vpack.c.b16 %v3305, %v3304
        %v3333 = vpack.c.b16 %v3307, %v3306
        %v3334 = vpack.c.b16 %v3309, %v3308
        %v3335 = vpack.c.b16 %v3311, %v3310
        %3360 = vmatprep.subr.bf16.mxu0 0
        %3361 = vmatpush1.bf16.msra.mxu0 %v3312
        %3362 = vmatprep.subr.bf16.mxu0 0
        %3363 = vmatpush1.bf16.msra.mxu0 %v3313
        %3364 = vmatprep.subr.bf16.mxu0 0
        %3365 = vmatpush1.bf16.msra.mxu0 %v3314
        %3366 = vmatprep.subr.bf16.mxu0 0
        %3367 = vmatpush1.bf16.msra.mxu0 %v3315
        %3368 = vmatprep.subr.bf16.mxu0 0
        %3369 = vmatpush1.bf16.msra.mxu0 %v3316
        %3370 = vmatprep.subr.bf16.mxu0 0
        %3371 = vmatpush1.bf16.msra.mxu0 %v3317
        %3372 = vmatprep.subr.bf16.mxu0 0
        %3373 = vmatpush1.bf16.msra.mxu0 %v3318
        %3374 = vmatprep.subr.bf16.mxu0 0
        %3375 = vmatpush1.bf16.msra.mxu0 %v3319
        %3376 = vmatprep.subr.bf16.mxu0 0
        %3377 = vmatpush1.bf16.msra.mxu0 %v3320
        %3378 = vmatprep.subr.bf16.mxu0 0
        %3379 = vmatpush1.bf16.msra.mxu0 %v3321
        %3380 = vmatprep.subr.bf16.mxu0 0
        %3381 = vmatpush1.bf16.msra.mxu0 %v3322
        %3382 = vmatprep.subr.bf16.mxu0 0
        %3383 = vmatpush1.bf16.msra.mxu0 %v3323
        %3384 = vmatprep.subr.bf16.mxu0 0
        %3385 = vmatpush1.bf16.msra.mxu0 %v3324
        %3386 = vmatprep.subr.bf16.mxu0 0
        %3387 = vmatpush1.bf16.msra.mxu0 %v3325
        %3388 = vmatprep.subr.bf16.mxu0 0
        %3389 = vmatpush1.bf16.msra.mxu0 %v3326
        %3390 = vmatprep.subr.bf16.mxu0 0
        %3391 = vmatpush1.bf16.msra.mxu0 %v3327
        %3392 = vmatprep.mubr.bf16.mxu0 %v3116
        %3393 = vmatmul.mubr.bf16.gmra.mrb[0].mxu0 %v3086
        %v3394 = vpop.f32.mrb[0].mxu0
        %v3395 = vadd.f32 %v3215, %v3394
        %v3396 = vpop.f32.mrb[0].mxu0
        %v3397 = vpop.f32.mrb[0].mxu0
        %v3398 = vadd.f32 %v3215, %v3397
        %v3399 = vpop.f32.mrb[0].mxu0
        %3400 = vmatprep.mubr.bf16.mxu0 %v3117
        %3401 = vmatmul.mubr.bf16.gmra.mrb[0].mxu0 %v3087
        %v3402 = vpop.f32.mrb[0].mxu0
        %v3403 = vadd.f32 %v3215, %v3402
        %v3404 = vpop.f32.mrb[0].mxu0
        %v3405 = vpop.f32.mrb[0].mxu0
        %v3406 = vadd.f32 %v3215, %v3405
        %v3407 = vpop.f32.mrb[0].mxu0
        %3408 = vmatprep.mubr.bf16.mxu0 %v3118
        %3409 = vmatmul.mubr.bf16.gmra.mrb[0].mxu0 %v3088
        %v3410 = vpop.f32.mrb[0].mxu0
        %v3411 = vadd.f32 %v3215, %v3410
        %v3412 = vpop.f32.mrb[0].mxu0
        %v3413 = vpop.f32.mrb[0].mxu0
        %v3414 = vadd.f32 %v3215, %v3413
        %v3415 = vpop.f32.mrb[0].mxu0
        %3416 = vmatprep.mubr.bf16.mxu0 %v3119
        %3417 = vmatmul.mubr.bf16.gmra.mrb[0].mxu0 %v3089
        %v3418 = vpop.f32.mrb[0].mxu0
        %v3419 = vadd.f32 %v3215, %v3418
        %v3420 = vpop.f32.mrb[0].mxu0
        %v3421 = vpop.f32.mrb[0].mxu0
        %v3422 = vadd.f32 %v3215, %v3421
        %v3423 = vpop.f32.mrb[0].mxu0
        %3424 = vmatprep.mubr.bf16.mxu0 %v3120
        %3425 = vmatmul.mubr.bf16.gmra.mrb[0].mxu0 %v3090
        %v3426 = vpop.f32.mrb[0].mxu0
        %v3427 = vadd.f32 %v3215, %v3426
        %v3428 = vpop.f32.mrb[0].mxu0
        %v3429 = vpop.f32.mrb[0].mxu0
        %v3430 = vadd.f32 %v3215, %v3429
        %v3431 = vpop.f32.mrb[0].mxu0
        %3432 = vmatprep.mubr.bf16.mxu0 %v3121
        %3433 = vmatmul.mubr.bf16.gmra.mrb[0].mxu0 %v3091
        %v3434 = vpop.f32.mrb[0].mxu0
        %v3435 = vadd.f32 %v3215, %v3434
        %v3436 = vpop.f32.mrb[0].mxu0
        %v3437 = vpop.f32.mrb[0].mxu0
        %v3438 = vadd.f32 %v3215, %v3437
        %v3439 = vpop.f32.mrb[0].mxu0
        %3440 = vdwg.mxu0
        %3441 = vmatprep.subr.bf16.mxu0 0
        %3442 = vmatpush1.bf16.msra.mxu0 %v3328
        %3443 = vmatprep.subr.bf16.mxu0 0
        %3444 = vmatpush1.bf16.msra.mxu0 %v3329
        %3445 = vmatprep.subr.bf16.mxu0 0
        %3446 = vmatpush1.bf16.msra.mxu0 %v3330
        %3447 = vmatprep.subr.bf16.mxu0 0
        %3448 = vmatpush1.bf16.msra.mxu0 %v3331
        %3449 = vmatprep.subr.bf16.mxu0 0
        %3450 = vmatpush1.bf16.msra.mxu0 %v3332
        %3451 = vmatprep.subr.bf16.mxu0 0
        %3452 = vmatpush1.bf16.msra.mxu0 %v3333
        %3453 = vmatprep.subr.bf16.mxu0 0
        %3454 = vmatpush1.bf16.msra.mxu0 %v3334
        %3455 = vmatprep.subr.bf16.mxu0 0
        %3456 = vmatpush1.bf16.msra.mxu0 %v3335
        %3457 = vmatprep.subr.bf16.mxu0 0
        %3458 = vmatpush1.bf16.msra.mxu0 0
        %3459 = vmatprep.subr.bf16.mxu0 0
        %3460 = vmatpush1.bf16.msra.mxu0 0
        %3461 = vmatprep.subr.bf16.mxu0 0
        %3462 = vmatpush1.bf16.msra.mxu0 0
        %3463 = vmatprep.subr.bf16.mxu0 0
        %3464 = vmatpush1.bf16.msra.mxu0 0
        %3465 = vmatprep.subr.bf16.mxu0 0
        %3466 = vmatpush1.bf16.msra.mxu0 0
        %3467 = vmatprep.subr.bf16.mxu0 0
        %3468 = vmatpush1.bf16.msra.mxu0 0
        %3469 = vmatprep.subr.bf16.mxu0 0
        %3470 = vmatpush1.bf16.msra.mxu0 0
        %3471 = vmatprep.subr.bf16.mxu0 0
        %3472 = vmatpush1.bf16.msra.mxu0 0
        %3473 = vmatprep.mubr.bf16.mxu0 0
        %3474 = vmatmul.mubr.bf16.gmra.mrb[0].mxu0 %v3146
        %v3475 = vpop.f32.mrb[0].mxu0
        %v3476 = vadd.f32 %v3395, %v3475
        %v3477 = vpop.f32.mrb[0].mxu0
        %v3478 = vpop.f32.mrb[0].mxu0
        %v3479 = vadd.f32 %v3398, %v3478
        %v3480 = vpop.f32.mrb[0].mxu0
        %3481 = vmatprep.mubr.bf16.mxu0 0
        %3482 = vmatmul.mubr.bf16.gmra.mrb[0].mxu0 %v3147
        %v3483 = vpop.f32.mrb[0].mxu0
        %v3484 = vadd.f32 %v3403, %v3483
        %v3485 = vpop.f32.mrb[0].mxu0
        %v3486 = vpop.f32.mrb[0].mxu0
        %v3487 = vadd.f32 %v3406, %v3486
        %v3488 = vpop.f32.mrb[0].mxu0
        %3489 = vmatprep.mubr.bf16.mxu0 0
        %3490 = vmatmul.mubr.bf16.gmra.mrb[0].mxu0 %v3148
        %v3491 = vpop.f32.mrb[0].mxu0
        %v3492 = vadd.f32 %v3411, %v3491
        %v3493 = vpop.f32.mrb[0].mxu0
        %v3494 = vpop.f32.mrb[0].mxu0
        %v3495 = vadd.f32 %v3414, %v3494
        %v3496 = vpop.f32.mrb[0].mxu0
        %3497 = vmatprep.mubr.bf16.mxu0 0
        %3498 = vmatmul.mubr.bf16.gmra.mrb[0].mxu0 %v3149
        %v3499 = vpop.f32.mrb[0].mxu0
        %v3500 = vadd.f32 %v3419, %v3499
        %v3501 = vpop.f32.mrb[0].mxu0
        %v3502 = vpop.f32.mrb[0].mxu0
        %v3503 = vadd.f32 %v3422, %v3502
        %v3504 = vpop.f32.mrb[0].mxu0
        %3505 = vmatprep.mubr.bf16.mxu0 0
        %3506 = vmatmul.mubr.bf16.gmra.mrb[0].mxu0 %v3150
        %v3507 = vpop.f32.mrb[0].mxu0
        %v3508 = vadd.f32 %v3427, %v3507
        %v3509 = vpop.f32.mrb[0].mxu0
        %v3510 = vpop.f32.mrb[0].mxu0
        %v3511 = vadd.f32 %v3430, %v3510
        %v3512 = vpop.f32.mrb[0].mxu0
        %3513 = vmatprep.mubr.bf16.mxu0 0
        %3514 = vmatmul.mubr.bf16.gmra.mrb[0].mxu0 %v3151
        %v3515 = vpop.f32.mrb[0].mxu0
        %v3516 = vadd.f32 %v3435, %v3515
        %v3517 = vpop.f32.mrb[0].mxu0
        %v3518 = vpop.f32.mrb[0].mxu0
        %v3519 = vadd.f32 %v3438, %v3518
        %v3520 = vpop.f32.mrb[0].mxu0
        %3521 = vdwg.mxu0
        %v3522 = vsel %vm3200, %v3476, 0.0
        %v3523 = vsel %vm3201, %v3479, 0.0
        %v3524 = vsel %vm3202, %v3484, 0.0
        %v3525 = vsel %vm3203, %v3487, 0.0
        %v3526 = vsel %vm3204, %v3492, 0.0
        %v3527 = vsel %vm3205, %v3495, 0.0
        %v3528 = vsel %vm3206, %v3500, 0.0
        %v3529 = vsel %vm3207, %v3503, 0.0
        %v3530 = vsel %vm3208, %v3508, 0.0
        %v3531 = vsel %vm3209, %v3511, 0.0
        %v3532 = vsel %vm3210, %v3516, 0.0
        %v3533 = vsel %vm3211, %v3519, 0.0
        %v3534 = vmax.f32 %v3522, 0.0
        %v3535 = vmax.f32 %v3523, 0.0
        %v3536 = vmax.f32 %v3524, 0.0
        %v3537 = vmax.f32 %v3525, 0.0
        %v3538 = vmax.f32 %v3526, 0.0
        %v3539 = vmax.f32 %v3527, 0.0
        %v3540 = vmax.f32 %v3528, 0.0
        %v3541 = vmax.f32 %v3529, 0.0
        %v3542 = vmax.f32 %v3530, 0.0
        %v3543 = vmax.f32 %v3531, 0.0
        %v3544 = vmax.f32 %v3532, 0.0
        %v3545 = vmax.f32 %v3533, 0.0
        %v3546 = vpack.c.bf16 %v3535, %v3534
        %v3547 = vpack.c.bf16 %v3537, %v3536
        %v3548 = vpack.c.bf16 %v3539, %v3538
        %v3549 = vpack.c.bf16 %v3541, %v3540
        %v3550 = vpack.c.bf16 %v3543, %v3542
        %v3551 = vpack.c.bf16 %v3545, %v3544
        %v3552 = vld [vmem:[#allocation5 + $0x480] sm:$0xf]
        %v3553 = vld [vmem:[#allocation5 + $0x484] sm:$0xf]
        %v3554 = vld [vmem:[#allocation5 + $0x488] sm:$0xf]
        %v3555 = vld [vmem:[#allocation5 + $0x48c] sm:$0xf]
        %v3556 = vld [vmem:[#allocation5 + $0x490] sm:$0xf]
        %v3557 = vld [vmem:[#allocation5 + $0x494] sm:$0xf]
        %v3558 = vld [vmem:[#allocation5 + $0x498] sm:$0xf]
        %v3559 = vld [vmem:[#allocation5 + $0x49c] sm:$0xf]
        %v3560 = vld [vmem:[#allocation5 + $0x4a0] sm:$0xf]
        %v3561 = vld [vmem:[#allocation5 + $0x4a4] sm:$0xf]
        %v3562 = vld [vmem:[#allocation5 + $0x4a8] sm:$0xf]
        %v3563 = vld [vmem:[#allocation5 + $0x4ac] sm:$0xf]
        %v3564 = vld [vmem:[#allocation5 + $0x4b0] sm:$0xf]
        %v3565 = vld [vmem:[#allocation5 + $0x4b4] sm:$0xf]
        %v3566 = vld [vmem:[#allocation5 + $0x4b8] sm:$0xf]
        %v3567 = vld [vmem:[#allocation5 + $0x4bc] sm:$0xf]
        %v3568 = vlaneseq
        %v3569 = vshrl.u32 %v3568, 7
        %v3570 = vsub.s32 4, %v3569
        %v3571 = vrot.slane %v503, %v3570
        %v3588 = vunpack.c.l.b16 %v3552
        %v3589 = vunpack.c.l.b16 %v3553
        %v3590 = vunpack.c.l.b16 %v3554
        %v3591 = vunpack.c.l.b16 %v3555
        %v3592 = vunpack.c.l.b16 %v3556
        %v3593 = vunpack.c.l.b16 %v3557
        %v3594 = vunpack.c.l.b16 %v3558
        %v3595 = vunpack.c.l.b16 %v3559
        %v3596 = vunpack.c.l.b16 %v3560
        %v3597 = vunpack.c.l.b16 %v3561
        %v3598 = vunpack.c.l.b16 %v3562
        %v3599 = vunpack.c.l.b16 %v3563
        %v3600 = vunpack.c.l.b16 %v3564
        %v3601 = vunpack.c.l.b16 %v3565
        %v3602 = vunpack.c.l.b16 %v3566
        %v3603 = vunpack.c.l.b16 %v3567
        %v3604 = vpack.c.b16 %v3589, %v3588
        %v3605 = vpack.c.b16 %v3591, %v3590
        %v3606 = vpack.c.b16 %v3593, %v3592
        %v3607 = vpack.c.b16 %v3595, %v3594
        %v3608 = vpack.c.b16 %v3597, %v3596
        %v3609 = vpack.c.b16 %v3599, %v3598
        %v3610 = vpack.c.b16 %v3601, %v3600
        %v3611 = vpack.c.b16 %v3603, %v3602
        %3620 = vmatprep.subr.bf16.mxu0 0
        %3621 = vmatpush1.bf16.msra.mxu0 %v3604
        %3622 = vmatprep.subr.bf16.mxu0 0
        %3623 = vmatpush1.bf16.msra.mxu0 %v3605
        %3624 = vmatprep.subr.bf16.mxu0 0
        %3625 = vmatpush1.bf16.msra.mxu0 %v3606
        %3626 = vmatprep.subr.bf16.mxu0 0
        %3627 = vmatpush1.bf16.msra.mxu0 %v3607
        %3628 = vmatprep.subr.bf16.mxu0 0
        %3629 = vmatpush1.bf16.msra.mxu0 %v3608
        %3630 = vmatprep.subr.bf16.mxu0 0
        %3631 = vmatpush1.bf16.msra.mxu0 %v3609
        %3632 = vmatprep.subr.bf16.mxu0 0
        %3633 = vmatpush1.bf16.msra.mxu0 %v3610
        %3634 = vmatprep.subr.bf16.mxu0 0
        %3635 = vmatpush1.bf16.msra.mxu0 %v3611
        %3636 = vmatprep.subr.bf16.mxu0 0
        %3637 = vmatpush1.bf16.msra.mxu0 0
        %3638 = vmatprep.subr.bf16.mxu0 0
        %3639 = vmatpush1.bf16.msra.mxu0 0
        %3640 = vmatprep.subr.bf16.mxu0 0
        %3641 = vmatpush1.bf16.msra.mxu0 0
        %3642 = vmatprep.subr.bf16.mxu0 0
        %3643 = vmatpush1.bf16.msra.mxu0 0
        %3644 = vmatprep.subr.bf16.mxu0 0
        %3645 = vmatpush1.bf16.msra.mxu0 0
        %3646 = vmatprep.subr.bf16.mxu0 0
        %3647 = vmatpush1.bf16.msra.mxu0 0
        %3648 = vmatprep.subr.bf16.mxu0 0
        %3649 = vmatpush1.bf16.msra.mxu0 0
        %3650 = vmatprep.subr.bf16.mxu0 0
        %3651 = vmatpush1.bf16.msra.mxu0 0
        %3652 = vmatprep.mubr.bf16.mxu0 0
        %3653 = vmatmul.mubr.bf16.gmra.mrb[0].mxu0 %v3546
        %v3654 = vpop.f32.mrb[0].mxu0
        %v3655 = vadd.f32 %v3571, %v3654
        %v3656 = vpop.f32.mrb[0].mxu0
        %v3657 = vpop.f32.mrb[0].mxu0
        %v3658 = vadd.f32 %v3571, %v3657
        %v3659 = vpop.f32.mrb[0].mxu0
        %3660 = vmatprep.mubr.bf16.mxu0 0
        %3661 = vmatmul.mubr.bf16.gmra.mrb[0].mxu0 %v3547
        %v3662 = vpop.f32.mrb[0].mxu0
        %v3663 = vadd.f32 %v3571, %v3662
        %v3664 = vpop.f32.mrb[0].mxu0
        %v3665 = vpop.f32.mrb[0].mxu0
        %v3666 = vadd.f32 %v3571, %v3665
        %v3667 = vpop.f32.mrb[0].mxu0
        %3668 = vmatprep.mubr.bf16.mxu0 0
        %3669 = vmatmul.mubr.bf16.gmra.mrb[0].mxu0 %v3548
        %v3670 = vpop.f32.mrb[0].mxu0
        %v3671 = vadd.f32 %v3571, %v3670
        %v3672 = vpop.f32.mrb[0].mxu0
        %v3673 = vpop.f32.mrb[0].mxu0
        %v3674 = vadd.f32 %v3571, %v3673
        %v3675 = vpop.f32.mrb[0].mxu0
        %3676 = vmatprep.mubr.bf16.mxu0 0
        %3677 = vmatmul.mubr.bf16.gmra.mrb[0].mxu0 %v3549
        %v3678 = vpop.f32.mrb[0].mxu0
        %v3679 = vadd.f32 %v3571, %v3678
        %v3680 = vpop.f32.mrb[0].mxu0
        %v3681 = vpop.f32.mrb[0].mxu0
        %v3682 = vadd.f32 %v3571, %v3681
        %v3683 = vpop.f32.mrb[0].mxu0
        %3684 = vmatprep.mubr.bf16.mxu0 0
        %3685 = vmatmul.mubr.bf16.gmra.mrb[0].mxu0 %v3550
        %v3686 = vpop.f32.mrb[0].mxu0
        %v3687 = vadd.f32 %v3571, %v3686
        %v3688 = vpop.f32.mrb[0].mxu0
        %v3689 = vpop.f32.mrb[0].mxu0
        %v3690 = vadd.f32 %v3571, %v3689
        %v3691 = vpop.f32.mrb[0].mxu0
        %3692 = vmatprep.mubr.bf16.mxu0 0
        %3693 = vmatmul.mubr.bf16.gmra.mrb[0].mxu0 %v3551
        %v3694 = vpop.f32.mrb[0].mxu0
        %v3695 = vadd.f32 %v3571, %v3694
        %v3696 = vpop.f32.mrb[0].mxu0
        %v3697 = vpop.f32.mrb[0].mxu0
        %v3698 = vadd.f32 %v3571, %v3697
        %v3699 = vpop.f32.mrb[0].mxu0
        %3700 = vdwg.mxu0
        %v3701 = vsel %vm3200, %v3655, 0.0
        %v3702 = vsel %vm3201, %v3658, 0.0
        %v3703 = vsel %vm3202, %v3663, 0.0
        %v3704 = vsel %vm3203, %v3666, 0.0
        %v3705 = vsel %vm3204, %v3671, 0.0
        %v3706 = vsel %vm3205, %v3674, 0.0
        %v3707 = vsel %vm3206, %v3679, 0.0
        %v3708 = vsel %vm3207, %v3682, 0.0
        %v3709 = vsel %vm3208, %v3687, 0.0
        %v3710 = vsel %vm3209, %v3690, 0.0
        %v3711 = vsel %vm3210, %v3695, 0.0
        %v3712 = vsel %vm3211, %v3698, 0.0
        %3713 = vst [vmem:[%s257] sm:$0xff] %v3701
        %3714 = vst [vmem:[%s257 + $0x8] sm:$0xff] %v3702
        %3715 = vst [vmem:[%s257 + $0x10] sm:$0xff] %v3703
        %3716 = vst [vmem:[%s257 + $0x18] sm:$0xff] %v3704
        %3717 = vst [vmem:[%s257 + $0x20] sm:$0xff] %v3705
        %3718 = vst [vmem:[%s257 + $0x28] sm:$0xff] %v3706
        %3719 = vst [vmem:[%s257 + $0x30] sm:$0xff] %v3707
        %3720 = vst [vmem:[%s257 + $0x38] sm:$0xff] %v3708
        %3721 = vst [vmem:[%s257 + $0x40] sm:$0xff] %v3709
        %3722 = vst [vmem:[%s257 + $0x48] sm:$0xff] %v3710
        %3723 = vst [vmem:[%s257 + $0x50] sm:$0xff] %v3711
        %3724 = vst [vmem:[%s257 + $0x58] sm:$0xff] %v3712
        %s3725 = sand.u32 %s120, 1
        %s3726 = scalar_lea.sflag [#allocation4], %s3725
        %s3727 = sand.u32 %s120, 1
        %s3728 = smul.addr %s3727, 96
        %s3729 = scalar_lea.vmem [#allocation10], %s3728
        // Predicated region
        $region53: #{tpu_custom_call.1} parent=35 // pred_check
          %p3730 = pneg %p130
        $region54: #{tpu_custom_call.1} parent=35 // pred_check_branch
          %3732 = sbr.rel (%p3730) target = $region56
        $region55: #{tpu_custom_call.1} parent=35 // pred_region
          %s3734 = ssub.s32 1536, 1536
          %3735 = vsyncadd %s3726, %s3734
          %s3736 = smul.addr %s23, 12
          %s3737 = smul.addr %s3736, 128
          %s3738 = scalar_lea.hbm %s4, %s3737
          %s3739 = sshll.u32 %s3729, 4
          %s3740 = int_to_ptr.vmem [resolvable:$true] %s3739
          %3745 = dma.vmem_to_hbm [thread:$0]  %s3740, 1536, %s3738, %s3726, 128, 128, 8
        $region56: #{tpu_custom_call.1} parent=35 // pred_fallthru
          _
      $region36: #{tpu_custom_call.1} parent=5 // pred_fallthru
        _
      %p3746 = scmp.le.s32.totalorder 2, %s18
      // Predicated region
      $region57: #{tpu_custom_call.1} parent=5 // pred_check
        %p3747 = pneg %p3746
      $region58: #{tpu_custom_call.1} parent=5 // pred_check_branch
        %3749 = sbr.rel (%p3747) target = $region60
      $region59: #{tpu_custom_call.1} parent=5 // pred_region
        %s3750 = ssub.s32 %s18, 2
        // Predicated region
        $region61: #{tpu_custom_call.1} parent=59 // pred_check
          %p3751 = pneg %p136
        $region62: #{tpu_custom_call.1} parent=59 // pred_check_branch
          %3753 = sbr.rel (%p3751) target = $region64
        $region63: #{tpu_custom_call.1} parent=59 // pred_region
          %s3754 = sand.u32 %s121, 1
          %s3755 = scalar_lea.sflag [#allocation4], %s3754
          %s3756 = sand.u32 %s121, 1
          %s3757 = smul.addr %s3756, 96
          %s3758 = scalar_lea.vmem [#allocation10], %s3757
          %3759 = dma.done %s3755, 1536
        $region64: #{tpu_custom_call.1} parent=59 // pred_fallthru
          _
      $region60: #{tpu_custom_call.1} parent=5 // pred_fallthru
        _
    $region6: #{tpu_custom_call.1} parent=1 // loop_footer
      %s22 = sadd.s32 1, %s18
    $region7: #{tpu_custom_call.1} parent=1 // loop_footer_branch
      %17 = sbr.rel target = $region3
    $region8: #{tpu_custom_call.1} parent=1 // loop_exit
      _
    %3760 = vsyncpa [#allocation3], 1
    %s3761 = scalar_lea.sflag [#allocation3], 1
    %3762 = vsyncpa %s3761, 1
    %3763 = vsyncpa [#allocation6], 1
    %3764 = vsyncpa [#allocation9], 1
    %3765 = vsyncpa [#allocation4], 1
    %s3766 = scalar_lea.sflag [#allocation4], 1
    %3767 = vsyncpa %s3766, 1

</llo_original>
